<compile_context>
chip_gen: v6e
topology: v6e:2x2x1
jax: 0.10.0
libtpu: 0.0.40
codegen_flags: <defaults>
</compile_context>

<pallas_src>
import functools

import jax
import jax.numpy as jnp
from jax.experimental import pallas as pl
from jax.experimental.pallas import tpu as pltpu

FC_DIM = 512                   # replaced-fc hidden width
HEAD_DIMS = (3, 2, 3)          # mask, gender, age
OUT_PAD = 128                  # lane-dense packed head output width


def _ceil_to(x, m):
    return ((x + m - 1) // m) * m


def _head_kernel(x_ref, wfc_ref, bfc_ref, wh_ref, bh_ref, out_ref, gap_acc,
                 *, inv_hw):
    s = pl.program_id(1)                       # spatial (reduction) axis

    @pl.when(s == 0)
    def _init():
        gap_acc[...] = jnp.zeros_like(gap_acc)

    # Partial spatial sum of this (bt, tile_hw, C) block -> (bt, C), f32 accum.
    gap_acc[...] += jnp.sum(x_ref[...], axis=1)

    @pl.when(s == pl.num_programs(1) - 1)
    def _finalize():
        gap = gap_acc[...] * inv_hw            # scale once at the end (f32)
        # Replaced fc: Linear(C -> 512) + ReLU
        feat = jnp.dot(gap, wfc_ref[...],
                       preferred_element_type=jnp.float32) + bfc_ref[...]
        feat = jnp.maximum(feat, 0.0)
        # Fused heads: single (512, 128) lane-padded matmul, one unmasked store.
        out_ref[...] = (jnp.dot(feat, wh_ref[...],
                                preferred_element_type=jnp.float32)
                        + bh_ref[...])


def make_params(key, in_channels=2048):
    """Deterministic init matching the module's Linear shapes."""
    ks = jax.random.split(key, 8)

    def lin(kw, kb, fan_in, fan_out):
        w = (jax.random.normal(kw, (fan_in, fan_out), jnp.float32)
             / jnp.sqrt(fan_in))
        b = jax.random.normal(kb, (fan_out,), jnp.float32) * 0.1
        return w, b

    w_fc, b_fc = lin(ks[0], ks[1], in_channels, FC_DIM)
    w_mask, b_mask = lin(ks[2], ks[3], FC_DIM, HEAD_DIMS[0])
    w_gender, b_gender = lin(ks[4], ks[5], FC_DIM, HEAD_DIMS[1])
    w_age, b_age = lin(ks[6], ks[7], FC_DIM, HEAD_DIMS[2])
    return (w_fc, b_fc, w_mask, b_mask, w_gender, b_gender, w_age, b_age)


def fuse_head_params(params):
    """Pack the three heads into one lane-dense (512, 128) weight/bias."""
    w_fc, b_fc, w_mask, b_mask, w_gender, b_gender, w_age, b_age = params
    w_heads = jnp.zeros((FC_DIM, OUT_PAD), jnp.float32)
    b_heads = jnp.zeros((1, OUT_PAD), jnp.float32)
    off = 0
    for w, b in ((w_mask, b_mask), (w_gender, b_gender), (w_age, b_age)):
        d = w.shape[1]
        w_heads = w_heads.at[:, off:off + d].set(w)
        b_heads = b_heads.at[0, off:off + d].set(b)
        off += d
    return w_fc, b_fc.reshape(1, FC_DIM), w_heads, b_heads


def resnet50_heads_forward(x_feat, fused_params):
    """x_feat: (B, H, W, C) channels-last feature map from the conv trunk."""
    w_fc, b_fc, w_heads, b_heads = fused_params
    B, H, W, C = x_feat.shape
    HW = H * W

    # --- tiling (v7x-safe: blocks stay well under 32 MiB scoped VMEM) -------
    bt = B if B <= 8 else 8                       # batch tile
    b_pad = _ceil_to(B, bt)
    tile_hw = min(128, _ceil_to(HW, 8))           # spatial tile, 8-aligned
    hw_pad = _ceil_to(HW, tile_hw)

    x = x_feat.reshape(B, HW, C)                  # free reshape, no transpose
    if (b_pad, hw_pad) != (B, HW):
        # zero padding only adds zeros to the spatial sum (mean uses true HW)
        x = jnp.pad(x, ((0, b_pad - B), (0, hw_pad - HW), (0, 0)))

    grid = (b_pad // bt, hw_pad // tile_hw)

    def resident(shape):
        nd = len(shape)
        return pl.BlockSpec(shape, lambda b, s, _nd=nd: (0,) * _nd)

    in_specs = [
        pl.BlockSpec((bt, tile_hw, C), lambda b, s: (b, s, 0)),
        resident(w_fc.shape),
        resident(b_fc.shape),
        resident(w_heads.shape),
        resident(b_heads.shape),
    ]
    out_specs = pl.BlockSpec((bt, OUT_PAD), lambda b, s: (b, 0))
    out_shape = jax.ShapeDtypeStruct((b_pad, OUT_PAD), jnp.float32)

    flops = (2 * b_pad * hw_pad * C
             + 2 * b_pad * C * FC_DIM
             + 2 * b_pad * FC_DIM * OUT_PAD)
    bytes_accessed = 4 * (b_pad * hw_pad * C + C * FC_DIM + FC_DIM
                          + FC_DIM * OUT_PAD + OUT_PAD + b_pad * OUT_PAD)

    out = pl.pallas_call(
        functools.partial(_head_kernel, inv_hw=1.0 / HW),
        grid_spec=pltpu.PrefetchScalarGridSpec(
            num_scalar_prefetch=0,
            grid=grid,
            in_specs=in_specs,
            out_specs=out_specs,
            scratch_shapes=[pltpu.VMEM((bt, C), jnp.float32)],
        ),
        out_shape=out_shape,
        compiler_params=pltpu.CompilerParams(
            dimension_semantics=("parallel", "arbitrary"),
            vmem_limit_bytes=32 * 1024 * 1024,
        ),
        cost_estimate=pl.CostEstimate(
            flops=flops, transcendentals=0, bytes_accessed=bytes_accessed),
    )(x, w_fc, b_fc, w_heads, b_heads)

    d0, d1, d2 = HEAD_DIMS
    mask = out[:B, :d0]
    gender = out[:B, d0:d0 + d1]
    age = out[:B, d0 + d1:d0 + d1 + d2]
    return mask, gender, age


def reference_forward(x_feat, params):
    """Pure-JAX reference (unfused, unpadded) for correctness check."""
    w_fc, b_fc, w_mask, b_mask, w_gender, b_gender, w_age, b_age = params
    gap = jnp.mean(x_feat, axis=(1, 2))                      # (B, C)
    feat = jnp.maximum(gap @ w_fc + b_fc, 0.0)               # Linear + ReLU
    return (feat @ w_mask + b_mask,
            feat @ w_gender + b_gender,
            feat @ w_age + b_age)


if __name__ == "__main__":
    key = jax.random.PRNGKey(0)
    kx, kp = jax.random.split(key)

    # Small demo: trunk feature map (channels-last), B=2, 16x16 spatial, C=2048
    B, H, W, C = 2, 16, 16, 2048
    x_feat = jax.random.normal(kx, (B, H, W, C), jnp.float32)

    params = make_params(kp, C)
    fused = fuse_head_params(params)

    mask, gender, age = resnet50_heads_forward(x_feat, fused)
    jax.block_until_ready((mask, gender, age))

    ref_mask, ref_gender, ref_age = reference_forward(x_feat, params)
    assert mask.shape == (B, 3) and gender.shape == (B, 2) and age.shape == (B, 3)
    for got, want in ((mask, ref_mask), (gender, ref_gender), (age, ref_age)):
        assert jnp.allclose(got, want, atol=2e-3, rtol=2e-2), "mismatch vs reference"

    print("KERNEL_OK")
</pallas_src>

<mosaic_0001>
module attributes {stable_mosaic.version = 11 : i64} {
  func.func @_head_kernel(%arg0: i32, %arg1: i32, %arg2: memref<2x128x2048xf32, #tpu.memory_space<vmem>>, %arg3: memref<2048x512xf32, #tpu.memory_space<vmem>>, %arg4: memref<1x512xf32, #tpu.memory_space<vmem>>, %arg5: memref<512x128xf32, #tpu.memory_space<vmem>>, %arg6: memref<1x128xf32, #tpu.memory_space<vmem>>, %arg7: memref<2x128xf32, #tpu.memory_space<vmem>>, %arg8: memref<2x2048xf32, #tpu.memory_space<vmem>>) attributes {dimension_semantics = [#tpu.dimension_semantics<parallel>, #tpu.dimension_semantics<arbitrary>], iteration_bounds = array<i64: 1, 2>, scalar_prefetch = 0 : i64, scratch_operands = 1 : i64, tpu.core_type = #tpu.core_type<tc>, window_params = [{transform_indices = @transform_0, window_bounds = array<i64: 2, 128, 2048>}, {pipeline_mode = #tpu.pipeline_mode<synchronous>, transform_indices = @transform_1, window_bounds = array<i64: 2048, 512>}, {pipeline_mode = #tpu.pipeline_mode<synchronous>, transform_indices = @transform_2, window_bounds = array<i64: 1, 512>}, {pipeline_mode = #tpu.pipeline_mode<synchronous>, transform_indices = @transform_3, window_bounds = array<i64: 512, 128>}, {pipeline_mode = #tpu.pipeline_mode<synchronous>, transform_indices = @transform_4, window_bounds = array<i64: 1, 128>}, {transform_indices = @transform_5, window_bounds = array<i64: 2, 128>}]} {
    %c0_i32 = arith.constant 0 : i32
    %0 = arith.cmpi eq, %arg1, %c0_i32 : i32
    %1 = arith.extui %0 : i1 to i32
    %c0_i32_0 = arith.constant 0 : i32
    %2 = arith.cmpi ne, %1, %c0_i32_0 : i32
    scf.if %2 {
      %cst_8 = arith.constant 0.000000e+00 : f32
      %11 = vector.broadcast %cst_8 : f32 to vector<2x2048xf32>
      %c0_9 = arith.constant 0 : index
      %c0_10 = arith.constant 0 : index
      %12 = vector.load %arg8[%c0_9, %c0_10] : memref<2x2048xf32, #tpu.memory_space<vmem>>, vector<2x2048xf32>
      tpu.vector_store %arg8[%c0_9, %c0_10], %11 {strides = array<i32>} : memref<2x2048xf32, #tpu.memory_space<vmem>>, vector<2x2048xf32>,
    } else {
    }
    %c0 = arith.constant 0 : index
    %c0_1 = arith.constant 0 : index
    %3 = vector.load %arg8[%c0, %c0_1] : memref<2x2048xf32, #tpu.memory_space<vmem>>, vector<2x2048xf32>
    %c0_2 = arith.constant 0 : index
    %c0_3 = arith.constant 0 : index
    %c0_4 = arith.constant 0 : index
    %4 = vector.load %arg2[%c0_2, %c0_3, %c0_4] : memref<2x128x2048xf32, #tpu.memory_space<vmem>>, vector<2x128x2048xf32>
    %cst = arith.constant dense<0.000000e+00> : vector<2x2048xf32>
    %5 = vector.multi_reduction <add>, %4, %cst [1] : vector<2x128x2048xf32> to vector<2x2048xf32>
    %6 = arith.addf %3, %5 : vector<2x2048xf32>
    %c0_5 = arith.constant 0 : index
    %c0_6 = arith.constant 0 : index
    %7 = vector.load %arg8[%c0_5, %c0_6] : memref<2x2048xf32, #tpu.memory_space<vmem>>, vector<2x2048xf32>
    tpu.vector_store %arg8[%c0_5, %c0_6], %6 {strides = array<i32>} : memref<2x2048xf32, #tpu.memory_space<vmem>>, vector<2x2048xf32>,
    %c1_i32 = arith.constant 1 : i32
    %8 = arith.cmpi eq, %arg1, %c1_i32 : i32
    %9 = arith.extui %8 : i1 to i32
    %c0_i32_7 = arith.constant 0 : i32
    %10 = arith.cmpi ne, %9, %c0_i32_7 : i32
    scf.if %10 {
      %c0_8 = arith.constant 0 : index
      %c0_9 = arith.constant 0 : index
      %11 = vector.load %arg8[%c0_8, %c0_9] : memref<2x2048xf32, #tpu.memory_space<vmem>>, vector<2x2048xf32>
      %cst_10 = arith.constant 3.906250e-03 : f32
      %12 = vector.broadcast %cst_10 : f32 to vector<2x2048xf32>
      %13 = arith.mulf %11, %12 : vector<2x2048xf32>
      %c0_11 = arith.constant 0 : index
      %c0_12 = arith.constant 0 : index
      %14 = vector.load %arg3[%c0_11, %c0_12] : memref<2048x512xf32, #tpu.memory_space<vmem>>, vector<2048x512xf32>
      %cst_13 = arith.constant dense<0.000000e+00> : vector<2x512xf32>
      %15 = tpu.matmul %13, %14, %cst_13 {dimension_numbers = #tpu.dot_dimension_numbers<[1], [0], [0], [1], [0, 0, 1, 1], [], []>} : vector<2x2048xf32>, vector<2048x512xf32>, vector<2x512xf32> -> vector<2x512xf32>
      %c0_14 = arith.constant 0 : index
      %c0_15 = arith.constant 0 : index
      %16 = vector.load %arg4[%c0_14, %c0_15] : memref<1x512xf32, #tpu.memory_space<vmem>>, vector<1x512xf32>
      %17 = vector.broadcast %16 : vector<1x512xf32> to vector<2x512xf32>
      %18 = arith.addf %15, %17 : vector<2x512xf32>
      %cst_16 = arith.constant 0.000000e+00 : f32
      %19 = vector.broadcast %cst_16 : f32 to vector<2x512xf32>
      %20 = arith.maximumf %18, %19 : vector<2x512xf32>
      %c0_17 = arith.constant 0 : index
      %c0_18 = arith.constant 0 : index
      %21 = vector.load %arg5[%c0_17, %c0_18] : memref<512x128xf32, #tpu.memory_space<vmem>>, vector<512x128xf32>
      %cst_19 = arith.constant dense<0.000000e+00> : vector<2x128xf32>
      %22 = tpu.matmul %20, %21, %cst_19 {dimension_numbers = #tpu.dot_dimension_numbers<[1], [0], [0], [1], [0, 0, 1, 1], [], []>} : vector<2x512xf32>, vector<512x128xf32>, vector<2x128xf32> -> vector<2x128xf32>
      %c0_20 = arith.constant 0 : index
      %c0_21 = arith.constant 0 : index
      %23 = vector.load %arg6[%c0_20, %c0_21] : memref<1x128xf32, #tpu.memory_space<vmem>>, vector<1x128xf32>
      %24 = vector.broadcast %23 : vector<1x128xf32> to vector<2x128xf32>
      %25 = arith.addf %22, %24 : vector<2x128xf32>
      %c0_22 = arith.constant 0 : index
      %c0_23 = arith.constant 0 : index
      %26 = vector.load %arg7[%c0_22, %c0_23] : memref<2x128xf32, #tpu.memory_space<vmem>>, vector<2x128xf32>
      tpu.vector_store %arg7[%c0_22, %c0_23], %25 {strides = array<i32>} : memref<2x128xf32, #tpu.memory_space<vmem>>, vector<2x128xf32>,
    } else {
    }
    return
  }
  func.func @transform_0(%arg0: i32, %arg1: i32) -> (i32, i32, i32) {
    %c0_i32 = arith.constant 0 : i32
    %c0_i32_0 = arith.constant 0 : i32
    return %arg0, %arg1, %c0_i32 : i32, i32, i32
  }
  func.func @transform_1(%arg0: i32, %arg1: i32) -> (i32, i32) {
    %c0_i32 = arith.constant 0 : i32
    %c0_i32_0 = arith.constant 0 : i32
    %c0_i32_1 = arith.constant 0 : i32
    return %c0_i32, %c0_i32_0 : i32, i32
  }
  func.func @transform_2(%arg0: i32, %arg1: i32) -> (i32, i32) {
    %c0_i32 = arith.constant 0 : i32
    %c0_i32_0 = arith.constant 0 : i32
    %c0_i32_1 = arith.constant 0 : i32
    return %c0_i32, %c0_i32_0 : i32, i32
  }
  func.func @transform_3(%arg0: i32, %arg1: i32) -> (i32, i32) {
    %c0_i32 = arith.constant 0 : i32
    %c0_i32_0 = arith.constant 0 : i32
    %c0_i32_1 = arith.constant 0 : i32
    return %c0_i32, %c0_i32_0 : i32, i32
  }
  func.func @transform_4(%arg0: i32, %arg1: i32) -> (i32, i32) {
    %c0_i32 = arith.constant 0 : i32
    %c0_i32_0 = arith.constant 0 : i32
    %c0_i32_1 = arith.constant 0 : i32
    return %c0_i32, %c0_i32_0 : i32, i32
  }
  func.func @transform_5(%arg0: i32, %arg1: i32) -> (i32, i32) {
    %c0_i32 = arith.constant 0 : i32
    %c0_i32_0 = arith.constant 0 : i32
    return %arg0, %c0_i32 : i32, i32
  }
}

</mosaic_0001>

<llo_original>
// kernel: tpu_custom_call.1
$region0: #{tpu_custom_call.1}
  #allocation0 [shape = 'u32[]', space=smem, size = 0x4, offset = 0x4, fixed_abs, tag = 'smem constant byte address 0x4 - core index']
  #allocation1 [shape = 'u32[144,128]{1,0:T(1,128)}', space=vmem, size = 0x12000, scoped, tag = 'internal scratch']
  #allocation2 [shape = 'f32[2,2048]{1,0:T(2,128)}', space=vmem, size = 0x4000, scoped, tag = 'scratch operand']
  #allocation13 [shape = 's32[]', space=sflag, size = 0x4, offset = 0, fixed_abs, tag = 'sflag constant byte address 0x0 - dummy sync flag']
  %s0 = inlined_call_operand.hbm [shape: f32[2,256,2048], index: 0, kind: input, shape index: {}]
  %s1 = inlined_call_operand.hbm [shape: f32[2048,512], index: 1, kind: input, shape index: {}]
  %s2 = inlined_call_operand.hbm [shape: f32[1,512], index: 2, kind: input, shape index: {}]
  %s3 = inlined_call_operand.hbm [shape: f32[512,128], index: 3, kind: input, shape index: {}]
  %s4 = inlined_call_operand.hbm [shape: f32[1,128], index: 4, kind: input, shape index: {}]
  %s5 = inlined_call_operand.hbm [shape: f32[2,128], index: 5, kind: output, shape index: {}]
  %s6 = sld [smem:[#allocation0]]
  $region81: #{tpu_custom_call.1} parent=0
    _
  %s8 = ssub.s32 1, %s6
  %s9 = scalar_select 0, %s8, %s6
  $region1: #{tpu_custom_call.1} parent=0
    #allocation3 [shape = 'u8[4194304]{0}', space=vmem, size = 0x400000, scoped, tag = 'input window, operand 0']
    #allocation4 [shape = 's32[2]{0}', space=sflag, size = 0x8, scoped, tag = 'scoped memory for tpu_custom_call.1']
    #allocation5 [shape = 's32[2]{0}', space=sflag, size = 0x8, scoped, tag = 'scoped memory for tpu_custom_call.1']
    #allocation6 [shape = 'u8[4194304]{0}', space=vmem, size = 0x400000, scoped, tag = 'input window, operand 1, single buffered']
    #allocation7 [shape = 's32[1]{0}', space=sflag, size = 0x4, scoped, tag = 'scoped memory for tpu_custom_call.1']
    #allocation8 [shape = 'u8[2048]{0}', space=vmem, size = 0x800, scoped, tag = 'input window, operand 2, single buffered']
    #allocation9 [shape = 'u8[262144]{0}', space=vmem, size = 0x40000, scoped, tag = 'input window, operand 3, single buffered']
    #allocation10 [shape = 's32[1]{0}', space=sflag, size = 0x4, scoped, tag = 'scoped memory for tpu_custom_call.1']
    #allocation11 [shape = 'u8[512]{0}', space=vmem, size = 0x400, scoped, tag = 'input window, operand 4, single buffered']
    #allocation12 [shape = 'u8[1024]{0}', space=vmem, size = 0x400, scoped, tag = 'output window, operand 0, single buffered']
    %10 = vsyncpa [#allocation4], 0
    %s11 = scalar_lea.sflag [#allocation4], 1
    %12 = vsyncpa %s11, 0
    %13 = vsyncpa [#allocation7], 0
    %14 = vsyncpa [#allocation10], 0
    %15 = vsyncpa [#allocation5], 0
    loop: start=0, step=1, limit=4
    $region2: #{tpu_custom_call.1} parent=1 // loop_pre_header
      _
    $region3: #{tpu_custom_call.1} parent=1 // loop_header
      %s17 = sphi 0, %s21
      %p18 = scmp.ge.s32.totalorder %s17, 4
      %s24 = sphi 0, %s36
      %s25 = sphi 0, %s32
      %s26 = sphi 0, %s24
      %s27 = sphi 0, %s25
      %s28 = sphi 0, %s26
      %s29 = sphi 0, %s27
      %s41 = sphi 0, %s43
      %s44 = sphi 0, %s41
      %s45 = sphi 0, %s44
      %s61 = sphi 0, %s45
      %s65 = sphi 0, %s65
      %s67 = sphi 0, %s65
      %s68 = sphi 0, %s67
      %s82 = sphi 0, %s68
      %s86 = sphi 0, %s86
      %s88 = sphi 0, %s86
      %s89 = sphi 0, %s88
      %s103 = sphi 0, %s89
      %s107 = sphi 0, %s107
      %s109 = sphi 0, %s107
      %s110 = sphi 0, %s109
      %s124 = sphi 0, %s110
      %s128 = sphi 0, %s128
      %s130 = sphi 0, %s128
      %s131 = sphi 0, %s130
      %s145 = sphi 0, %s131
      %s151 = sphi 0, %s153
      %s154 = sphi 0, %s151
      %s155 = sphi 0, %s154
      %s171 = sphi 0, %s155
    $region4: #{tpu_custom_call.1} parent=1 // loop_header_branch
      %20 = sbr.rel (%p18) target = $region8
    $region5: #{tpu_custom_call.1} parent=1 // loop_body
      %s22 = ssub.s32 %s17, 1
      %s23 = ssub.s32 %s17, 2
      %s30 = sadd.s32 1, %s25
      %p31 = scmp.ge.s32.totalorder %s30, 2
      %s32 = scalar_select %p31, 0, %s30
      %s33 = sadd.s32 1, %s24
      %s34 = scalar_select %p31, %s33, %s24
      %p35 = scmp.ge.s32.totalorder %s34, 1
      %s36 = scalar_select %p35, 0, %s34
      %s37 = ssub.s32 %s24, %s36
      %s38 = ssub.s32 %s25, %s32
      %s39 = sor.u32 %s37, %s38
      %p40 = scmp.eq.s32.totalorder %s39, 0
      %s42 = sadd.s32 %s41, 1
      %s43 = scalar_select %p40, %s41, %s42
      %p46 = pneg %p40
      %p47 = scmp.eq.s32.totalorder %s17, 1
      %p48 = por %p46, %p47
      %p49 = scmp.ne.s32.totalorder %s41, %s44
      %p50 = scmp.eq.s32.totalorder %s17, 0
      %p51 = por %p49, %p50
      %p52 = scmp.ne.s32.totalorder %s41, %s44
      %p53 = scmp.eq.s32.totalorder %s22, 1
      %p54 = por %p52, %p53
      %p55 = scmp.ne.s32.totalorder %s44, %s45
      %p56 = scmp.eq.s32.totalorder %s22, 0
      %p57 = por %p55, %p56
      %p58 = scmp.ne.s32.totalorder %s44, %s45
      %p59 = scmp.eq.s32.totalorder %s23, 1
      %p60 = por %p58, %p59
      %p62 = scmp.ne.s32.totalorder %s45, %s61
      %p63 = scmp.eq.s32.totalorder %s23, 0
      %p64 = por %p62, %p63
      %s66 = sadd.s32 %s65, 1
      %p69 = scmp.eq.s32.totalorder %s17, 1
      %p70 = scmp.ne.s32.totalorder %s65, %s67
      %p71 = scmp.eq.s32.totalorder %s17, 0
      %p72 = por %p70, %p71
      %p73 = scmp.ne.s32.totalorder %s65, %s67
      %p74 = scmp.eq.s32.totalorder %s22, 1
      %p75 = por %p73, %p74
      %p76 = scmp.ne.s32.totalorder %s67, %s68
      %p77 = scmp.eq.s32.totalorder %s22, 0
      %p78 = por %p76, %p77
      %p79 = scmp.ne.s32.totalorder %s67, %s68
      %p80 = scmp.eq.s32.totalorder %s23, 1
      %p81 = por %p79, %p80
      %p83 = scmp.ne.s32.totalorder %s68, %s82
      %p84 = scmp.eq.s32.totalorder %s23, 0
      %p85 = por %p83, %p84
      %s87 = sadd.s32 %s86, 1
      %p90 = scmp.eq.s32.totalorder %s17, 1
      %p91 = scmp.ne.s32.totalorder %s86, %s88
      %p92 = scmp.eq.s32.totalorder %s17, 0
      %p93 = por %p91, %p92
      %p94 = scmp.ne.s32.totalorder %s86, %s88
      %p95 = scmp.eq.s32.totalorder %s22, 1
      %p96 = por %p94, %p95
      %p97 = scmp.ne.s32.totalorder %s88, %s89
      %p98 = scmp.eq.s32.totalorder %s22, 0
      %p99 = por %p97, %p98
      %p100 = scmp.ne.s32.totalorder %s88, %s89
      %p101 = scmp.eq.s32.totalorder %s23, 1
      %p102 = por %p100, %p101
      %p104 = scmp.ne.s32.totalorder %s89, %s103
      %p105 = scmp.eq.s32.totalorder %s23, 0
      %p106 = por %p104, %p105
      %s108 = sadd.s32 %s107, 1
      %p111 = scmp.eq.s32.totalorder %s17, 1
      %p112 = scmp.ne.s32.totalorder %s107, %s109
      %p113 = scmp.eq.s32.totalorder %s17, 0
      %p114 = por %p112, %p113
      %p115 = scmp.ne.s32.totalorder %s107, %s109
      %p116 = scmp.eq.s32.totalorder %s22, 1
      %p117 = por %p115, %p116
      %p118 = scmp.ne.s32.totalorder %s109, %s110
      %p119 = scmp.eq.s32.totalorder %s22, 0
      %p120 = por %p118, %p119
      %p121 = scmp.ne.s32.totalorder %s109, %s110
      %p122 = scmp.eq.s32.totalorder %s23, 1
      %p123 = por %p121, %p122
      %p125 = scmp.ne.s32.totalorder %s110, %s124
      %p126 = scmp.eq.s32.totalorder %s23, 0
      %p127 = por %p125, %p126
      %s129 = sadd.s32 %s128, 1
      %p132 = scmp.eq.s32.totalorder %s17, 1
      %p133 = scmp.ne.s32.totalorder %s128, %s130
      %p134 = scmp.eq.s32.totalorder %s17, 0
      %p135 = por %p133, %p134
      %p136 = scmp.ne.s32.totalorder %s128, %s130
      %p137 = scmp.eq.s32.totalorder %s22, 1
      %p138 = por %p136, %p137
      %p139 = scmp.ne.s32.totalorder %s130, %s131
      %p140 = scmp.eq.s32.totalorder %s22, 0
      %p141 = por %p139, %p140
      %p142 = scmp.ne.s32.totalorder %s130, %s131
      %p143 = scmp.eq.s32.totalorder %s23, 1
      %p144 = por %p142, %p143
      %p146 = scmp.ne.s32.totalorder %s131, %s145
      %p147 = scmp.eq.s32.totalorder %s23, 0
      %p148 = por %p146, %p147
      %s149 = ssub.s32 %s24, %s36
      %p150 = scmp.eq.s32.totalorder %s149, 0
      %s152 = sadd.s32 %s151, 1
      %s153 = scalar_select %p150, %s151, %s152
      %p156 = pneg %p150
      %p157 = scmp.eq.s32.totalorder %s17, 1
      %p158 = por %p156, %p157
      %p159 = scmp.ne.s32.totalorder %s151, %s154
      %p160 = scmp.eq.s32.totalorder %s17, 0
      %p161 = por %p159, %p160
      %p162 = scmp.ne.s32.totalorder %s151, %s154
      %p163 = scmp.eq.s32.totalorder %s22, 1
      %p164 = por %p162, %p163
      %p165 = scmp.ne.s32.totalorder %s154, %s155
      %p166 = scmp.eq.s32.totalorder %s22, 0
      %p167 = por %p165, %p166
      %p168 = scmp.ne.s32.totalorder %s154, %s155
      %p169 = scmp.eq.s32.totalorder %s23, 1
      %p170 = por %p168, %p169
      %p172 = scmp.ne.s32.totalorder %s155, %s171
      %p173 = scmp.eq.s32.totalorder %s23, 0
      %p174 = por %p172, %p173
      %p175 = scmp.le.s32.totalorder 1, %s17
      %p176 = scmp.lt.s32.totalorder %s17, 3
      %p177 = pnand %p175, %p176
      %p178 = pneg %p177
      // Predicated region
      $region9: #{tpu_custom_call.1} parent=5 // pred_check
        _
      $region10: #{tpu_custom_call.1} parent=5 // pred_check_branch
        %180 = sbr.rel (%p177) target = $region12
      $region11: #{tpu_custom_call.1} parent=5 // pred_region
        %s181 = ssub.s32 %s17, 1
        // Predicated region
        $region13: #{tpu_custom_call.1} parent=11 // pred_check
          %p182 = pneg %p78
        $region14: #{tpu_custom_call.1} parent=11 // pred_check_branch
          %184 = sbr.rel (%p182) target = $region16
        $region15: #{tpu_custom_call.1} parent=11 // pred_region
          %s186 = ssub.s32 131072, 131072
          %187 = vsyncadd [#allocation7], %s186
          %s188 = sshll.u32 [#allocation6], 4
          %s189 = int_to_ptr.vmem [resolvable:$true] %s188
          %194 = dma.hbm_to_vmem [thread:$0]  %s1, 131072, %s189, [#allocation7], 512, 512, 32
        $region16: #{tpu_custom_call.1} parent=11 // pred_fallthru
          _
        // Predicated region
        $region17: #{tpu_custom_call.1} parent=11 // pred_check
          %p195 = pneg %p99
        $region18: #{tpu_custom_call.1} parent=11 // pred_check_branch
          %197 = sbr.rel (%p195) target = $region20
        $region19: #{tpu_custom_call.1} parent=11 // pred_region
          %s199 = ssub.s32 64, 64
          %200 = vsyncadd [#allocation7], %s199
          %s202 = sshll.u32 [#allocation8], 4
          %s203 = int_to_ptr.vmem [resolvable:$true] %s202
          %205 = dma.hbm_to_vmem [thread:$0]  %s2, 64, %s203, [#allocation7]
        $region20: #{tpu_custom_call.1} parent=11 // pred_fallthru
          _
        // Predicated region
        $region21: #{tpu_custom_call.1} parent=11 // pred_check
          %p206 = pneg %p120
        $region22: #{tpu_custom_call.1} parent=11 // pred_check_branch
          %208 = sbr.rel (%p206) target = $region24
        $region23: #{tpu_custom_call.1} parent=11 // pred_region
          %s210 = ssub.s32 8192, 8192
          %211 = vsyncadd [#allocation10], %s210
          %s212 = sshll.u32 [#allocation9], 4
          %s213 = int_to_ptr.vmem [resolvable:$true] %s212
          %218 = dma.hbm_to_vmem [thread:$0]  %s3, 8192, %s213, [#allocation10], 128, 128, 8
        $region24: #{tpu_custom_call.1} parent=11 // pred_fallthru
          _
        // Predicated region
        $region25: #{tpu_custom_call.1} parent=11 // pred_check
          %p219 = pneg %p141
        $region26: #{tpu_custom_call.1} parent=11 // pred_check_branch
          %221 = sbr.rel (%p219) target = $region28
        $region27: #{tpu_custom_call.1} parent=11 // pred_region
          %s223 = ssub.s32 16, 16
          %224 = vsyncadd [#allocation10], %s223
          %s226 = sshll.u32 [#allocation11], 4
          %s227 = int_to_ptr.vmem [resolvable:$true] %s226
          %229 = dma.hbm_to_vmem [thread:$0]  %s4, 16, %s227, [#allocation10]
        $region28: #{tpu_custom_call.1} parent=11 // pred_fallthru
          _
      $region12: #{tpu_custom_call.1} parent=5 // pred_fallthru
        _
      %p230 = scmp.lt.s32.totalorder %s17, 2
      // Predicated region
      $region29: #{tpu_custom_call.1} parent=5 // pred_check
        %p231 = pneg %p230
      $region30: #{tpu_custom_call.1} parent=5 // pred_check_branch
        %233 = sbr.rel (%p231) target = $region32
      $region31: #{tpu_custom_call.1} parent=5 // pred_region
        // Predicated region
        $region33: #{tpu_custom_call.1} parent=31 // pred_check
          %p234 = pneg %p51
        $region34: #{tpu_custom_call.1} parent=31 // pred_check_branch
          %236 = sbr.rel (%p234) target = $region36
        $region35: #{tpu_custom_call.1} parent=31 // pred_region
          #allocation14 [shape = 'u32[6]{0}', space=smem, size = 0x18, scoped, tag = 'DMA stride descriptor']
          %s237 = sand.u32 %s41, 1
          %s238 = scalar_lea.sflag [#allocation4], %s237
          %s239 = sand.u32 %s41, 1
          %s240 = smul.addr %s239, 4096
          %s241 = scalar_lea.vmem [#allocation3], %s240
          %s242 = smul.u32 2, %s24
          %s243 = smul.u32 16, %s25
          %s245 = ssub.s32 65536, 65536
          %246 = vsyncadd %s238, %s245
          %s247 = smul.addr %s243, 16
          %s248 = smul.addr %s242, 512
          %s249 = sadd.s32 %s247, %s248
          %s250 = smul.addr %s249, 128
          %s251 = scalar_lea.hbm %s0, %s250
          %s253 = sshll.u32 1, 14
          %s254 = sxor.u32 4294967295, %s253
          %s256 = sld [smem:[#allocation0]]
          %s257 = sadd.s32 2, %s256
          %s259 = sshll.u32 7, 26
          %s260 = sxor.u32 4294967295, %s259
          %s261 = sand.u32 0, %s260
          %s262 = sshll.u32 %s257, 26
          %s263 = sor.u32 %s261, %s262
          %s264 = sshll.u32 %s241, 4
          %s265 = int_to_ptr.vmem [resolvable:$true] %s264
          %271 = sst [smem:[#allocation14]] 65536
          %s272 = scalar_lea.smem [#allocation14], 1
          %273 = sst [smem:[%s272]] 32768
          %s274 = scalar_lea.smem [#allocation14], 2
          %275 = sst [smem:[%s274]] 16
          %s276 = scalar_lea.smem [#allocation14], 3
          %277 = sst [smem:[%s276]] 2048
          %s278 = scalar_lea.smem [#allocation14], 4
          %279 = sst [smem:[%s278]] 2048
          %s280 = scalar_lea.smem [#allocation14], 5
          %281 = sst [smem:[%s280]] 128
          %283 = dma.general %s251, 65536, %s265, %s238, 131072, [#allocation14], %s263, 0
        $region36: #{tpu_custom_call.1} parent=31 // pred_fallthru
          _
      $region32: #{tpu_custom_call.1} parent=5 // pred_fallthru
        _
      %p284 = scmp.le.s32.totalorder 1, %s17
      %p285 = scmp.lt.s32.totalorder %s17, 3
      %p286 = pnand %p284, %p285
      %p287 = pneg %p286
      // Predicated region
      $region37: #{tpu_custom_call.1} parent=5 // pred_check
        _
      $region38: #{tpu_custom_call.1} parent=5 // pred_check_branch
        %289 = sbr.rel (%p286) target = $region40
      $region39: #{tpu_custom_call.1} parent=5 // pred_region
        %s290 = ssub.s32 %s17, 1
        %s291 = sand.u32 %s44, 1
        %s292 = scalar_lea.sflag [#allocation4], %s291
        %s293 = sand.u32 %s44, 1
        %s294 = smul.addr %s293, 4096
        %s295 = scalar_lea.vmem [#allocation3], %s294
        // Predicated region
        $region41: #{tpu_custom_call.1} parent=39 // pred_check
          %p296 = pneg %p57
        $region42: #{tpu_custom_call.1} parent=39 // pred_check_branch
          %298 = sbr.rel (%p296) target = $region44
        $region43: #{tpu_custom_call.1} parent=39 // pred_region
          %299 = dma.done %s292, 65536
        $region44: #{tpu_custom_call.1} parent=39 // pred_fallthru
          _
        // Predicated region
        $region45: #{tpu_custom_call.1} parent=39 // pred_check
          %p300 = pneg %p78
        $region46: #{tpu_custom_call.1} parent=39 // pred_check_branch
          %302 = sbr.rel (%p300) target = $region48
        $region47: #{tpu_custom_call.1} parent=39 // pred_region
          %303 = dma.done [#allocation7], 131072
        $region48: #{tpu_custom_call.1} parent=39 // pred_fallthru
          _
        // Predicated region
        $region49: #{tpu_custom_call.1} parent=39 // pred_check
          %p304 = pneg %p99
        $region50: #{tpu_custom_call.1} parent=39 // pred_check_branch
          %306 = sbr.rel (%p304) target = $region52
        $region51: #{tpu_custom_call.1} parent=39 // pred_region
          %307 = dma.done [#allocation7], 64
        $region52: #{tpu_custom_call.1} parent=39 // pred_fallthru
          _
        // Predicated region
        $region53: #{tpu_custom_call.1} parent=39 // pred_check
          %p308 = pneg %p120
        $region54: #{tpu_custom_call.1} parent=39 // pred_check_branch
          %310 = sbr.rel (%p308) target = $region56
        $region55: #{tpu_custom_call.1} parent=39 // pred_region
          %311 = dma.done [#allocation10], 8192
        $region56: #{tpu_custom_call.1} parent=39 // pred_fallthru
          _
        // Predicated region
        $region57: #{tpu_custom_call.1} parent=39 // pred_check
          %p312 = pneg %p141
        $region58: #{tpu_custom_call.1} parent=39 // pred_check_branch
          %314 = sbr.rel (%p312) target = $region60
        $region59: #{tpu_custom_call.1} parent=39 // pred_region
          %315 = dma.done [#allocation10], 16
        $region60: #{tpu_custom_call.1} parent=39 // pred_fallthru
          _
        %s316 = sand.u32 %s44, 1
        %s317 = scalar_lea.sflag [#allocation4], %s316
        %s318 = sand.u32 %s44, 1
        %s319 = smul.addr %s318, 4096
        %s320 = scalar_lea.vmem [#allocation3], %s319
        %p321 = pneg %p57
        %p322 = pneg %p54
        %p323 = pneg %p78
        %p324 = pneg %p75
        %p325 = pneg %p99
        %p326 = pneg %p96
        %p327 = pneg %p120
        %p328 = pneg %p117
        %p329 = pneg %p141
        %p330 = pneg %p138
        %p331 = pneg %p167
        %p332 = pneg %p164
        %s333 = smul.u32 2, %s26
        %s334 = smul.u32 16, %s27
        %p335 = scmp.eq.s32.totalorder %s27, 0
        // Predicated region
        $region61: #{tpu_custom_call.1} parent=39 // pred_check
          %p336 = pneg %p335
        $region62: #{tpu_custom_call.1} parent=39 // pred_check_branch
          %338 = sbr.rel (%p336) target = $region64
        $region63: #{tpu_custom_call.1} parent=39 // pred_region
          %339 = vst [vmem:[#allocation2] sm:$0xff] 0.0
          %340 = vst [vmem:[#allocation2 + $0x8] sm:$0xff] 0.0
          %341 = vst [vmem:[#allocation2 + $0x10] sm:$0xff] 0.0
          %342 = vst [vmem:[#allocation2 + $0x18] sm:$0xff] 0.0
        $region64: #{tpu_custom_call.1} parent=39 // pred_fallthru
          _
        %v343 = vld [vmem:[#allocation2] sm:$0xff]
        %v344 = vld [vmem:[#allocation2 + $0x8] sm:$0xff]
        %v345 = vld [vmem:[#allocation2 + $0x10] sm:$0xff]
        %v346 = vld [vmem:[#allocation2 + $0x18] sm:$0xff]
        %v347 = vld [vmem:[%s295] sm:$0xff]
        %v348 = vld [vmem:[%s295 + $0x8] sm:$0xff]
        %v349 = vld [vmem:[%s295 + $0x10] sm:$0xff]
        %v350 = vld [vmem:[%s295 + $0x18] sm:$0xff]
        %v351 = vld [vmem:[%s295 + $0x20] sm:$0xff]
        %v352 = vld [vmem:[%s295 + $0x28] sm:$0xff]
        %v353 = vld [vmem:[%s295 + $0x30] sm:$0xff]
        %v354 = vld [vmem:[%s295 + $0x38] sm:$0xff]
        %v355 = vld [vmem:[%s295 + $0x40] sm:$0xff]
        %v356 = vld [vmem:[%s295 + $0x48] sm:$0xff]
        %v357 = vld [vmem:[%s295 + $0x50] sm:$0xff]
        %v358 = vld [vmem:[%s295 + $0x58] sm:$0xff]
        %v359 = vld [vmem:[%s295 + $0x60] sm:$0xff]
        %v360 = vld [vmem:[%s295 + $0x68] sm:$0xff]
        %v361 = vld [vmem:[%s295 + $0x70] sm:$0xff]
        %v362 = vld [vmem:[%s295 + $0x78] sm:$0xff]
        %v363 = vld [vmem:[%s295 + $0x80] sm:$0xff]
        %v364 = vld [vmem:[%s295 + $0x88] sm:$0xff]
        %v365 = vld [vmem:[%s295 + $0x90] sm:$0xff]
        %v366 = vld [vmem:[%s295 + $0x98] sm:$0xff]
        %v367 = vld [vmem:[%s295 + $0xa0] sm:$0xff]
        %v368 = vld [vmem:[%s295 + $0xa8] sm:$0xff]
        %v369 = vld [vmem:[%s295 + $0xb0] sm:$0xff]
        %v370 = vld [vmem:[%s295 + $0xb8] sm:$0xff]
        %v371 = vld [vmem:[%s295 + $0xc0] sm:$0xff]
        %v372 = vld [vmem:[%s295 + $0xc8] sm:$0xff]
        %v373 = vld [vmem:[%s295 + $0xd0] sm:$0xff]
        %v374 = vld [vmem:[%s295 + $0xd8] sm:$0xff]
        %v375 = vld [vmem:[%s295 + $0xe0] sm:$0xff]
        %v376 = vld [vmem:[%s295 + $0xe8] sm:$0xff]
        %v377 = vld [vmem:[%s295 + $0xf0] sm:$0xff]
        %v378 = vld [vmem:[%s295 + $0xf8] sm:$0xff]
        %v379 = vld [vmem:[%s295 + $0x100] sm:$0xff]
        %v380 = vld [vmem:[%s295 + $0x108] sm:$0xff]
        %v381 = vld [vmem:[%s295 + $0x110] sm:$0xff]
        %v382 = vld [vmem:[%s295 + $0x118] sm:$0xff]
        %v383 = vld [vmem:[%s295 + $0x120] sm:$0xff]
        %v384 = vld [vmem:[%s295 + $0x128] sm:$0xff]
        %v385 = vld [vmem:[%s295 + $0x130] sm:$0xff]
        %v386 = vld [vmem:[%s295 + $0x138] sm:$0xff]
        %v387 = vld [vmem:[%s295 + $0x140] sm:$0xff]
        %v388 = vld [vmem:[%s295 + $0x148] sm:$0xff]
        %v389 = vld [vmem:[%s295 + $0x150] sm:$0xff]
        %v390 = vld [vmem:[%s295 + $0x158] sm:$0xff]
        %v391 = vld [vmem:[%s295 + $0x160] sm:$0xff]
        %v392 = vld [vmem:[%s295 + $0x168] sm:$0xff]
        %v393 = vld [vmem:[%s295 + $0x170] sm:$0xff]
        %v394 = vld [vmem:[%s295 + $0x178] sm:$0xff]
        %v395 = vld [vmem:[%s295 + $0x180] sm:$0xff]
        %v396 = vld [vmem:[%s295 + $0x188] sm:$0xff]
        %v397 = vld [vmem:[%s295 + $0x190] sm:$0xff]
        %v398 = vld [vmem:[%s295 + $0x198] sm:$0xff]
        %v399 = vld [vmem:[%s295 + $0x1a0] sm:$0xff]
        %v400 = vld [vmem:[%s295 + $0x1a8] sm:$0xff]
        %v401 = vld [vmem:[%s295 + $0x1b0] sm:$0xff]
        %v402 = vld [vmem:[%s295 + $0x1b8] sm:$0xff]
        %v403 = vld [vmem:[%s295 + $0x1c0] sm:$0xff]
        %v404 = vld [vmem:[%s295 + $0x1c8] sm:$0xff]
        %v405 = vld [vmem:[%s295 + $0x1d0] sm:$0xff]
        %v406 = vld [vmem:[%s295 + $0x1d8] sm:$0xff]
        %v407 = vld [vmem:[%s295 + $0x1e0] sm:$0xff]
        %v408 = vld [vmem:[%s295 + $0x1e8] sm:$0xff]
        %v409 = vld [vmem:[%s295 + $0x1f0] sm:$0xff]
        %v410 = vld [vmem:[%s295 + $0x1f8] sm:$0xff]
        %v411 = vld [vmem:[%s295 + $0x200] sm:$0xff]
        %v412 = vld [vmem:[%s295 + $0x208] sm:$0xff]
        %v413 = vld [vmem:[%s295 + $0x210] sm:$0xff]
        %v414 = vld [vmem:[%s295 + $0x218] sm:$0xff]
        %v415 = vld [vmem:[%s295 + $0x220] sm:$0xff]
        %v416 = vld [vmem:[%s295 + $0x228] sm:$0xff]
        %v417 = vld [vmem:[%s295 + $0x230] sm:$0xff]
        %v418 = vld [vmem:[%s295 + $0x238] sm:$0xff]
        %v419 = vld [vmem:[%s295 + $0x240] sm:$0xff]
        %v420 = vld [vmem:[%s295 + $0x248] sm:$0xff]
        %v421 = vld [vmem:[%s295 + $0x250] sm:$0xff]
        %v422 = vld [vmem:[%s295 + $0x258] sm:$0xff]
        %v423 = vld [vmem:[%s295 + $0x260] sm:$0xff]
        %v424 = vld [vmem:[%s295 + $0x268] sm:$0xff]
        %v425 = vld [vmem:[%s295 + $0x270] sm:$0xff]
        %v426 = vld [vmem:[%s295 + $0x278] sm:$0xff]
        %v427 = vld [vmem:[%s295 + $0x280] sm:$0xff]
        %v428 = vld [vmem:[%s295 + $0x288] sm:$0xff]
        %v429 = vld [vmem:[%s295 + $0x290] sm:$0xff]
        %v430 = vld [vmem:[%s295 + $0x298] sm:$0xff]
        %v431 = vld [vmem:[%s295 + $0x2a0] sm:$0xff]
        %v432 = vld [vmem:[%s295 + $0x2a8] sm:$0xff]
        %v433 = vld [vmem:[%s295 + $0x2b0] sm:$0xff]
        %v434 = vld [vmem:[%s295 + $0x2b8] sm:$0xff]
        %v435 = vld [vmem:[%s295 + $0x2c0] sm:$0xff]
        %v436 = vld [vmem:[%s295 + $0x2c8] sm:$0xff]
        %v437 = vld [vmem:[%s295 + $0x2d0] sm:$0xff]
        %v438 = vld [vmem:[%s295 + $0x2d8] sm:$0xff]
        %v439 = vld [vmem:[%s295 + $0x2e0] sm:$0xff]
        %v440 = vld [vmem:[%s295 + $0x2e8] sm:$0xff]
        %v441 = vld [vmem:[%s295 + $0x2f0] sm:$0xff]
        %v442 = vld [vmem:[%s295 + $0x2f8] sm:$0xff]
        %v443 = vld [vmem:[%s295 + $0x300] sm:$0xff]
        %v444 = vld [vmem:[%s295 + $0x308] sm:$0xff]
        %v445 = vld [vmem:[%s295 + $0x310] sm:$0xff]
        %v446 = vld [vmem:[%s295 + $0x318] sm:$0xff]
        %v447 = vld [vmem:[%s295 + $0x320] sm:$0xff]
        %v448 = vld [vmem:[%s295 + $0x328] sm:$0xff]
        %v449 = vld [vmem:[%s295 + $0x330] sm:$0xff]
        %v450 = vld [vmem:[%s295 + $0x338] sm:$0xff]
        %v451 = vld [vmem:[%s295 + $0x340] sm:$0xff]
        %v452 = vld [vmem:[%s295 + $0x348] sm:$0xff]
        %v453 = vld [vmem:[%s295 + $0x350] sm:$0xff]
        %v454 = vld [vmem:[%s295 + $0x358] sm:$0xff]
        %v455 = vld [vmem:[%s295 + $0x360] sm:$0xff]
        %v456 = vld [vmem:[%s295 + $0x368] sm:$0xff]
        %v457 = vld [vmem:[%s295 + $0x370] sm:$0xff]
        %v458 = vld [vmem:[%s295 + $0x378] sm:$0xff]
        %v459 = vld [vmem:[%s295 + $0x380] sm:$0xff]
        %v460 = vld [vmem:[%s295 + $0x388] sm:$0xff]
        %v461 = vld [vmem:[%s295 + $0x390] sm:$0xff]
        %v462 = vld [vmem:[%s295 + $0x398] sm:$0xff]
        %v463 = vld [vmem:[%s295 + $0x3a0] sm:$0xff]
        %v464 = vld [vmem:[%s295 + $0x3a8] sm:$0xff]
        %v465 = vld [vmem:[%s295 + $0x3b0] sm:$0xff]
        %v466 = vld [vmem:[%s295 + $0x3b8] sm:$0xff]
        %v467 = vld [vmem:[%s295 + $0x3c0] sm:$0xff]
        %v468 = vld [vmem:[%s295 + $0x3c8] sm:$0xff]
        %v469 = vld [vmem:[%s295 + $0x3d0] sm:$0xff]
        %v470 = vld [vmem:[%s295 + $0x3d8] sm:$0xff]
        %v471 = vld [vmem:[%s295 + $0x3e0] sm:$0xff]
        %v472 = vld [vmem:[%s295 + $0x3e8] sm:$0xff]
        %v473 = vld [vmem:[%s295 + $0x3f0] sm:$0xff]
        %v474 = vld [vmem:[%s295 + $0x3f8] sm:$0xff]
        %v475 = vld [vmem:[%s295 + $0x400] sm:$0xff]
        %v476 = vld [vmem:[%s295 + $0x408] sm:$0xff]
        %v477 = vld [vmem:[%s295 + $0x410] sm:$0xff]
        %v478 = vld [vmem:[%s295 + $0x418] sm:$0xff]
        %v479 = vld [vmem:[%s295 + $0x420] sm:$0xff]
        %v480 = vld [vmem:[%s295 + $0x428] sm:$0xff]
        %v481 = vld [vmem:[%s295 + $0x430] sm:$0xff]
        %v482 = vld [vmem:[%s295 + $0x438] sm:$0xff]
        %v483 = vld [vmem:[%s295 + $0x440] sm:$0xff]
        %v484 = vld [vmem:[%s295 + $0x448] sm:$0xff]
        %v485 = vld [vmem:[%s295 + $0x450] sm:$0xff]
        %v486 = vld [vmem:[%s295 + $0x458] sm:$0xff]
        %v487 = vld [vmem:[%s295 + $0x460] sm:$0xff]
        %v488 = vld [vmem:[%s295 + $0x468] sm:$0xff]
        %v489 = vld [vmem:[%s295 + $0x470] sm:$0xff]
        %v490 = vld [vmem:[%s295 + $0x478] sm:$0xff]
        %v491 = vld [vmem:[%s295 + $0x480] sm:$0xff]
        %v492 = vld [vmem:[%s295 + $0x488] sm:$0xff]
        %v493 = vld [vmem:[%s295 + $0x490] sm:$0xff]
        %v494 = vld [vmem:[%s295 + $0x498] sm:$0xff]
        %v495 = vld [vmem:[%s295 + $0x4a0] sm:$0xff]
        %v496 = vld [vmem:[%s295 + $0x4a8] sm:$0xff]
        %v497 = vld [vmem:[%s295 + $0x4b0] sm:$0xff]
        %v498 = vld [vmem:[%s295 + $0x4b8] sm:$0xff]
        %v499 = vld [vmem:[%s295 + $0x4c0] sm:$0xff]
        %v500 = vld [vmem:[%s295 + $0x4c8] sm:$0xff]
        %v501 = vld [vmem:[%s295 + $0x4d0] sm:$0xff]
        %v502 = vld [vmem:[%s295 + $0x4d8] sm:$0xff]
        %v503 = vld [vmem:[%s295 + $0x4e0] sm:$0xff]
        %v504 = vld [vmem:[%s295 + $0x4e8] sm:$0xff]
        %v505 = vld [vmem:[%s295 + $0x4f0] sm:$0xff]
        %v506 = vld [vmem:[%s295 + $0x4f8] sm:$0xff]
        %v507 = vld [vmem:[%s295 + $0x500] sm:$0xff]
        %v508 = vld [vmem:[%s295 + $0x508] sm:$0xff]
        %v509 = vld [vmem:[%s295 + $0x510] sm:$0xff]
        %v510 = vld [vmem:[%s295 + $0x518] sm:$0xff]
        %v511 = vld [vmem:[%s295 + $0x520] sm:$0xff]
        %v512 = vld [vmem:[%s295 + $0x528] sm:$0xff]
        %v513 = vld [vmem:[%s295 + $0x530] sm:$0xff]
        %v514 = vld [vmem:[%s295 + $0x538] sm:$0xff]
        %v515 = vld [vmem:[%s295 + $0x540] sm:$0xff]
        %v516 = vld [vmem:[%s295 + $0x548] sm:$0xff]
        %v517 = vld [vmem:[%s295 + $0x550] sm:$0xff]
        %v518 = vld [vmem:[%s295 + $0x558] sm:$0xff]
        %v519 = vld [vmem:[%s295 + $0x560] sm:$0xff]
        %v520 = vld [vmem:[%s295 + $0x568] sm:$0xff]
        %v521 = vld [vmem:[%s295 + $0x570] sm:$0xff]
        %v522 = vld [vmem:[%s295 + $0x578] sm:$0xff]
        %v523 = vld [vmem:[%s295 + $0x580] sm:$0xff]
        %v524 = vld [vmem:[%s295 + $0x588] sm:$0xff]
        %v525 = vld [vmem:[%s295 + $0x590] sm:$0xff]
        %v526 = vld [vmem:[%s295 + $0x598] sm:$0xff]
        %v527 = vld [vmem:[%s295 + $0x5a0] sm:$0xff]
        %v528 = vld [vmem:[%s295 + $0x5a8] sm:$0xff]
        %v529 = vld [vmem:[%s295 + $0x5b0] sm:$0xff]
        %v530 = vld [vmem:[%s295 + $0x5b8] sm:$0xff]
        %v531 = vld [vmem:[%s295 + $0x5c0] sm:$0xff]
        %v532 = vld [vmem:[%s295 + $0x5c8] sm:$0xff]
        %v533 = vld [vmem:[%s295 + $0x5d0] sm:$0xff]
        %v534 = vld [vmem:[%s295 + $0x5d8] sm:$0xff]
        %v535 = vld [vmem:[%s295 + $0x5e0] sm:$0xff]
        %v536 = vld [vmem:[%s295 + $0x5e8] sm:$0xff]
        %v537 = vld [vmem:[%s295 + $0x5f0] sm:$0xff]
        %v538 = vld [vmem:[%s295 + $0x5f8] sm:$0xff]
        %v539 = vld [vmem:[%s295 + $0x600] sm:$0xff]
        %v540 = vld [vmem:[%s295 + $0x608] sm:$0xff]
        %v541 = vld [vmem:[%s295 + $0x610] sm:$0xff]
        %v542 = vld [vmem:[%s295 + $0x618] sm:$0xff]
        %v543 = vld [vmem:[%s295 + $0x620] sm:$0xff]
        %v544 = vld [vmem:[%s295 + $0x628] sm:$0xff]
        %v545 = vld [vmem:[%s295 + $0x630] sm:$0xff]
        %v546 = vld [vmem:[%s295 + $0x638] sm:$0xff]
        %v547 = vld [vmem:[%s295 + $0x640] sm:$0xff]
        %v548 = vld [vmem:[%s295 + $0x648] sm:$0xff]
        %v549 = vld [vmem:[%s295 + $0x650] sm:$0xff]
        %v550 = vld [vmem:[%s295 + $0x658] sm:$0xff]
        %v551 = vld [vmem:[%s295 + $0x660] sm:$0xff]
        %v552 = vld [vmem:[%s295 + $0x668] sm:$0xff]
        %v553 = vld [vmem:[%s295 + $0x670] sm:$0xff]
        %v554 = vld [vmem:[%s295 + $0x678] sm:$0xff]
        %v555 = vld [vmem:[%s295 + $0x680] sm:$0xff]
        %v556 = vld [vmem:[%s295 + $0x688] sm:$0xff]
        %v557 = vld [vmem:[%s295 + $0x690] sm:$0xff]
        %v558 = vld [vmem:[%s295 + $0x698] sm:$0xff]
        %v559 = vld [vmem:[%s295 + $0x6a0] sm:$0xff]
        %v560 = vld [vmem:[%s295 + $0x6a8] sm:$0xff]
        %v561 = vld [vmem:[%s295 + $0x6b0] sm:$0xff]
        %v562 = vld [vmem:[%s295 + $0x6b8] sm:$0xff]
        %v563 = vld [vmem:[%s295 + $0x6c0] sm:$0xff]
        %v564 = vld [vmem:[%s295 + $0x6c8] sm:$0xff]
        %v565 = vld [vmem:[%s295 + $0x6d0] sm:$0xff]
        %v566 = vld [vmem:[%s295 + $0x6d8] sm:$0xff]
        %v567 = vld [vmem:[%s295 + $0x6e0] sm:$0xff]
        %v568 = vld [vmem:[%s295 + $0x6e8] sm:$0xff]
        %v569 = vld [vmem:[%s295 + $0x6f0] sm:$0xff]
        %v570 = vld [vmem:[%s295 + $0x6f8] sm:$0xff]
        %v571 = vld [vmem:[%s295 + $0x700] sm:$0xff]
        %v572 = vld [vmem:[%s295 + $0x708] sm:$0xff]
        %v573 = vld [vmem:[%s295 + $0x710] sm:$0xff]
        %v574 = vld [vmem:[%s295 + $0x718] sm:$0xff]
        %v575 = vld [vmem:[%s295 + $0x720] sm:$0xff]
        %v576 = vld [vmem:[%s295 + $0x728] sm:$0xff]
        %v577 = vld [vmem:[%s295 + $0x730] sm:$0xff]
        %v578 = vld [vmem:[%s295 + $0x738] sm:$0xff]
        %v579 = vld [vmem:[%s295 + $0x740] sm:$0xff]
        %v580 = vld [vmem:[%s295 + $0x748] sm:$0xff]
        %v581 = vld [vmem:[%s295 + $0x750] sm:$0xff]
        %v582 = vld [vmem:[%s295 + $0x758] sm:$0xff]
        %v583 = vld [vmem:[%s295 + $0x760] sm:$0xff]
        %v584 = vld [vmem:[%s295 + $0x768] sm:$0xff]
        %v585 = vld [vmem:[%s295 + $0x770] sm:$0xff]
        %v586 = vld [vmem:[%s295 + $0x778] sm:$0xff]
        %v587 = vld [vmem:[%s295 + $0x780] sm:$0xff]
        %v588 = vld [vmem:[%s295 + $0x788] sm:$0xff]
        %v589 = vld [vmem:[%s295 + $0x790] sm:$0xff]
        %v590 = vld [vmem:[%s295 + $0x798] sm:$0xff]
        %v591 = vld [vmem:[%s295 + $0x7a0] sm:$0xff]
        %v592 = vld [vmem:[%s295 + $0x7a8] sm:$0xff]
        %v593 = vld [vmem:[%s295 + $0x7b0] sm:$0xff]
        %v594 = vld [vmem:[%s295 + $0x7b8] sm:$0xff]
        %v595 = vld [vmem:[%s295 + $0x7c0] sm:$0xff]
        %v596 = vld [vmem:[%s295 + $0x7c8] sm:$0xff]
        %v597 = vld [vmem:[%s295 + $0x7d0] sm:$0xff]
        %v598 = vld [vmem:[%s295 + $0x7d8] sm:$0xff]
        %v599 = vld [vmem:[%s295 + $0x7e0] sm:$0xff]
        %v600 = vld [vmem:[%s295 + $0x7e8] sm:$0xff]
        %v601 = vld [vmem:[%s295 + $0x7f0] sm:$0xff]
        %v602 = vld [vmem:[%s295 + $0x7f8] sm:$0xff]
        %v603 = vld [vmem:[%s295 + $0x800] sm:$0xff]
        %v604 = vld [vmem:[%s295 + $0x808] sm:$0xff]
        %v605 = vld [vmem:[%s295 + $0x810] sm:$0xff]
        %v606 = vld [vmem:[%s295 + $0x818] sm:$0xff]
        %v607 = vld [vmem:[%s295 + $0x820] sm:$0xff]
        %v608 = vld [vmem:[%s295 + $0x828] sm:$0xff]
        %v609 = vld [vmem:[%s295 + $0x830] sm:$0xff]
        %v610 = vld [vmem:[%s295 + $0x838] sm:$0xff]
        %v611 = vld [vmem:[%s295 + $0x840] sm:$0xff]
        %v612 = vld [vmem:[%s295 + $0x848] sm:$0xff]
        %v613 = vld [vmem:[%s295 + $0x850] sm:$0xff]
        %v614 = vld [vmem:[%s295 + $0x858] sm:$0xff]
        %v615 = vld [vmem:[%s295 + $0x860] sm:$0xff]
        %v616 = vld [vmem:[%s295 + $0x868] sm:$0xff]
        %v617 = vld [vmem:[%s295 + $0x870] sm:$0xff]
        %v618 = vld [vmem:[%s295 + $0x878] sm:$0xff]
        %v619 = vld [vmem:[%s295 + $0x880] sm:$0xff]
        %v620 = vld [vmem:[%s295 + $0x888] sm:$0xff]
        %v621 = vld [vmem:[%s295 + $0x890] sm:$0xff]
        %v622 = vld [vmem:[%s295 + $0x898] sm:$0xff]
        %v623 = vld [vmem:[%s295 + $0x8a0] sm:$0xff]
        %v624 = vld [vmem:[%s295 + $0x8a8] sm:$0xff]
        %v625 = vld [vmem:[%s295 + $0x8b0] sm:$0xff]
        %v626 = vld [vmem:[%s295 + $0x8b8] sm:$0xff]
        %v627 = vld [vmem:[%s295 + $0x8c0] sm:$0xff]
        %v628 = vld [vmem:[%s295 + $0x8c8] sm:$0xff]
        %v629 = vld [vmem:[%s295 + $0x8d0] sm:$0xff]
        %v630 = vld [vmem:[%s295 + $0x8d8] sm:$0xff]
        %v631 = vld [vmem:[%s295 + $0x8e0] sm:$0xff]
        %v632 = vld [vmem:[%s295 + $0x8e8] sm:$0xff]
        %v633 = vld [vmem:[%s295 + $0x8f0] sm:$0xff]
        %v634 = vld [vmem:[%s295 + $0x8f8] sm:$0xff]
        %v635 = vld [vmem:[%s295 + $0x900] sm:$0xff]
        %v636 = vld [vmem:[%s295 + $0x908] sm:$0xff]
        %v637 = vld [vmem:[%s295 + $0x910] sm:$0xff]
        %v638 = vld [vmem:[%s295 + $0x918] sm:$0xff]
        %v639 = vld [vmem:[%s295 + $0x920] sm:$0xff]
        %v640 = vld [vmem:[%s295 + $0x928] sm:$0xff]
        %v641 = vld [vmem:[%s295 + $0x930] sm:$0xff]
        %v642 = vld [vmem:[%s295 + $0x938] sm:$0xff]
        %v643 = vld [vmem:[%s295 + $0x940] sm:$0xff]
        %v644 = vld [vmem:[%s295 + $0x948] sm:$0xff]
        %v645 = vld [vmem:[%s295 + $0x950] sm:$0xff]
        %v646 = vld [vmem:[%s295 + $0x958] sm:$0xff]
        %v647 = vld [vmem:[%s295 + $0x960] sm:$0xff]
        %v648 = vld [vmem:[%s295 + $0x968] sm:$0xff]
        %v649 = vld [vmem:[%s295 + $0x970] sm:$0xff]
        %v650 = vld [vmem:[%s295 + $0x978] sm:$0xff]
        %v651 = vld [vmem:[%s295 + $0x980] sm:$0xff]
        %v652 = vld [vmem:[%s295 + $0x988] sm:$0xff]
        %v653 = vld [vmem:[%s295 + $0x990] sm:$0xff]
        %v654 = vld [vmem:[%s295 + $0x998] sm:$0xff]
        %v655 = vld [vmem:[%s295 + $0x9a0] sm:$0xff]
        %v656 = vld [vmem:[%s295 + $0x9a8] sm:$0xff]
        %v657 = vld [vmem:[%s295 + $0x9b0] sm:$0xff]
        %v658 = vld [vmem:[%s295 + $0x9b8] sm:$0xff]
        %v659 = vld [vmem:[%s295 + $0x9c0] sm:$0xff]
        %v660 = vld [vmem:[%s295 + $0x9c8] sm:$0xff]
        %v661 = vld [vmem:[%s295 + $0x9d0] sm:$0xff]
        %v662 = vld [vmem:[%s295 + $0x9d8] sm:$0xff]
        %v663 = vld [vmem:[%s295 + $0x9e0] sm:$0xff]
        %v664 = vld [vmem:[%s295 + $0x9e8] sm:$0xff]
        %v665 = vld [vmem:[%s295 + $0x9f0] sm:$0xff]
        %v666 = vld [vmem:[%s295 + $0x9f8] sm:$0xff]
        %v667 = vld [vmem:[%s295 + $0xa00] sm:$0xff]
        %v668 = vld [vmem:[%s295 + $0xa08] sm:$0xff]
        %v669 = vld [vmem:[%s295 + $0xa10] sm:$0xff]
        %v670 = vld [vmem:[%s295 + $0xa18] sm:$0xff]
        %v671 = vld [vmem:[%s295 + $0xa20] sm:$0xff]
        %v672 = vld [vmem:[%s295 + $0xa28] sm:$0xff]
        %v673 = vld [vmem:[%s295 + $0xa30] sm:$0xff]
        %v674 = vld [vmem:[%s295 + $0xa38] sm:$0xff]
        %v675 = vld [vmem:[%s295 + $0xa40] sm:$0xff]
        %v676 = vld [vmem:[%s295 + $0xa48] sm:$0xff]
        %v677 = vld [vmem:[%s295 + $0xa50] sm:$0xff]
        %v678 = vld [vmem:[%s295 + $0xa58] sm:$0xff]
        %v679 = vld [vmem:[%s295 + $0xa60] sm:$0xff]
        %v680 = vld [vmem:[%s295 + $0xa68] sm:$0xff]
        %v681 = vld [vmem:[%s295 + $0xa70] sm:$0xff]
        %v682 = vld [vmem:[%s295 + $0xa78] sm:$0xff]
        %v683 = vld [vmem:[%s295 + $0xa80] sm:$0xff]
        %v684 = vld [vmem:[%s295 + $0xa88] sm:$0xff]
        %v685 = vld [vmem:[%s295 + $0xa90] sm:$0xff]
        %v686 = vld [vmem:[%s295 + $0xa98] sm:$0xff]
        %v687 = vld [vmem:[%s295 + $0xaa0] sm:$0xff]
        %v688 = vld [vmem:[%s295 + $0xaa8] sm:$0xff]
        %v689 = vld [vmem:[%s295 + $0xab0] sm:$0xff]
        %v690 = vld [vmem:[%s295 + $0xab8] sm:$0xff]
        %v691 = vld [vmem:[%s295 + $0xac0] sm:$0xff]
        %v692 = vld [vmem:[%s295 + $0xac8] sm:$0xff]
        %v693 = vld [vmem:[%s295 + $0xad0] sm:$0xff]
        %v694 = vld [vmem:[%s295 + $0xad8] sm:$0xff]
        %v695 = vld [vmem:[%s295 + $0xae0] sm:$0xff]
        %v696 = vld [vmem:[%s295 + $0xae8] sm:$0xff]
        %v697 = vld [vmem:[%s295 + $0xaf0] sm:$0xff]
        %v698 = vld [vmem:[%s295 + $0xaf8] sm:$0xff]
        %v699 = vld [vmem:[%s295 + $0xb00] sm:$0xff]
        %v700 = vld [vmem:[%s295 + $0xb08] sm:$0xff]
        %v701 = vld [vmem:[%s295 + $0xb10] sm:$0xff]
        %v702 = vld [vmem:[%s295 + $0xb18] sm:$0xff]
        %v703 = vld [vmem:[%s295 + $0xb20] sm:$0xff]
        %v704 = vld [vmem:[%s295 + $0xb28] sm:$0xff]
        %v705 = vld [vmem:[%s295 + $0xb30] sm:$0xff]
        %v706 = vld [vmem:[%s295 + $0xb38] sm:$0xff]
        %v707 = vld [vmem:[%s295 + $0xb40] sm:$0xff]
        %v708 = vld [vmem:[%s295 + $0xb48] sm:$0xff]
        %v709 = vld [vmem:[%s295 + $0xb50] sm:$0xff]
        %v710 = vld [vmem:[%s295 + $0xb58] sm:$0xff]
        %v711 = vld [vmem:[%s295 + $0xb60] sm:$0xff]
        %v712 = vld [vmem:[%s295 + $0xb68] sm:$0xff]
        %v713 = vld [vmem:[%s295 + $0xb70] sm:$0xff]
        %v714 = vld [vmem:[%s295 + $0xb78] sm:$0xff]
        %v715 = vld [vmem:[%s295 + $0xb80] sm:$0xff]
        %v716 = vld [vmem:[%s295 + $0xb88] sm:$0xff]
        %v717 = vld [vmem:[%s295 + $0xb90] sm:$0xff]
        %v718 = vld [vmem:[%s295 + $0xb98] sm:$0xff]
        %v719 = vld [vmem:[%s295 + $0xba0] sm:$0xff]
        %v720 = vld [vmem:[%s295 + $0xba8] sm:$0xff]
        %v721 = vld [vmem:[%s295 + $0xbb0] sm:$0xff]
        %v722 = vld [vmem:[%s295 + $0xbb8] sm:$0xff]
        %v723 = vld [vmem:[%s295 + $0xbc0] sm:$0xff]
        %v724 = vld [vmem:[%s295 + $0xbc8] sm:$0xff]
        %v725 = vld [vmem:[%s295 + $0xbd0] sm:$0xff]
        %v726 = vld [vmem:[%s295 + $0xbd8] sm:$0xff]
        %v727 = vld [vmem:[%s295 + $0xbe0] sm:$0xff]
        %v728 = vld [vmem:[%s295 + $0xbe8] sm:$0xff]
        %v729 = vld [vmem:[%s295 + $0xbf0] sm:$0xff]
        %v730 = vld [vmem:[%s295 + $0xbf8] sm:$0xff]
        %v731 = vld [vmem:[%s295 + $0xc00] sm:$0xff]
        %v732 = vld [vmem:[%s295 + $0xc08] sm:$0xff]
        %v733 = vld [vmem:[%s295 + $0xc10] sm:$0xff]
        %v734 = vld [vmem:[%s295 + $0xc18] sm:$0xff]
        %v735 = vld [vmem:[%s295 + $0xc20] sm:$0xff]
        %v736 = vld [vmem:[%s295 + $0xc28] sm:$0xff]
        %v737 = vld [vmem:[%s295 + $0xc30] sm:$0xff]
        %v738 = vld [vmem:[%s295 + $0xc38] sm:$0xff]
        %v739 = vld [vmem:[%s295 + $0xc40] sm:$0xff]
        %v740 = vld [vmem:[%s295 + $0xc48] sm:$0xff]
        %v741 = vld [vmem:[%s295 + $0xc50] sm:$0xff]
        %v742 = vld [vmem:[%s295 + $0xc58] sm:$0xff]
        %v743 = vld [vmem:[%s295 + $0xc60] sm:$0xff]
        %v744 = vld [vmem:[%s295 + $0xc68] sm:$0xff]
        %v745 = vld [vmem:[%s295 + $0xc70] sm:$0xff]
        %v746 = vld [vmem:[%s295 + $0xc78] sm:$0xff]
        %v747 = vld [vmem:[%s295 + $0xc80] sm:$0xff]
        %v748 = vld [vmem:[%s295 + $0xc88] sm:$0xff]
        %v749 = vld [vmem:[%s295 + $0xc90] sm:$0xff]
        %v750 = vld [vmem:[%s295 + $0xc98] sm:$0xff]
        %v751 = vld [vmem:[%s295 + $0xca0] sm:$0xff]
        %v752 = vld [vmem:[%s295 + $0xca8] sm:$0xff]
        %v753 = vld [vmem:[%s295 + $0xcb0] sm:$0xff]
        %v754 = vld [vmem:[%s295 + $0xcb8] sm:$0xff]
        %v755 = vld [vmem:[%s295 + $0xcc0] sm:$0xff]
        %v756 = vld [vmem:[%s295 + $0xcc8] sm:$0xff]
        %v757 = vld [vmem:[%s295 + $0xcd0] sm:$0xff]
        %v758 = vld [vmem:[%s295 + $0xcd8] sm:$0xff]
        %v759 = vld [vmem:[%s295 + $0xce0] sm:$0xff]
        %v760 = vld [vmem:[%s295 + $0xce8] sm:$0xff]
        %v761 = vld [vmem:[%s295 + $0xcf0] sm:$0xff]
        %v762 = vld [vmem:[%s295 + $0xcf8] sm:$0xff]
        %v763 = vld [vmem:[%s295 + $0xd00] sm:$0xff]
        %v764 = vld [vmem:[%s295 + $0xd08] sm:$0xff]
        %v765 = vld [vmem:[%s295 + $0xd10] sm:$0xff]
        %v766 = vld [vmem:[%s295 + $0xd18] sm:$0xff]
        %v767 = vld [vmem:[%s295 + $0xd20] sm:$0xff]
        %v768 = vld [vmem:[%s295 + $0xd28] sm:$0xff]
        %v769 = vld [vmem:[%s295 + $0xd30] sm:$0xff]
        %v770 = vld [vmem:[%s295 + $0xd38] sm:$0xff]
        %v771 = vld [vmem:[%s295 + $0xd40] sm:$0xff]
        %v772 = vld [vmem:[%s295 + $0xd48] sm:$0xff]
        %v773 = vld [vmem:[%s295 + $0xd50] sm:$0xff]
        %v774 = vld [vmem:[%s295 + $0xd58] sm:$0xff]
        %v775 = vld [vmem:[%s295 + $0xd60] sm:$0xff]
        %v776 = vld [vmem:[%s295 + $0xd68] sm:$0xff]
        %v777 = vld [vmem:[%s295 + $0xd70] sm:$0xff]
        %v778 = vld [vmem:[%s295 + $0xd78] sm:$0xff]
        %v779 = vld [vmem:[%s295 + $0xd80] sm:$0xff]
        %v780 = vld [vmem:[%s295 + $0xd88] sm:$0xff]
        %v781 = vld [vmem:[%s295 + $0xd90] sm:$0xff]
        %v782 = vld [vmem:[%s295 + $0xd98] sm:$0xff]
        %v783 = vld [vmem:[%s295 + $0xda0] sm:$0xff]
        %v784 = vld [vmem:[%s295 + $0xda8] sm:$0xff]
        %v785 = vld [vmem:[%s295 + $0xdb0] sm:$0xff]
        %v786 = vld [vmem:[%s295 + $0xdb8] sm:$0xff]
        %v787 = vld [vmem:[%s295 + $0xdc0] sm:$0xff]
        %v788 = vld [vmem:[%s295 + $0xdc8] sm:$0xff]
        %v789 = vld [vmem:[%s295 + $0xdd0] sm:$0xff]
        %v790 = vld [vmem:[%s295 + $0xdd8] sm:$0xff]
        %v791 = vld [vmem:[%s295 + $0xde0] sm:$0xff]
        %v792 = vld [vmem:[%s295 + $0xde8] sm:$0xff]
        %v793 = vld [vmem:[%s295 + $0xdf0] sm:$0xff]
        %v794 = vld [vmem:[%s295 + $0xdf8] sm:$0xff]
        %v795 = vld [vmem:[%s295 + $0xe00] sm:$0xff]
        %v796 = vld [vmem:[%s295 + $0xe08] sm:$0xff]
        %v797 = vld [vmem:[%s295 + $0xe10] sm:$0xff]
        %v798 = vld [vmem:[%s295 + $0xe18] sm:$0xff]
        %v799 = vld [vmem:[%s295 + $0xe20] sm:$0xff]
        %v800 = vld [vmem:[%s295 + $0xe28] sm:$0xff]
        %v801 = vld [vmem:[%s295 + $0xe30] sm:$0xff]
        %v802 = vld [vmem:[%s295 + $0xe38] sm:$0xff]
        %v803 = vld [vmem:[%s295 + $0xe40] sm:$0xff]
        %v804 = vld [vmem:[%s295 + $0xe48] sm:$0xff]
        %v805 = vld [vmem:[%s295 + $0xe50] sm:$0xff]
        %v806 = vld [vmem:[%s295 + $0xe58] sm:$0xff]
        %v807 = vld [vmem:[%s295 + $0xe60] sm:$0xff]
        %v808 = vld [vmem:[%s295 + $0xe68] sm:$0xff]
        %v809 = vld [vmem:[%s295 + $0xe70] sm:$0xff]
        %v810 = vld [vmem:[%s295 + $0xe78] sm:$0xff]
        %v811 = vld [vmem:[%s295 + $0xe80] sm:$0xff]
        %v812 = vld [vmem:[%s295 + $0xe88] sm:$0xff]
        %v813 = vld [vmem:[%s295 + $0xe90] sm:$0xff]
        %v814 = vld [vmem:[%s295 + $0xe98] sm:$0xff]
        %v815 = vld [vmem:[%s295 + $0xea0] sm:$0xff]
        %v816 = vld [vmem:[%s295 + $0xea8] sm:$0xff]
        %v817 = vld [vmem:[%s295 + $0xeb0] sm:$0xff]
        %v818 = vld [vmem:[%s295 + $0xeb8] sm:$0xff]
        %v819 = vld [vmem:[%s295 + $0xec0] sm:$0xff]
        %v820 = vld [vmem:[%s295 + $0xec8] sm:$0xff]
        %v821 = vld [vmem:[%s295 + $0xed0] sm:$0xff]
        %v822 = vld [vmem:[%s295 + $0xed8] sm:$0xff]
        %v823 = vld [vmem:[%s295 + $0xee0] sm:$0xff]
        %v824 = vld [vmem:[%s295 + $0xee8] sm:$0xff]
        %v825 = vld [vmem:[%s295 + $0xef0] sm:$0xff]
        %v826 = vld [vmem:[%s295 + $0xef8] sm:$0xff]
        %v827 = vld [vmem:[%s295 + $0xf00] sm:$0xff]
        %v828 = vld [vmem:[%s295 + $0xf08] sm:$0xff]
        %v829 = vld [vmem:[%s295 + $0xf10] sm:$0xff]
        %v830 = vld [vmem:[%s295 + $0xf18] sm:$0xff]
        %v831 = vld [vmem:[%s295 + $0xf20] sm:$0xff]
        %v832 = vld [vmem:[%s295 + $0xf28] sm:$0xff]
        %v833 = vld [vmem:[%s295 + $0xf30] sm:$0xff]
        %v834 = vld [vmem:[%s295 + $0xf38] sm:$0xff]
        %v835 = vld [vmem:[%s295 + $0xf40] sm:$0xff]
        %v836 = vld [vmem:[%s295 + $0xf48] sm:$0xff]
        %v837 = vld [vmem:[%s295 + $0xf50] sm:$0xff]
        %v838 = vld [vmem:[%s295 + $0xf58] sm:$0xff]
        %v839 = vld [vmem:[%s295 + $0xf60] sm:$0xff]
        %v840 = vld [vmem:[%s295 + $0xf68] sm:$0xff]
        %v841 = vld [vmem:[%s295 + $0xf70] sm:$0xff]
        %v842 = vld [vmem:[%s295 + $0xf78] sm:$0xff]
        %v843 = vld [vmem:[%s295 + $0xf80] sm:$0xff]
        %v844 = vld [vmem:[%s295 + $0xf88] sm:$0xff]
        %v845 = vld [vmem:[%s295 + $0xf90] sm:$0xff]
        %v846 = vld [vmem:[%s295 + $0xf98] sm:$0xff]
        %v847 = vld [vmem:[%s295 + $0xfa0] sm:$0xff]
        %v848 = vld [vmem:[%s295 + $0xfa8] sm:$0xff]
        %v849 = vld [vmem:[%s295 + $0xfb0] sm:$0xff]
        %v850 = vld [vmem:[%s295 + $0xfb8] sm:$0xff]
        %v851 = vld [vmem:[%s295 + $0xfc0] sm:$0xff]
        %v852 = vld [vmem:[%s295 + $0xfc8] sm:$0xff]
        %v853 = vld [vmem:[%s295 + $0xfd0] sm:$0xff]
        %v854 = vld [vmem:[%s295 + $0xfd8] sm:$0xff]
        %v855 = vld [vmem:[%s295 + $0xfe0] sm:$0xff]
        %v856 = vld [vmem:[%s295 + $0xfe8] sm:$0xff]
        %v857 = vld [vmem:[%s295 + $0xff0] sm:$0xff]
        %v858 = vld [vmem:[%s295 + $0xff8] sm:$0xff]
        %v859 = vadd.f32 %v347, %v363
        %v860 = vadd.f32 %v859, %v379
        %v861 = vadd.f32 %v860, %v395
        %v862 = vadd.f32 %v861, %v411
        %v863 = vadd.f32 %v862, %v427
        %v864 = vadd.f32 %v863, %v443
        %v865 = vadd.f32 %v864, %v459
        %v866 = vadd.f32 %v865, %v475
        %v867 = vadd.f32 %v866, %v491
        %v868 = vadd.f32 %v867, %v507
        %v869 = vadd.f32 %v868, %v523
        %v870 = vadd.f32 %v869, %v539
        %v871 = vadd.f32 %v870, %v555
        %v872 = vadd.f32 %v871, %v571
        %v873 = vadd.f32 %v872, %v587
        %v874 = vrot.slane %v873, 4
        %v875 = vadd.f32 %v873, %v874
        %v876 = vrot.slane %v875, 2
        %v877 = vadd.f32 %v875, %v876
        %v878 = vrot.slane %v877, 1
        %v879 = vadd.f32 %v877, %v878
        %v880 = vadd.f32 %v348, %v364
        %v881 = vadd.f32 %v880, %v380
        %v882 = vadd.f32 %v881, %v396
        %v883 = vadd.f32 %v882, %v412
        %v884 = vadd.f32 %v883, %v428
        %v885 = vadd.f32 %v884, %v444
        %v886 = vadd.f32 %v885, %v460
        %v887 = vadd.f32 %v886, %v476
        %v888 = vadd.f32 %v887, %v492
        %v889 = vadd.f32 %v888, %v508
        %v890 = vadd.f32 %v889, %v524
        %v891 = vadd.f32 %v890, %v540
        %v892 = vadd.f32 %v891, %v556
        %v893 = vadd.f32 %v892, %v572
        %v894 = vadd.f32 %v893, %v588
        %v895 = vrot.slane %v894, 4
        %v896 = vadd.f32 %v894, %v895
        %v897 = vrot.slane %v896, 2
        %v898 = vadd.f32 %v896, %v897
        %v899 = vrot.slane %v898, 1
        %v900 = vadd.f32 %v898, %v899
        %v901 = vadd.f32 %v349, %v365
        %v902 = vadd.f32 %v901, %v381
        %v903 = vadd.f32 %v902, %v397
        %v904 = vadd.f32 %v903, %v413
        %v905 = vadd.f32 %v904, %v429
        %v906 = vadd.f32 %v905, %v445
        %v907 = vadd.f32 %v906, %v461
        %v908 = vadd.f32 %v907, %v477
        %v909 = vadd.f32 %v908, %v493
        %v910 = vadd.f32 %v909, %v509
        %v911 = vadd.f32 %v910, %v525
        %v912 = vadd.f32 %v911, %v541
        %v913 = vadd.f32 %v912, %v557
        %v914 = vadd.f32 %v913, %v573
        %v915 = vadd.f32 %v914, %v589
        %v916 = vrot.slane %v915, 4
        %v917 = vadd.f32 %v915, %v916
        %v918 = vrot.slane %v917, 2
        %v919 = vadd.f32 %v917, %v918
        %v920 = vrot.slane %v919, 1
        %v921 = vadd.f32 %v919, %v920
        %v922 = vadd.f32 %v350, %v366
        %v923 = vadd.f32 %v922, %v382
        %v924 = vadd.f32 %v923, %v398
        %v925 = vadd.f32 %v924, %v414
        %v926 = vadd.f32 %v925, %v430
        %v927 = vadd.f32 %v926, %v446
        %v928 = vadd.f32 %v927, %v462
        %v929 = vadd.f32 %v928, %v478
        %v930 = vadd.f32 %v929, %v494
        %v931 = vadd.f32 %v930, %v510
        %v932 = vadd.f32 %v931, %v526
        %v933 = vadd.f32 %v932, %v542
        %v934 = vadd.f32 %v933, %v558
        %v935 = vadd.f32 %v934, %v574
        %v936 = vadd.f32 %v935, %v590
        %v937 = vrot.slane %v936, 4
        %v938 = vadd.f32 %v936, %v937
        %v939 = vrot.slane %v938, 2
        %v940 = vadd.f32 %v938, %v939
        %v941 = vrot.slane %v940, 1
        %v942 = vadd.f32 %v940, %v941
        %v943 = vadd.f32 %v351, %v367
        %v944 = vadd.f32 %v943, %v383
        %v945 = vadd.f32 %v944, %v399
        %v946 = vadd.f32 %v945, %v415
        %v947 = vadd.f32 %v946, %v431
        %v948 = vadd.f32 %v947, %v447
        %v949 = vadd.f32 %v948, %v463
        %v950 = vadd.f32 %v949, %v479
        %v951 = vadd.f32 %v950, %v495
        %v952 = vadd.f32 %v951, %v511
        %v953 = vadd.f32 %v952, %v527
        %v954 = vadd.f32 %v953, %v543
        %v955 = vadd.f32 %v954, %v559
        %v956 = vadd.f32 %v955, %v575
        %v957 = vadd.f32 %v956, %v591
        %v958 = vrot.slane %v957, 4
        %v959 = vadd.f32 %v957, %v958
        %v960 = vrot.slane %v959, 2
        %v961 = vadd.f32 %v959, %v960
        %v962 = vrot.slane %v961, 1
        %v963 = vadd.f32 %v961, %v962
        %v964 = vadd.f32 %v352, %v368
        %v965 = vadd.f32 %v964, %v384
        %v966 = vadd.f32 %v965, %v400
        %v967 = vadd.f32 %v966, %v416
        %v968 = vadd.f32 %v967, %v432
        %v969 = vadd.f32 %v968, %v448
        %v970 = vadd.f32 %v969, %v464
        %v971 = vadd.f32 %v970, %v480
        %v972 = vadd.f32 %v971, %v496
        %v973 = vadd.f32 %v972, %v512
        %v974 = vadd.f32 %v973, %v528
        %v975 = vadd.f32 %v974, %v544
        %v976 = vadd.f32 %v975, %v560
        %v977 = vadd.f32 %v976, %v576
        %v978 = vadd.f32 %v977, %v592
        %v979 = vrot.slane %v978, 4
        %v980 = vadd.f32 %v978, %v979
        %v981 = vrot.slane %v980, 2
        %v982 = vadd.f32 %v980, %v981
        %v983 = vrot.slane %v982, 1
        %v984 = vadd.f32 %v982, %v983
        %v985 = vadd.f32 %v353, %v369
        %v986 = vadd.f32 %v985, %v385
        %v987 = vadd.f32 %v986, %v401
        %v988 = vadd.f32 %v987, %v417
        %v989 = vadd.f32 %v988, %v433
        %v990 = vadd.f32 %v989, %v449
        %v991 = vadd.f32 %v990, %v465
        %v992 = vadd.f32 %v991, %v481
        %v993 = vadd.f32 %v992, %v497
        %v994 = vadd.f32 %v993, %v513
        %v995 = vadd.f32 %v994, %v529
        %v996 = vadd.f32 %v995, %v545
        %v997 = vadd.f32 %v996, %v561
        %v998 = vadd.f32 %v997, %v577
        %v999 = vadd.f32 %v998, %v593
        %v1000 = vrot.slane %v999, 4
        %v1001 = vadd.f32 %v999, %v1000
        %v1002 = vrot.slane %v1001, 2
        %v1003 = vadd.f32 %v1001, %v1002
        %v1004 = vrot.slane %v1003, 1
        %v1005 = vadd.f32 %v1003, %v1004
        %v1006 = vadd.f32 %v354, %v370
        %v1007 = vadd.f32 %v1006, %v386
        %v1008 = vadd.f32 %v1007, %v402
        %v1009 = vadd.f32 %v1008, %v418
        %v1010 = vadd.f32 %v1009, %v434
        %v1011 = vadd.f32 %v1010, %v450
        %v1012 = vadd.f32 %v1011, %v466
        %v1013 = vadd.f32 %v1012, %v482
        %v1014 = vadd.f32 %v1013, %v498
        %v1015 = vadd.f32 %v1014, %v514
        %v1016 = vadd.f32 %v1015, %v530
        %v1017 = vadd.f32 %v1016, %v546
        %v1018 = vadd.f32 %v1017, %v562
        %v1019 = vadd.f32 %v1018, %v578
        %v1020 = vadd.f32 %v1019, %v594
        %v1021 = vrot.slane %v1020, 4
        %v1022 = vadd.f32 %v1020, %v1021
        %v1023 = vrot.slane %v1022, 2
        %v1024 = vadd.f32 %v1022, %v1023
        %v1025 = vrot.slane %v1024, 1
        %v1026 = vadd.f32 %v1024, %v1025
        %v1027 = vadd.f32 %v355, %v371
        %v1028 = vadd.f32 %v1027, %v387
        %v1029 = vadd.f32 %v1028, %v403
        %v1030 = vadd.f32 %v1029, %v419
        %v1031 = vadd.f32 %v1030, %v435
        %v1032 = vadd.f32 %v1031, %v451
        %v1033 = vadd.f32 %v1032, %v467
        %v1034 = vadd.f32 %v1033, %v483
        %v1035 = vadd.f32 %v1034, %v499
        %v1036 = vadd.f32 %v1035, %v515
        %v1037 = vadd.f32 %v1036, %v531
        %v1038 = vadd.f32 %v1037, %v547
        %v1039 = vadd.f32 %v1038, %v563
        %v1040 = vadd.f32 %v1039, %v579
        %v1041 = vadd.f32 %v1040, %v595
        %v1042 = vrot.slane %v1041, 4
        %v1043 = vadd.f32 %v1041, %v1042
        %v1044 = vrot.slane %v1043, 2
        %v1045 = vadd.f32 %v1043, %v1044
        %v1046 = vrot.slane %v1045, 1
        %v1047 = vadd.f32 %v1045, %v1046
        %v1048 = vadd.f32 %v356, %v372
        %v1049 = vadd.f32 %v1048, %v388
        %v1050 = vadd.f32 %v1049, %v404
        %v1051 = vadd.f32 %v1050, %v420
        %v1052 = vadd.f32 %v1051, %v436
        %v1053 = vadd.f32 %v1052, %v452
        %v1054 = vadd.f32 %v1053, %v468
        %v1055 = vadd.f32 %v1054, %v484
        %v1056 = vadd.f32 %v1055, %v500
        %v1057 = vadd.f32 %v1056, %v516
        %v1058 = vadd.f32 %v1057, %v532
        %v1059 = vadd.f32 %v1058, %v548
        %v1060 = vadd.f32 %v1059, %v564
        %v1061 = vadd.f32 %v1060, %v580
        %v1062 = vadd.f32 %v1061, %v596
        %v1063 = vrot.slane %v1062, 4
        %v1064 = vadd.f32 %v1062, %v1063
        %v1065 = vrot.slane %v1064, 2
        %v1066 = vadd.f32 %v1064, %v1065
        %v1067 = vrot.slane %v1066, 1
        %v1068 = vadd.f32 %v1066, %v1067
        %v1069 = vadd.f32 %v357, %v373
        %v1070 = vadd.f32 %v1069, %v389
        %v1071 = vadd.f32 %v1070, %v405
        %v1072 = vadd.f32 %v1071, %v421
        %v1073 = vadd.f32 %v1072, %v437
        %v1074 = vadd.f32 %v1073, %v453
        %v1075 = vadd.f32 %v1074, %v469
        %v1076 = vadd.f32 %v1075, %v485
        %v1077 = vadd.f32 %v1076, %v501
        %v1078 = vadd.f32 %v1077, %v517
        %v1079 = vadd.f32 %v1078, %v533
        %v1080 = vadd.f32 %v1079, %v549
        %v1081 = vadd.f32 %v1080, %v565
        %v1082 = vadd.f32 %v1081, %v581
        %v1083 = vadd.f32 %v1082, %v597
        %v1084 = vrot.slane %v1083, 4
        %v1085 = vadd.f32 %v1083, %v1084
        %v1086 = vrot.slane %v1085, 2
        %v1087 = vadd.f32 %v1085, %v1086
        %v1088 = vrot.slane %v1087, 1
        %v1089 = vadd.f32 %v1087, %v1088
        %v1090 = vadd.f32 %v358, %v374
        %v1091 = vadd.f32 %v1090, %v390
        %v1092 = vadd.f32 %v1091, %v406
        %v1093 = vadd.f32 %v1092, %v422
        %v1094 = vadd.f32 %v1093, %v438
        %v1095 = vadd.f32 %v1094, %v454
        %v1096 = vadd.f32 %v1095, %v470
        %v1097 = vadd.f32 %v1096, %v486
        %v1098 = vadd.f32 %v1097, %v502
        %v1099 = vadd.f32 %v1098, %v518
        %v1100 = vadd.f32 %v1099, %v534
        %v1101 = vadd.f32 %v1100, %v550
        %v1102 = vadd.f32 %v1101, %v566
        %v1103 = vadd.f32 %v1102, %v582
        %v1104 = vadd.f32 %v1103, %v598
        %v1105 = vrot.slane %v1104, 4
        %v1106 = vadd.f32 %v1104, %v1105
        %v1107 = vrot.slane %v1106, 2
        %v1108 = vadd.f32 %v1106, %v1107
        %v1109 = vrot.slane %v1108, 1
        %v1110 = vadd.f32 %v1108, %v1109
        %v1111 = vadd.f32 %v359, %v375
        %v1112 = vadd.f32 %v1111, %v391
        %v1113 = vadd.f32 %v1112, %v407
        %v1114 = vadd.f32 %v1113, %v423
        %v1115 = vadd.f32 %v1114, %v439
        %v1116 = vadd.f32 %v1115, %v455
        %v1117 = vadd.f32 %v1116, %v471
        %v1118 = vadd.f32 %v1117, %v487
        %v1119 = vadd.f32 %v1118, %v503
        %v1120 = vadd.f32 %v1119, %v519
        %v1121 = vadd.f32 %v1120, %v535
        %v1122 = vadd.f32 %v1121, %v551
        %v1123 = vadd.f32 %v1122, %v567
        %v1124 = vadd.f32 %v1123, %v583
        %v1125 = vadd.f32 %v1124, %v599
        %v1126 = vrot.slane %v1125, 4
        %v1127 = vadd.f32 %v1125, %v1126
        %v1128 = vrot.slane %v1127, 2
        %v1129 = vadd.f32 %v1127, %v1128
        %v1130 = vrot.slane %v1129, 1
        %v1131 = vadd.f32 %v1129, %v1130
        %v1132 = vadd.f32 %v360, %v376
        %v1133 = vadd.f32 %v1132, %v392
        %v1134 = vadd.f32 %v1133, %v408
        %v1135 = vadd.f32 %v1134, %v424
        %v1136 = vadd.f32 %v1135, %v440
        %v1137 = vadd.f32 %v1136, %v456
        %v1138 = vadd.f32 %v1137, %v472
        %v1139 = vadd.f32 %v1138, %v488
        %v1140 = vadd.f32 %v1139, %v504
        %v1141 = vadd.f32 %v1140, %v520
        %v1142 = vadd.f32 %v1141, %v536
        %v1143 = vadd.f32 %v1142, %v552
        %v1144 = vadd.f32 %v1143, %v568
        %v1145 = vadd.f32 %v1144, %v584
        %v1146 = vadd.f32 %v1145, %v600
        %v1147 = vrot.slane %v1146, 4
        %v1148 = vadd.f32 %v1146, %v1147
        %v1149 = vrot.slane %v1148, 2
        %v1150 = vadd.f32 %v1148, %v1149
        %v1151 = vrot.slane %v1150, 1
        %v1152 = vadd.f32 %v1150, %v1151
        %v1153 = vadd.f32 %v361, %v377
        %v1154 = vadd.f32 %v1153, %v393
        %v1155 = vadd.f32 %v1154, %v409
        %v1156 = vadd.f32 %v1155, %v425
        %v1157 = vadd.f32 %v1156, %v441
        %v1158 = vadd.f32 %v1157, %v457
        %v1159 = vadd.f32 %v1158, %v473
        %v1160 = vadd.f32 %v1159, %v489
        %v1161 = vadd.f32 %v1160, %v505
        %v1162 = vadd.f32 %v1161, %v521
        %v1163 = vadd.f32 %v1162, %v537
        %v1164 = vadd.f32 %v1163, %v553
        %v1165 = vadd.f32 %v1164, %v569
        %v1166 = vadd.f32 %v1165, %v585
        %v1167 = vadd.f32 %v1166, %v601
        %v1168 = vrot.slane %v1167, 4
        %v1169 = vadd.f32 %v1167, %v1168
        %v1170 = vrot.slane %v1169, 2
        %v1171 = vadd.f32 %v1169, %v1170
        %v1172 = vrot.slane %v1171, 1
        %v1173 = vadd.f32 %v1171, %v1172
        %v1174 = vadd.f32 %v362, %v378
        %v1175 = vadd.f32 %v1174, %v394
        %v1176 = vadd.f32 %v1175, %v410
        %v1177 = vadd.f32 %v1176, %v426
        %v1178 = vadd.f32 %v1177, %v442
        %v1179 = vadd.f32 %v1178, %v458
        %v1180 = vadd.f32 %v1179, %v474
        %v1181 = vadd.f32 %v1180, %v490
        %v1182 = vadd.f32 %v1181, %v506
        %v1183 = vadd.f32 %v1182, %v522
        %v1184 = vadd.f32 %v1183, %v538
        %v1185 = vadd.f32 %v1184, %v554
        %v1186 = vadd.f32 %v1185, %v570
        %v1187 = vadd.f32 %v1186, %v586
        %v1188 = vadd.f32 %v1187, %v602
        %v1189 = vrot.slane %v1188, 4
        %v1190 = vadd.f32 %v1188, %v1189
        %v1191 = vrot.slane %v1190, 2
        %v1192 = vadd.f32 %v1190, %v1191
        %v1193 = vrot.slane %v1192, 1
        %v1194 = vadd.f32 %v1192, %v1193
        %v1195 = vadd.f32 %v603, %v619
        %v1196 = vadd.f32 %v1195, %v635
        %v1197 = vadd.f32 %v1196, %v651
        %v1198 = vadd.f32 %v1197, %v667
        %v1199 = vadd.f32 %v1198, %v683
        %v1200 = vadd.f32 %v1199, %v699
        %v1201 = vadd.f32 %v1200, %v715
        %v1202 = vadd.f32 %v1201, %v731
        %v1203 = vadd.f32 %v1202, %v747
        %v1204 = vadd.f32 %v1203, %v763
        %v1205 = vadd.f32 %v1204, %v779
        %v1206 = vadd.f32 %v1205, %v795
        %v1207 = vadd.f32 %v1206, %v811
        %v1208 = vadd.f32 %v1207, %v827
        %v1209 = vadd.f32 %v1208, %v843
        %v1210 = vrot.slane %v1209, 4
        %v1211 = vadd.f32 %v1209, %v1210
        %v1212 = vrot.slane %v1211, 2
        %v1213 = vadd.f32 %v1211, %v1212
        %v1214 = vrot.slane %v1213, 1
        %v1215 = vadd.f32 %v1213, %v1214
        %v1216 = vadd.f32 %v604, %v620
        %v1217 = vadd.f32 %v1216, %v636
        %v1218 = vadd.f32 %v1217, %v652
        %v1219 = vadd.f32 %v1218, %v668
        %v1220 = vadd.f32 %v1219, %v684
        %v1221 = vadd.f32 %v1220, %v700
        %v1222 = vadd.f32 %v1221, %v716
        %v1223 = vadd.f32 %v1222, %v732
        %v1224 = vadd.f32 %v1223, %v748
        %v1225 = vadd.f32 %v1224, %v764
        %v1226 = vadd.f32 %v1225, %v780
        %v1227 = vadd.f32 %v1226, %v796
        %v1228 = vadd.f32 %v1227, %v812
        %v1229 = vadd.f32 %v1228, %v828
        %v1230 = vadd.f32 %v1229, %v844
        %v1231 = vrot.slane %v1230, 4
        %v1232 = vadd.f32 %v1230, %v1231
        %v1233 = vrot.slane %v1232, 2
        %v1234 = vadd.f32 %v1232, %v1233
        %v1235 = vrot.slane %v1234, 1
        %v1236 = vadd.f32 %v1234, %v1235
        %v1237 = vadd.f32 %v605, %v621
        %v1238 = vadd.f32 %v1237, %v637
        %v1239 = vadd.f32 %v1238, %v653
        %v1240 = vadd.f32 %v1239, %v669
        %v1241 = vadd.f32 %v1240, %v685
        %v1242 = vadd.f32 %v1241, %v701
        %v1243 = vadd.f32 %v1242, %v717
        %v1244 = vadd.f32 %v1243, %v733
        %v1245 = vadd.f32 %v1244, %v749
        %v1246 = vadd.f32 %v1245, %v765
        %v1247 = vadd.f32 %v1246, %v781
        %v1248 = vadd.f32 %v1247, %v797
        %v1249 = vadd.f32 %v1248, %v813
        %v1250 = vadd.f32 %v1249, %v829
        %v1251 = vadd.f32 %v1250, %v845
        %v1252 = vrot.slane %v1251, 4
        %v1253 = vadd.f32 %v1251, %v1252
        %v1254 = vrot.slane %v1253, 2
        %v1255 = vadd.f32 %v1253, %v1254
        %v1256 = vrot.slane %v1255, 1
        %v1257 = vadd.f32 %v1255, %v1256
        %v1258 = vadd.f32 %v606, %v622
        %v1259 = vadd.f32 %v1258, %v638
        %v1260 = vadd.f32 %v1259, %v654
        %v1261 = vadd.f32 %v1260, %v670
        %v1262 = vadd.f32 %v1261, %v686
        %v1263 = vadd.f32 %v1262, %v702
        %v1264 = vadd.f32 %v1263, %v718
        %v1265 = vadd.f32 %v1264, %v734
        %v1266 = vadd.f32 %v1265, %v750
        %v1267 = vadd.f32 %v1266, %v766
        %v1268 = vadd.f32 %v1267, %v782
        %v1269 = vadd.f32 %v1268, %v798
        %v1270 = vadd.f32 %v1269, %v814
        %v1271 = vadd.f32 %v1270, %v830
        %v1272 = vadd.f32 %v1271, %v846
        %v1273 = vrot.slane %v1272, 4
        %v1274 = vadd.f32 %v1272, %v1273
        %v1275 = vrot.slane %v1274, 2
        %v1276 = vadd.f32 %v1274, %v1275
        %v1277 = vrot.slane %v1276, 1
        %v1278 = vadd.f32 %v1276, %v1277
        %v1279 = vadd.f32 %v607, %v623
        %v1280 = vadd.f32 %v1279, %v639
        %v1281 = vadd.f32 %v1280, %v655
        %v1282 = vadd.f32 %v1281, %v671
        %v1283 = vadd.f32 %v1282, %v687
        %v1284 = vadd.f32 %v1283, %v703
        %v1285 = vadd.f32 %v1284, %v719
        %v1286 = vadd.f32 %v1285, %v735
        %v1287 = vadd.f32 %v1286, %v751
        %v1288 = vadd.f32 %v1287, %v767
        %v1289 = vadd.f32 %v1288, %v783
        %v1290 = vadd.f32 %v1289, %v799
        %v1291 = vadd.f32 %v1290, %v815
        %v1292 = vadd.f32 %v1291, %v831
        %v1293 = vadd.f32 %v1292, %v847
        %v1294 = vrot.slane %v1293, 4
        %v1295 = vadd.f32 %v1293, %v1294
        %v1296 = vrot.slane %v1295, 2
        %v1297 = vadd.f32 %v1295, %v1296
        %v1298 = vrot.slane %v1297, 1
        %v1299 = vadd.f32 %v1297, %v1298
        %v1300 = vadd.f32 %v608, %v624
        %v1301 = vadd.f32 %v1300, %v640
        %v1302 = vadd.f32 %v1301, %v656
        %v1303 = vadd.f32 %v1302, %v672
        %v1304 = vadd.f32 %v1303, %v688
        %v1305 = vadd.f32 %v1304, %v704
        %v1306 = vadd.f32 %v1305, %v720
        %v1307 = vadd.f32 %v1306, %v736
        %v1308 = vadd.f32 %v1307, %v752
        %v1309 = vadd.f32 %v1308, %v768
        %v1310 = vadd.f32 %v1309, %v784
        %v1311 = vadd.f32 %v1310, %v800
        %v1312 = vadd.f32 %v1311, %v816
        %v1313 = vadd.f32 %v1312, %v832
        %v1314 = vadd.f32 %v1313, %v848
        %v1315 = vrot.slane %v1314, 4
        %v1316 = vadd.f32 %v1314, %v1315
        %v1317 = vrot.slane %v1316, 2
        %v1318 = vadd.f32 %v1316, %v1317
        %v1319 = vrot.slane %v1318, 1
        %v1320 = vadd.f32 %v1318, %v1319
        %v1321 = vadd.f32 %v609, %v625
        %v1322 = vadd.f32 %v1321, %v641
        %v1323 = vadd.f32 %v1322, %v657
        %v1324 = vadd.f32 %v1323, %v673
        %v1325 = vadd.f32 %v1324, %v689
        %v1326 = vadd.f32 %v1325, %v705
        %v1327 = vadd.f32 %v1326, %v721
        %v1328 = vadd.f32 %v1327, %v737
        %v1329 = vadd.f32 %v1328, %v753
        %v1330 = vadd.f32 %v1329, %v769
        %v1331 = vadd.f32 %v1330, %v785
        %v1332 = vadd.f32 %v1331, %v801
        %v1333 = vadd.f32 %v1332, %v817
        %v1334 = vadd.f32 %v1333, %v833
        %v1335 = vadd.f32 %v1334, %v849
        %v1336 = vrot.slane %v1335, 4
        %v1337 = vadd.f32 %v1335, %v1336
        %v1338 = vrot.slane %v1337, 2
        %v1339 = vadd.f32 %v1337, %v1338
        %v1340 = vrot.slane %v1339, 1
        %v1341 = vadd.f32 %v1339, %v1340
        %v1342 = vadd.f32 %v610, %v626
        %v1343 = vadd.f32 %v1342, %v642
        %v1344 = vadd.f32 %v1343, %v658
        %v1345 = vadd.f32 %v1344, %v674
        %v1346 = vadd.f32 %v1345, %v690
        %v1347 = vadd.f32 %v1346, %v706
        %v1348 = vadd.f32 %v1347, %v722
        %v1349 = vadd.f32 %v1348, %v738
        %v1350 = vadd.f32 %v1349, %v754
        %v1351 = vadd.f32 %v1350, %v770
        %v1352 = vadd.f32 %v1351, %v786
        %v1353 = vadd.f32 %v1352, %v802
        %v1354 = vadd.f32 %v1353, %v818
        %v1355 = vadd.f32 %v1354, %v834
        %v1356 = vadd.f32 %v1355, %v850
        %v1357 = vrot.slane %v1356, 4
        %v1358 = vadd.f32 %v1356, %v1357
        %v1359 = vrot.slane %v1358, 2
        %v1360 = vadd.f32 %v1358, %v1359
        %v1361 = vrot.slane %v1360, 1
        %v1362 = vadd.f32 %v1360, %v1361
        %v1363 = vadd.f32 %v611, %v627
        %v1364 = vadd.f32 %v1363, %v643
        %v1365 = vadd.f32 %v1364, %v659
        %v1366 = vadd.f32 %v1365, %v675
        %v1367 = vadd.f32 %v1366, %v691
        %v1368 = vadd.f32 %v1367, %v707
        %v1369 = vadd.f32 %v1368, %v723
        %v1370 = vadd.f32 %v1369, %v739
        %v1371 = vadd.f32 %v1370, %v755
        %v1372 = vadd.f32 %v1371, %v771
        %v1373 = vadd.f32 %v1372, %v787
        %v1374 = vadd.f32 %v1373, %v803
        %v1375 = vadd.f32 %v1374, %v819
        %v1376 = vadd.f32 %v1375, %v835
        %v1377 = vadd.f32 %v1376, %v851
        %v1378 = vrot.slane %v1377, 4
        %v1379 = vadd.f32 %v1377, %v1378
        %v1380 = vrot.slane %v1379, 2
        %v1381 = vadd.f32 %v1379, %v1380
        %v1382 = vrot.slane %v1381, 1
        %v1383 = vadd.f32 %v1381, %v1382
        %v1384 = vadd.f32 %v612, %v628
        %v1385 = vadd.f32 %v1384, %v644
        %v1386 = vadd.f32 %v1385, %v660
        %v1387 = vadd.f32 %v1386, %v676
        %v1388 = vadd.f32 %v1387, %v692
        %v1389 = vadd.f32 %v1388, %v708
        %v1390 = vadd.f32 %v1389, %v724
        %v1391 = vadd.f32 %v1390, %v740
        %v1392 = vadd.f32 %v1391, %v756
        %v1393 = vadd.f32 %v1392, %v772
        %v1394 = vadd.f32 %v1393, %v788
        %v1395 = vadd.f32 %v1394, %v804
        %v1396 = vadd.f32 %v1395, %v820
        %v1397 = vadd.f32 %v1396, %v836
        %v1398 = vadd.f32 %v1397, %v852
        %v1399 = vrot.slane %v1398, 4
        %v1400 = vadd.f32 %v1398, %v1399
        %v1401 = vrot.slane %v1400, 2
        %v1402 = vadd.f32 %v1400, %v1401
        %v1403 = vrot.slane %v1402, 1
        %v1404 = vadd.f32 %v1402, %v1403
        %v1405 = vadd.f32 %v613, %v629
        %v1406 = vadd.f32 %v1405, %v645
        %v1407 = vadd.f32 %v1406, %v661
        %v1408 = vadd.f32 %v1407, %v677
        %v1409 = vadd.f32 %v1408, %v693
        %v1410 = vadd.f32 %v1409, %v709
        %v1411 = vadd.f32 %v1410, %v725
        %v1412 = vadd.f32 %v1411, %v741
        %v1413 = vadd.f32 %v1412, %v757
        %v1414 = vadd.f32 %v1413, %v773
        %v1415 = vadd.f32 %v1414, %v789
        %v1416 = vadd.f32 %v1415, %v805
        %v1417 = vadd.f32 %v1416, %v821
        %v1418 = vadd.f32 %v1417, %v837
        %v1419 = vadd.f32 %v1418, %v853
        %v1420 = vrot.slane %v1419, 4
        %v1421 = vadd.f32 %v1419, %v1420
        %v1422 = vrot.slane %v1421, 2
        %v1423 = vadd.f32 %v1421, %v1422
        %v1424 = vrot.slane %v1423, 1
        %v1425 = vadd.f32 %v1423, %v1424
        %v1426 = vadd.f32 %v614, %v630
        %v1427 = vadd.f32 %v1426, %v646
        %v1428 = vadd.f32 %v1427, %v662
        %v1429 = vadd.f32 %v1428, %v678
        %v1430 = vadd.f32 %v1429, %v694
        %v1431 = vadd.f32 %v1430, %v710
        %v1432 = vadd.f32 %v1431, %v726
        %v1433 = vadd.f32 %v1432, %v742
        %v1434 = vadd.f32 %v1433, %v758
        %v1435 = vadd.f32 %v1434, %v774
        %v1436 = vadd.f32 %v1435, %v790
        %v1437 = vadd.f32 %v1436, %v806
        %v1438 = vadd.f32 %v1437, %v822
        %v1439 = vadd.f32 %v1438, %v838
        %v1440 = vadd.f32 %v1439, %v854
        %v1441 = vrot.slane %v1440, 4
        %v1442 = vadd.f32 %v1440, %v1441
        %v1443 = vrot.slane %v1442, 2
        %v1444 = vadd.f32 %v1442, %v1443
        %v1445 = vrot.slane %v1444, 1
        %v1446 = vadd.f32 %v1444, %v1445
        %v1447 = vadd.f32 %v615, %v631
        %v1448 = vadd.f32 %v1447, %v647
        %v1449 = vadd.f32 %v1448, %v663
        %v1450 = vadd.f32 %v1449, %v679
        %v1451 = vadd.f32 %v1450, %v695
        %v1452 = vadd.f32 %v1451, %v711
        %v1453 = vadd.f32 %v1452, %v727
        %v1454 = vadd.f32 %v1453, %v743
        %v1455 = vadd.f32 %v1454, %v759
        %v1456 = vadd.f32 %v1455, %v775
        %v1457 = vadd.f32 %v1456, %v791
        %v1458 = vadd.f32 %v1457, %v807
        %v1459 = vadd.f32 %v1458, %v823
        %v1460 = vadd.f32 %v1459, %v839
        %v1461 = vadd.f32 %v1460, %v855
        %v1462 = vrot.slane %v1461, 4
        %v1463 = vadd.f32 %v1461, %v1462
        %v1464 = vrot.slane %v1463, 2
        %v1465 = vadd.f32 %v1463, %v1464
        %v1466 = vrot.slane %v1465, 1
        %v1467 = vadd.f32 %v1465, %v1466
        %v1468 = vadd.f32 %v616, %v632
        %v1469 = vadd.f32 %v1468, %v648
        %v1470 = vadd.f32 %v1469, %v664
        %v1471 = vadd.f32 %v1470, %v680
        %v1472 = vadd.f32 %v1471, %v696
        %v1473 = vadd.f32 %v1472, %v712
        %v1474 = vadd.f32 %v1473, %v728
        %v1475 = vadd.f32 %v1474, %v744
        %v1476 = vadd.f32 %v1475, %v760
        %v1477 = vadd.f32 %v1476, %v776
        %v1478 = vadd.f32 %v1477, %v792
        %v1479 = vadd.f32 %v1478, %v808
        %v1480 = vadd.f32 %v1479, %v824
        %v1481 = vadd.f32 %v1480, %v840
        %v1482 = vadd.f32 %v1481, %v856
        %v1483 = vrot.slane %v1482, 4
        %v1484 = vadd.f32 %v1482, %v1483
        %v1485 = vrot.slane %v1484, 2
        %v1486 = vadd.f32 %v1484, %v1485
        %v1487 = vrot.slane %v1486, 1
        %v1488 = vadd.f32 %v1486, %v1487
        %v1489 = vadd.f32 %v617, %v633
        %v1490 = vadd.f32 %v1489, %v649
        %v1491 = vadd.f32 %v1490, %v665
        %v1492 = vadd.f32 %v1491, %v681
        %v1493 = vadd.f32 %v1492, %v697
        %v1494 = vadd.f32 %v1493, %v713
        %v1495 = vadd.f32 %v1494, %v729
        %v1496 = vadd.f32 %v1495, %v745
        %v1497 = vadd.f32 %v1496, %v761
        %v1498 = vadd.f32 %v1497, %v777
        %v1499 = vadd.f32 %v1498, %v793
        %v1500 = vadd.f32 %v1499, %v809
        %v1501 = vadd.f32 %v1500, %v825
        %v1502 = vadd.f32 %v1501, %v841
        %v1503 = vadd.f32 %v1502, %v857
        %v1504 = vrot.slane %v1503, 4
        %v1505 = vadd.f32 %v1503, %v1504
        %v1506 = vrot.slane %v1505, 2
        %v1507 = vadd.f32 %v1505, %v1506
        %v1508 = vrot.slane %v1507, 1
        %v1509 = vadd.f32 %v1507, %v1508
        %v1510 = vadd.f32 %v618, %v634
        %v1511 = vadd.f32 %v1510, %v650
        %v1512 = vadd.f32 %v1511, %v666
        %v1513 = vadd.f32 %v1512, %v682
        %v1514 = vadd.f32 %v1513, %v698
        %v1515 = vadd.f32 %v1514, %v714
        %v1516 = vadd.f32 %v1515, %v730
        %v1517 = vadd.f32 %v1516, %v746
        %v1518 = vadd.f32 %v1517, %v762
        %v1519 = vadd.f32 %v1518, %v778
        %v1520 = vadd.f32 %v1519, %v794
        %v1521 = vadd.f32 %v1520, %v810
        %v1522 = vadd.f32 %v1521, %v826
        %v1523 = vadd.f32 %v1522, %v842
        %v1524 = vadd.f32 %v1523, %v858
        %v1525 = vrot.slane %v1524, 4
        %v1526 = vadd.f32 %v1524, %v1525
        %v1527 = vrot.slane %v1526, 2
        %v1528 = vadd.f32 %v1526, %v1527
        %v1529 = vrot.slane %v1528, 1
        %v1530 = vadd.f32 %v1528, %v1529
        %v1563 = vcombine.low %v879, %v900
        %v1564 = vcombine.low %v921, %v942
        %v1566 = vunpack.c.l.s4 1983009808
        %v1567 = vunpack.c.0.s8 %v1566
        %v1568 = vlaneseq
        %v1569 = vshrl.u32 %v1568, 7
        %v1570 = vsub.s32 %v1567, %v1569
        %v1571 = vrot.slane %v1563, %v1570
        %v1573 = vunpack.c.l.s4 1983009808
        %v1574 = vunpack.c.0.s8 %v1573
        %v1575 = vlaneseq
        %v1576 = vshrl.u32 %v1575, 7
        %v1577 = vsub.s32 %v1574, %v1576
        %v1578 = vrot.slane %v1564, %v1577
        %v1579 = vcombine.low %v1571, %v1578
        %v1580 = vcombine.low %v963, %v984
        %v1581 = vcombine.low %v1005, %v1026
        %v1583 = vunpack.c.l.s4 1983009808
        %v1584 = vunpack.c.0.s8 %v1583
        %v1585 = vlaneseq
        %v1586 = vshrl.u32 %v1585, 7
        %v1587 = vsub.s32 %v1584, %v1586
        %v1588 = vrot.slane %v1580, %v1587
        %v1590 = vunpack.c.l.s4 1983009808
        %v1591 = vunpack.c.0.s8 %v1590
        %v1592 = vlaneseq
        %v1593 = vshrl.u32 %v1592, 7
        %v1594 = vsub.s32 %v1591, %v1593
        %v1595 = vrot.slane %v1581, %v1594
        %v1596 = vcombine.low %v1588, %v1595
        %v1597 = vcombine.low %v1047, %v1068
        %v1598 = vcombine.low %v1089, %v1110
        %v1600 = vunpack.c.l.s4 1983009808
        %v1601 = vunpack.c.0.s8 %v1600
        %v1602 = vlaneseq
        %v1603 = vshrl.u32 %v1602, 7
        %v1604 = vsub.s32 %v1601, %v1603
        %v1605 = vrot.slane %v1597, %v1604
        %v1607 = vunpack.c.l.s4 1983009808
        %v1608 = vunpack.c.0.s8 %v1607
        %v1609 = vlaneseq
        %v1610 = vshrl.u32 %v1609, 7
        %v1611 = vsub.s32 %v1608, %v1610
        %v1612 = vrot.slane %v1598, %v1611
        %v1613 = vcombine.low %v1605, %v1612
        %v1614 = vcombine.low %v1131, %v1152
        %v1615 = vcombine.low %v1173, %v1194
        %v1617 = vunpack.c.l.s4 1983009808
        %v1618 = vunpack.c.0.s8 %v1617
        %v1619 = vlaneseq
        %v1620 = vshrl.u32 %v1619, 7
        %v1621 = vsub.s32 %v1618, %v1620
        %v1622 = vrot.slane %v1614, %v1621
        %v1624 = vunpack.c.l.s4 1983009808
        %v1625 = vunpack.c.0.s8 %v1624
        %v1626 = vlaneseq
        %v1627 = vshrl.u32 %v1626, 7
        %v1628 = vsub.s32 %v1625, %v1627
        %v1629 = vrot.slane %v1615, %v1628
        %v1630 = vcombine.low %v1622, %v1629
        %v1631 = vcombine.low %v1215, %v1236
        %v1632 = vcombine.low %v1257, %v1278
        %v1634 = vunpack.c.l.s4 1983009808
        %v1635 = vunpack.c.0.s8 %v1634
        %v1636 = vlaneseq
        %v1637 = vshrl.u32 %v1636, 7
        %v1638 = vsub.s32 %v1635, %v1637
        %v1639 = vrot.slane %v1631, %v1638
        %v1641 = vunpack.c.l.s4 1983009808
        %v1642 = vunpack.c.0.s8 %v1641
        %v1643 = vlaneseq
        %v1644 = vshrl.u32 %v1643, 7
        %v1645 = vsub.s32 %v1642, %v1644
        %v1646 = vrot.slane %v1632, %v1645
        %v1647 = vcombine.low %v1639, %v1646
        %v1648 = vcombine.low %v1299, %v1320
        %v1649 = vcombine.low %v1341, %v1362
        %v1651 = vunpack.c.l.s4 1983009808
        %v1652 = vunpack.c.0.s8 %v1651
        %v1653 = vlaneseq
        %v1654 = vshrl.u32 %v1653, 7
        %v1655 = vsub.s32 %v1652, %v1654
        %v1656 = vrot.slane %v1648, %v1655
        %v1658 = vunpack.c.l.s4 1983009808
        %v1659 = vunpack.c.0.s8 %v1658
        %v1660 = vlaneseq
        %v1661 = vshrl.u32 %v1660, 7
        %v1662 = vsub.s32 %v1659, %v1661
        %v1663 = vrot.slane %v1649, %v1662
        %v1664 = vcombine.low %v1656, %v1663
        %v1665 = vcombine.low %v1383, %v1404
        %v1666 = vcombine.low %v1425, %v1446
        %v1668 = vunpack.c.l.s4 1983009808
        %v1669 = vunpack.c.0.s8 %v1668
        %v1670 = vlaneseq
        %v1671 = vshrl.u32 %v1670, 7
        %v1672 = vsub.s32 %v1669, %v1671
        %v1673 = vrot.slane %v1665, %v1672
        %v1675 = vunpack.c.l.s4 1983009808
        %v1676 = vunpack.c.0.s8 %v1675
        %v1677 = vlaneseq
        %v1678 = vshrl.u32 %v1677, 7
        %v1679 = vsub.s32 %v1676, %v1678
        %v1680 = vrot.slane %v1666, %v1679
        %v1681 = vcombine.low %v1673, %v1680
        %v1682 = vcombine.low %v1467, %v1488
        %v1683 = vcombine.low %v1509, %v1530
        %v1685 = vunpack.c.l.s4 1983009808
        %v1686 = vunpack.c.0.s8 %v1685
        %v1687 = vlaneseq
        %v1688 = vshrl.u32 %v1687, 7
        %v1689 = vsub.s32 %v1686, %v1688
        %v1690 = vrot.slane %v1682, %v1689
        %v1692 = vunpack.c.l.s4 1983009808
        %v1693 = vunpack.c.0.s8 %v1692
        %v1694 = vlaneseq
        %v1695 = vshrl.u32 %v1694, 7
        %v1696 = vsub.s32 %v1693, %v1695
        %v1697 = vrot.slane %v1683, %v1696
        %v1698 = vcombine.low %v1690, %v1697
        %vm1699 = vcmask 1044484
        %v1700 = vsel %vm1699, %v1579, %v1579
        %vm1701 = vcmask 1046534
        %v1702 = vsel %vm1701, %v1579, %v1700
        %v1703 = vrot.slane %v1647, 7
        %vm1704 = vcmask 1041409
        %v1705 = vsel %vm1704, %v1703, %v1702
        %vm1706 = vcmask 1043459
        %v1707 = vsel %vm1706, %v1703, %v1705
        %vm1708 = vcmask 1045509
        %v1709 = vsel %vm1708, %v1703, %v1707
        %vm1710 = vcmask 1047559
        %v1711 = vsel %vm1710, %v1703, %v1709
        %v1712 = vsel %vm1699, %v1596, %v1596
        %v1713 = vsel %vm1701, %v1596, %v1712
        %v1714 = vrot.slane %v1664, 7
        %v1715 = vsel %vm1704, %v1714, %v1713
        %v1716 = vsel %vm1706, %v1714, %v1715
        %v1717 = vsel %vm1708, %v1714, %v1716
        %v1718 = vsel %vm1710, %v1714, %v1717
        %v1719 = vsel %vm1699, %v1613, %v1613
        %v1720 = vsel %vm1701, %v1613, %v1719
        %v1721 = vrot.slane %v1681, 7
        %v1722 = vsel %vm1704, %v1721, %v1720
        %v1723 = vsel %vm1706, %v1721, %v1722
        %v1724 = vsel %vm1708, %v1721, %v1723
        %v1725 = vsel %vm1710, %v1721, %v1724
        %v1726 = vsel %vm1699, %v1630, %v1630
        %v1727 = vsel %vm1701, %v1630, %v1726
        %v1728 = vrot.slane %v1698, 7
        %v1729 = vsel %vm1704, %v1728, %v1727
        %v1730 = vsel %vm1706, %v1728, %v1729
        %v1731 = vsel %vm1708, %v1728, %v1730
        %v1732 = vsel %vm1710, %v1728, %v1731
        %v1737 = vadd.f32 %v343, %v1711
        %v1738 = vadd.f32 %v344, %v1718
        %v1739 = vadd.f32 %v345, %v1725
        %v1740 = vadd.f32 %v346, %v1732
        %1741 = vst [vmem:[#allocation2] sm:$0xff] %v1737
        %1742 = vst [vmem:[#allocation2 + $0x8] sm:$0xff] %v1738
        %1743 = vst [vmem:[#allocation2 + $0x10] sm:$0xff] %v1739
        %1744 = vst [vmem:[#allocation2 + $0x18] sm:$0xff] %v1740
        %p1745 = scmp.eq.s32.totalorder %s27, 1
        // Predicated region
        $region65: #{tpu_custom_call.1} parent=39 // pred_check
          %p1746 = pneg %p1745
        $region66: #{tpu_custom_call.1} parent=39 // pred_check_branch
          %1748 = sbr.rel (%p1746) target = $region68
        $region67: #{tpu_custom_call.1} parent=39 // pred_region
          %v1749 = vld [vmem:[#allocation2] sm:$0xff]
          %v1750 = vld [vmem:[#allocation2 + $0x8] sm:$0xff]
          %v1751 = vld [vmem:[#allocation2 + $0x10] sm:$0xff]
          %v1752 = vld [vmem:[#allocation2 + $0x18] sm:$0xff]
          %v1753 = vmul.f32 %v1749, 0.00390625
          %v1754 = vmul.f32 %v1750, 0.00390625
          %v1755 = vmul.f32 %v1751, 0.00390625
          %v1756 = vmul.f32 %v1752, 0.00390625
          %v1757 = vld [vmem:[#allocation6] sm:$0xff]
          %v1758 = vld [vmem:[#allocation6 + $0x8] sm:$0xff]
          %v1759 = vld [vmem:[#allocation6 + $0x10] sm:$0xff]
          %v1760 = vld [vmem:[#allocation6 + $0x18] sm:$0xff]
          %v1761 = vld [vmem:[#allocation6 + $0x20] sm:$0xff]
          %v1762 = vld [vmem:[#allocation6 + $0x28] sm:$0xff]
          %v1763 = vld [vmem:[#allocation6 + $0x30] sm:$0xff]
          %v1764 = vld [vmem:[#allocation6 + $0x38] sm:$0xff]
          %v1765 = vld [vmem:[#allocation6 + $0x40] sm:$0xff]
          %v1766 = vld [vmem:[#allocation6 + $0x48] sm:$0xff]
          %v1767 = vld [vmem:[#allocation6 + $0x50] sm:$0xff]
          %v1768 = vld [vmem:[#allocation6 + $0x58] sm:$0xff]
          %v1769 = vld [vmem:[#allocation6 + $0x60] sm:$0xff]
          %v1770 = vld [vmem:[#allocation6 + $0x68] sm:$0xff]
          %v1771 = vld [vmem:[#allocation6 + $0x70] sm:$0xff]
          %v1772 = vld [vmem:[#allocation6 + $0x78] sm:$0xff]
          %v1773 = vld [vmem:[#allocation6 + $0x80] sm:$0xff]
          %v1774 = vld [vmem:[#allocation6 + $0x88] sm:$0xff]
          %v1775 = vld [vmem:[#allocation6 + $0x90] sm:$0xff]
          %v1776 = vld [vmem:[#allocation6 + $0x98] sm:$0xff]
          %v1777 = vld [vmem:[#allocation6 + $0xa0] sm:$0xff]
          %v1778 = vld [vmem:[#allocation6 + $0xa8] sm:$0xff]
          %v1779 = vld [vmem:[#allocation6 + $0xb0] sm:$0xff]
          %v1780 = vld [vmem:[#allocation6 + $0xb8] sm:$0xff]
          %v1781 = vld [vmem:[#allocation6 + $0xc0] sm:$0xff]
          %v1782 = vld [vmem:[#allocation6 + $0xc8] sm:$0xff]
          %v1783 = vld [vmem:[#allocation6 + $0xd0] sm:$0xff]
          %v1784 = vld [vmem:[#allocation6 + $0xd8] sm:$0xff]
          %v1785 = vld [vmem:[#allocation6 + $0xe0] sm:$0xff]
          %v1786 = vld [vmem:[#allocation6 + $0xe8] sm:$0xff]
          %v1787 = vld [vmem:[#allocation6 + $0xf0] sm:$0xff]
          %v1788 = vld [vmem:[#allocation6 + $0xf8] sm:$0xff]
          %v1789 = vld [vmem:[#allocation6 + $0x100] sm:$0xff]
          %v1790 = vld [vmem:[#allocation6 + $0x108] sm:$0xff]
          %v1791 = vld [vmem:[#allocation6 + $0x110] sm:$0xff]
          %v1792 = vld [vmem:[#allocation6 + $0x118] sm:$0xff]
          %v1793 = vld [vmem:[#allocation6 + $0x120] sm:$0xff]
          %v1794 = vld [vmem:[#allocation6 + $0x128] sm:$0xff]
          %v1795 = vld [vmem:[#allocation6 + $0x130] sm:$0xff]
          %v1796 = vld [vmem:[#allocation6 + $0x138] sm:$0xff]
          %v1797 = vld [vmem:[#allocation6 + $0x140] sm:$0xff]
          %v1798 = vld [vmem:[#allocation6 + $0x148] sm:$0xff]
          %v1799 = vld [vmem:[#allocation6 + $0x150] sm:$0xff]
          %v1800 = vld [vmem:[#allocation6 + $0x158] sm:$0xff]
          %v1801 = vld [vmem:[#allocation6 + $0x160] sm:$0xff]
          %v1802 = vld [vmem:[#allocation6 + $0x168] sm:$0xff]
          %v1803 = vld [vmem:[#allocation6 + $0x170] sm:$0xff]
          %v1804 = vld [vmem:[#allocation6 + $0x178] sm:$0xff]
          %v1805 = vld [vmem:[#allocation6 + $0x180] sm:$0xff]
          %v1806 = vld [vmem:[#allocation6 + $0x188] sm:$0xff]
          %v1807 = vld [vmem:[#allocation6 + $0x190] sm:$0xff]
          %v1808 = vld [vmem:[#allocation6 + $0x198] sm:$0xff]
          %v1809 = vld [vmem:[#allocation6 + $0x1a0] sm:$0xff]
          %v1810 = vld [vmem:[#allocation6 + $0x1a8] sm:$0xff]
          %v1811 = vld [vmem:[#allocation6 + $0x1b0] sm:$0xff]
          %v1812 = vld [vmem:[#allocation6 + $0x1b8] sm:$0xff]
          %v1813 = vld [vmem:[#allocation6 + $0x1c0] sm:$0xff]
          %v1814 = vld [vmem:[#allocation6 + $0x1c8] sm:$0xff]
          %v1815 = vld [vmem:[#allocation6 + $0x1d0] sm:$0xff]
          %v1816 = vld [vmem:[#allocation6 + $0x1d8] sm:$0xff]
          %v1817 = vld [vmem:[#allocation6 + $0x1e0] sm:$0xff]
          %v1818 = vld [vmem:[#allocation6 + $0x1e8] sm:$0xff]
          %v1819 = vld [vmem:[#allocation6 + $0x1f0] sm:$0xff]
          %v1820 = vld [vmem:[#allocation6 + $0x1f8] sm:$0xff]
          %v1821 = vld [vmem:[#allocation6 + $0x200] sm:$0xff]
          %v1822 = vld [vmem:[#allocation6 + $0x208] sm:$0xff]
          %v1823 = vld [vmem:[#allocation6 + $0x210] sm:$0xff]
          %v1824 = vld [vmem:[#allocation6 + $0x218] sm:$0xff]
          %v1825 = vld [vmem:[#allocation6 + $0x220] sm:$0xff]
          %v1826 = vld [vmem:[#allocation6 + $0x228] sm:$0xff]
          %v1827 = vld [vmem:[#allocation6 + $0x230] sm:$0xff]
          %v1828 = vld [vmem:[#allocation6 + $0x238] sm:$0xff]
          %v1829 = vld [vmem:[#allocation6 + $0x240] sm:$0xff]
          %v1830 = vld [vmem:[#allocation6 + $0x248] sm:$0xff]
          %v1831 = vld [vmem:[#allocation6 + $0x250] sm:$0xff]
          %v1832 = vld [vmem:[#allocation6 + $0x258] sm:$0xff]
          %v1833 = vld [vmem:[#allocation6 + $0x260] sm:$0xff]
          %v1834 = vld [vmem:[#allocation6 + $0x268] sm:$0xff]
          %v1835 = vld [vmem:[#allocation6 + $0x270] sm:$0xff]
          %v1836 = vld [vmem:[#allocation6 + $0x278] sm:$0xff]
          %v1837 = vld [vmem:[#allocation6 + $0x280] sm:$0xff]
          %v1838 = vld [vmem:[#allocation6 + $0x288] sm:$0xff]
          %v1839 = vld [vmem:[#allocation6 + $0x290] sm:$0xff]
          %v1840 = vld [vmem:[#allocation6 + $0x298] sm:$0xff]
          %v1841 = vld [vmem:[#allocation6 + $0x2a0] sm:$0xff]
          %v1842 = vld [vmem:[#allocation6 + $0x2a8] sm:$0xff]
          %v1843 = vld [vmem:[#allocation6 + $0x2b0] sm:$0xff]
          %v1844 = vld [vmem:[#allocation6 + $0x2b8] sm:$0xff]
          %v1845 = vld [vmem:[#allocation6 + $0x2c0] sm:$0xff]
          %v1846 = vld [vmem:[#allocation6 + $0x2c8] sm:$0xff]
          %v1847 = vld [vmem:[#allocation6 + $0x2d0] sm:$0xff]
          %v1848 = vld [vmem:[#allocation6 + $0x2d8] sm:$0xff]
          %v1849 = vld [vmem:[#allocation6 + $0x2e0] sm:$0xff]
          %v1850 = vld [vmem:[#allocation6 + $0x2e8] sm:$0xff]
          %v1851 = vld [vmem:[#allocation6 + $0x2f0] sm:$0xff]
          %v1852 = vld [vmem:[#allocation6 + $0x2f8] sm:$0xff]
          %v1853 = vld [vmem:[#allocation6 + $0x300] sm:$0xff]
          %v1854 = vld [vmem:[#allocation6 + $0x308] sm:$0xff]
          %v1855 = vld [vmem:[#allocation6 + $0x310] sm:$0xff]
          %v1856 = vld [vmem:[#allocation6 + $0x318] sm:$0xff]
          %v1857 = vld [vmem:[#allocation6 + $0x320] sm:$0xff]
          %v1858 = vld [vmem:[#allocation6 + $0x328] sm:$0xff]
          %v1859 = vld [vmem:[#allocation6 + $0x330] sm:$0xff]
          %v1860 = vld [vmem:[#allocation6 + $0x338] sm:$0xff]
          %v1861 = vld [vmem:[#allocation6 + $0x340] sm:$0xff]
          %v1862 = vld [vmem:[#allocation6 + $0x348] sm:$0xff]
          %v1863 = vld [vmem:[#allocation6 + $0x350] sm:$0xff]
          %v1864 = vld [vmem:[#allocation6 + $0x358] sm:$0xff]
          %v1865 = vld [vmem:[#allocation6 + $0x360] sm:$0xff]
          %v1866 = vld [vmem:[#allocation6 + $0x368] sm:$0xff]
          %v1867 = vld [vmem:[#allocation6 + $0x370] sm:$0xff]
          %v1868 = vld [vmem:[#allocation6 + $0x378] sm:$0xff]
          %v1869 = vld [vmem:[#allocation6 + $0x380] sm:$0xff]
          %v1870 = vld [vmem:[#allocation6 + $0x388] sm:$0xff]
          %v1871 = vld [vmem:[#allocation6 + $0x390] sm:$0xff]
          %v1872 = vld [vmem:[#allocation6 + $0x398] sm:$0xff]
          %v1873 = vld [vmem:[#allocation6 + $0x3a0] sm:$0xff]
          %v1874 = vld [vmem:[#allocation6 + $0x3a8] sm:$0xff]
          %v1875 = vld [vmem:[#allocation6 + $0x3b0] sm:$0xff]
          %v1876 = vld [vmem:[#allocation6 + $0x3b8] sm:$0xff]
          %v1877 = vld [vmem:[#allocation6 + $0x3c0] sm:$0xff]
          %v1878 = vld [vmem:[#allocation6 + $0x3c8] sm:$0xff]
          %v1879 = vld [vmem:[#allocation6 + $0x3d0] sm:$0xff]
          %v1880 = vld [vmem:[#allocation6 + $0x3d8] sm:$0xff]
          %v1881 = vld [vmem:[#allocation6 + $0x3e0] sm:$0xff]
          %v1882 = vld [vmem:[#allocation6 + $0x3e8] sm:$0xff]
          %v1883 = vld [vmem:[#allocation6 + $0x3f0] sm:$0xff]
          %v1884 = vld [vmem:[#allocation6 + $0x3f8] sm:$0xff]
          %v1885 = vld [vmem:[#allocation6 + $0x400] sm:$0xff]
          %v1886 = vld [vmem:[#allocation6 + $0x408] sm:$0xff]
          %v1887 = vld [vmem:[#allocation6 + $0x410] sm:$0xff]
          %v1888 = vld [vmem:[#allocation6 + $0x418] sm:$0xff]
          %v1889 = vld [vmem:[#allocation6 + $0x420] sm:$0xff]
          %v1890 = vld [vmem:[#allocation6 + $0x428] sm:$0xff]
          %v1891 = vld [vmem:[#allocation6 + $0x430] sm:$0xff]
          %v1892 = vld [vmem:[#allocation6 + $0x438] sm:$0xff]
          %v1893 = vld [vmem:[#allocation6 + $0x440] sm:$0xff]
          %v1894 = vld [vmem:[#allocation6 + $0x448] sm:$0xff]
          %v1895 = vld [vmem:[#allocation6 + $0x450] sm:$0xff]
          %v1896 = vld [vmem:[#allocation6 + $0x458] sm:$0xff]
          %v1897 = vld [vmem:[#allocation6 + $0x460] sm:$0xff]
          %v1898 = vld [vmem:[#allocation6 + $0x468] sm:$0xff]
          %v1899 = vld [vmem:[#allocation6 + $0x470] sm:$0xff]
          %v1900 = vld [vmem:[#allocation6 + $0x478] sm:$0xff]
          %v1901 = vld [vmem:[#allocation6 + $0x480] sm:$0xff]
          %v1902 = vld [vmem:[#allocation6 + $0x488] sm:$0xff]
          %v1903 = vld [vmem:[#allocation6 + $0x490] sm:$0xff]
          %v1904 = vld [vmem:[#allocation6 + $0x498] sm:$0xff]
          %v1905 = vld [vmem:[#allocation6 + $0x4a0] sm:$0xff]
          %v1906 = vld [vmem:[#allocation6 + $0x4a8] sm:$0xff]
          %v1907 = vld [vmem:[#allocation6 + $0x4b0] sm:$0xff]
          %v1908 = vld [vmem:[#allocation6 + $0x4b8] sm:$0xff]
          %v1909 = vld [vmem:[#allocation6 + $0x4c0] sm:$0xff]
          %v1910 = vld [vmem:[#allocation6 + $0x4c8] sm:$0xff]
          %v1911 = vld [vmem:[#allocation6 + $0x4d0] sm:$0xff]
          %v1912 = vld [vmem:[#allocation6 + $0x4d8] sm:$0xff]
          %v1913 = vld [vmem:[#allocation6 + $0x4e0] sm:$0xff]
          %v1914 = vld [vmem:[#allocation6 + $0x4e8] sm:$0xff]
          %v1915 = vld [vmem:[#allocation6 + $0x4f0] sm:$0xff]
          %v1916 = vld [vmem:[#allocation6 + $0x4f8] sm:$0xff]
          %v1917 = vld [vmem:[#allocation6 + $0x500] sm:$0xff]
          %v1918 = vld [vmem:[#allocation6 + $0x508] sm:$0xff]
          %v1919 = vld [vmem:[#allocation6 + $0x510] sm:$0xff]
          %v1920 = vld [vmem:[#allocation6 + $0x518] sm:$0xff]
          %v1921 = vld [vmem:[#allocation6 + $0x520] sm:$0xff]
          %v1922 = vld [vmem:[#allocation6 + $0x528] sm:$0xff]
          %v1923 = vld [vmem:[#allocation6 + $0x530] sm:$0xff]
          %v1924 = vld [vmem:[#allocation6 + $0x538] sm:$0xff]
          %v1925 = vld [vmem:[#allocation6 + $0x540] sm:$0xff]
          %v1926 = vld [vmem:[#allocation6 + $0x548] sm:$0xff]
          %v1927 = vld [vmem:[#allocation6 + $0x550] sm:$0xff]
          %v1928 = vld [vmem:[#allocation6 + $0x558] sm:$0xff]
          %v1929 = vld [vmem:[#allocation6 + $0x560] sm:$0xff]
          %v1930 = vld [vmem:[#allocation6 + $0x568] sm:$0xff]
          %v1931 = vld [vmem:[#allocation6 + $0x570] sm:$0xff]
          %v1932 = vld [vmem:[#allocation6 + $0x578] sm:$0xff]
          %v1933 = vld [vmem:[#allocation6 + $0x580] sm:$0xff]
          %v1934 = vld [vmem:[#allocation6 + $0x588] sm:$0xff]
          %v1935 = vld [vmem:[#allocation6 + $0x590] sm:$0xff]
          %v1936 = vld [vmem:[#allocation6 + $0x598] sm:$0xff]
          %v1937 = vld [vmem:[#allocation6 + $0x5a0] sm:$0xff]
          %v1938 = vld [vmem:[#allocation6 + $0x5a8] sm:$0xff]
          %v1939 = vld [vmem:[#allocation6 + $0x5b0] sm:$0xff]
          %v1940 = vld [vmem:[#allocation6 + $0x5b8] sm:$0xff]
          %v1941 = vld [vmem:[#allocation6 + $0x5c0] sm:$0xff]
          %v1942 = vld [vmem:[#allocation6 + $0x5c8] sm:$0xff]
          %v1943 = vld [vmem:[#allocation6 + $0x5d0] sm:$0xff]
          %v1944 = vld [vmem:[#allocation6 + $0x5d8] sm:$0xff]
          %v1945 = vld [vmem:[#allocation6 + $0x5e0] sm:$0xff]
          %v1946 = vld [vmem:[#allocation6 + $0x5e8] sm:$0xff]
          %v1947 = vld [vmem:[#allocation6 + $0x5f0] sm:$0xff]
          %v1948 = vld [vmem:[#allocation6 + $0x5f8] sm:$0xff]
          %v1949 = vld [vmem:[#allocation6 + $0x600] sm:$0xff]
          %v1950 = vld [vmem:[#allocation6 + $0x608] sm:$0xff]
          %v1951 = vld [vmem:[#allocation6 + $0x610] sm:$0xff]
          %v1952 = vld [vmem:[#allocation6 + $0x618] sm:$0xff]
          %v1953 = vld [vmem:[#allocation6 + $0x620] sm:$0xff]
          %v1954 = vld [vmem:[#allocation6 + $0x628] sm:$0xff]
          %v1955 = vld [vmem:[#allocation6 + $0x630] sm:$0xff]
          %v1956 = vld [vmem:[#allocation6 + $0x638] sm:$0xff]
          %v1957 = vld [vmem:[#allocation6 + $0x640] sm:$0xff]
          %v1958 = vld [vmem:[#allocation6 + $0x648] sm:$0xff]
          %v1959 = vld [vmem:[#allocation6 + $0x650] sm:$0xff]
          %v1960 = vld [vmem:[#allocation6 + $0x658] sm:$0xff]
          %v1961 = vld [vmem:[#allocation6 + $0x660] sm:$0xff]
          %v1962 = vld [vmem:[#allocation6 + $0x668] sm:$0xff]
          %v1963 = vld [vmem:[#allocation6 + $0x670] sm:$0xff]
          %v1964 = vld [vmem:[#allocation6 + $0x678] sm:$0xff]
          %v1965 = vld [vmem:[#allocation6 + $0x680] sm:$0xff]
          %v1966 = vld [vmem:[#allocation6 + $0x688] sm:$0xff]
          %v1967 = vld [vmem:[#allocation6 + $0x690] sm:$0xff]
          %v1968 = vld [vmem:[#allocation6 + $0x698] sm:$0xff]
          %v1969 = vld [vmem:[#allocation6 + $0x6a0] sm:$0xff]
          %v1970 = vld [vmem:[#allocation6 + $0x6a8] sm:$0xff]
          %v1971 = vld [vmem:[#allocation6 + $0x6b0] sm:$0xff]
          %v1972 = vld [vmem:[#allocation6 + $0x6b8] sm:$0xff]
          %v1973 = vld [vmem:[#allocation6 + $0x6c0] sm:$0xff]
          %v1974 = vld [vmem:[#allocation6 + $0x6c8] sm:$0xff]
          %v1975 = vld [vmem:[#allocation6 + $0x6d0] sm:$0xff]
          %v1976 = vld [vmem:[#allocation6 + $0x6d8] sm:$0xff]
          %v1977 = vld [vmem:[#allocation6 + $0x6e0] sm:$0xff]
          %v1978 = vld [vmem:[#allocation6 + $0x6e8] sm:$0xff]
          %v1979 = vld [vmem:[#allocation6 + $0x6f0] sm:$0xff]
          %v1980 = vld [vmem:[#allocation6 + $0x6f8] sm:$0xff]
          %v1981 = vld [vmem:[#allocation6 + $0x700] sm:$0xff]
          %v1982 = vld [vmem:[#allocation6 + $0x708] sm:$0xff]
          %v1983 = vld [vmem:[#allocation6 + $0x710] sm:$0xff]
          %v1984 = vld [vmem:[#allocation6 + $0x718] sm:$0xff]
          %v1985 = vld [vmem:[#allocation6 + $0x720] sm:$0xff]
          %v1986 = vld [vmem:[#allocation6 + $0x728] sm:$0xff]
          %v1987 = vld [vmem:[#allocation6 + $0x730] sm:$0xff]
          %v1988 = vld [vmem:[#allocation6 + $0x738] sm:$0xff]
          %v1989 = vld [vmem:[#allocation6 + $0x740] sm:$0xff]
          %v1990 = vld [vmem:[#allocation6 + $0x748] sm:$0xff]
          %v1991 = vld [vmem:[#allocation6 + $0x750] sm:$0xff]
          %v1992 = vld [vmem:[#allocation6 + $0x758] sm:$0xff]
          %v1993 = vld [vmem:[#allocation6 + $0x760] sm:$0xff]
          %v1994 = vld [vmem:[#allocation6 + $0x768] sm:$0xff]
          %v1995 = vld [vmem:[#allocation6 + $0x770] sm:$0xff]
          %v1996 = vld [vmem:[#allocation6 + $0x778] sm:$0xff]
          %v1997 = vld [vmem:[#allocation6 + $0x780] sm:$0xff]
          %v1998 = vld [vmem:[#allocation6 + $0x788] sm:$0xff]
          %v1999 = vld [vmem:[#allocation6 + $0x790] sm:$0xff]
          %v2000 = vld [vmem:[#allocation6 + $0x798] sm:$0xff]
          %v2001 = vld [vmem:[#allocation6 + $0x7a0] sm:$0xff]
          %v2002 = vld [vmem:[#allocation6 + $0x7a8] sm:$0xff]
          %v2003 = vld [vmem:[#allocation6 + $0x7b0] sm:$0xff]
          %v2004 = vld [vmem:[#allocation6 + $0x7b8] sm:$0xff]
          %v2005 = vld [vmem:[#allocation6 + $0x7c0] sm:$0xff]
          %v2006 = vld [vmem:[#allocation6 + $0x7c8] sm:$0xff]
          %v2007 = vld [vmem:[#allocation6 + $0x7d0] sm:$0xff]
          %v2008 = vld [vmem:[#allocation6 + $0x7d8] sm:$0xff]
          %v2009 = vld [vmem:[#allocation6 + $0x7e0] sm:$0xff]
          %v2010 = vld [vmem:[#allocation6 + $0x7e8] sm:$0xff]
          %v2011 = vld [vmem:[#allocation6 + $0x7f0] sm:$0xff]
          %v2012 = vld [vmem:[#allocation6 + $0x7f8] sm:$0xff]
          %v2013 = vld [vmem:[#allocation6 + $0x800] sm:$0xff]
          %v2014 = vld [vmem:[#allocation6 + $0x808] sm:$0xff]
          %v2015 = vld [vmem:[#allocation6 + $0x810] sm:$0xff]
          %v2016 = vld [vmem:[#allocation6 + $0x818] sm:$0xff]
          %v2017 = vld [vmem:[#allocation6 + $0x820] sm:$0xff]
          %v2018 = vld [vmem:[#allocation6 + $0x828] sm:$0xff]
          %v2019 = vld [vmem:[#allocation6 + $0x830] sm:$0xff]
          %v2020 = vld [vmem:[#allocation6 + $0x838] sm:$0xff]
          %v2021 = vld [vmem:[#allocation6 + $0x840] sm:$0xff]
          %v2022 = vld [vmem:[#allocation6 + $0x848] sm:$0xff]
          %v2023 = vld [vmem:[#allocation6 + $0x850] sm:$0xff]
          %v2024 = vld [vmem:[#allocation6 + $0x858] sm:$0xff]
          %v2025 = vld [vmem:[#allocation6 + $0x860] sm:$0xff]
          %v2026 = vld [vmem:[#allocation6 + $0x868] sm:$0xff]
          %v2027 = vld [vmem:[#allocation6 + $0x870] sm:$0xff]
          %v2028 = vld [vmem:[#allocation6 + $0x878] sm:$0xff]
          %v2029 = vld [vmem:[#allocation6 + $0x880] sm:$0xff]
          %v2030 = vld [vmem:[#allocation6 + $0x888] sm:$0xff]
          %v2031 = vld [vmem:[#allocation6 + $0x890] sm:$0xff]
          %v2032 = vld [vmem:[#allocation6 + $0x898] sm:$0xff]
          %v2033 = vld [vmem:[#allocation6 + $0x8a0] sm:$0xff]
          %v2034 = vld [vmem:[#allocation6 + $0x8a8] sm:$0xff]
          %v2035 = vld [vmem:[#allocation6 + $0x8b0] sm:$0xff]
          %v2036 = vld [vmem:[#allocation6 + $0x8b8] sm:$0xff]
          %v2037 = vld [vmem:[#allocation6 + $0x8c0] sm:$0xff]
          %v2038 = vld [vmem:[#allocation6 + $0x8c8] sm:$0xff]
          %v2039 = vld [vmem:[#allocation6 + $0x8d0] sm:$0xff]
          %v2040 = vld [vmem:[#allocation6 + $0x8d8] sm:$0xff]
          %v2041 = vld [vmem:[#allocation6 + $0x8e0] sm:$0xff]
          %v2042 = vld [vmem:[#allocation6 + $0x8e8] sm:$0xff]
          %v2043 = vld [vmem:[#allocation6 + $0x8f0] sm:$0xff]
          %v2044 = vld [vmem:[#allocation6 + $0x8f8] sm:$0xff]
          %v2045 = vld [vmem:[#allocation6 + $0x900] sm:$0xff]
          %v2046 = vld [vmem:[#allocation6 + $0x908] sm:$0xff]
          %v2047 = vld [vmem:[#allocation6 + $0x910] sm:$0xff]
          %v2048 = vld [vmem:[#allocation6 + $0x918] sm:$0xff]
          %v2049 = vld [vmem:[#allocation6 + $0x920] sm:$0xff]
          %v2050 = vld [vmem:[#allocation6 + $0x928] sm:$0xff]
          %v2051 = vld [vmem:[#allocation6 + $0x930] sm:$0xff]
          %v2052 = vld [vmem:[#allocation6 + $0x938] sm:$0xff]
          %v2053 = vld [vmem:[#allocation6 + $0x940] sm:$0xff]
          %v2054 = vld [vmem:[#allocation6 + $0x948] sm:$0xff]
          %v2055 = vld [vmem:[#allocation6 + $0x950] sm:$0xff]
          %v2056 = vld [vmem:[#allocation6 + $0x958] sm:$0xff]
          %v2057 = vld [vmem:[#allocation6 + $0x960] sm:$0xff]
          %v2058 = vld [vmem:[#allocation6 + $0x968] sm:$0xff]
          %v2059 = vld [vmem:[#allocation6 + $0x970] sm:$0xff]
          %v2060 = vld [vmem:[#allocation6 + $0x978] sm:$0xff]
          %v2061 = vld [vmem:[#allocation6 + $0x980] sm:$0xff]
          %v2062 = vld [vmem:[#allocation6 + $0x988] sm:$0xff]
          %v2063 = vld [vmem:[#allocation6 + $0x990] sm:$0xff]
          %v2064 = vld [vmem:[#allocation6 + $0x998] sm:$0xff]
          %v2065 = vld [vmem:[#allocation6 + $0x9a0] sm:$0xff]
          %v2066 = vld [vmem:[#allocation6 + $0x9a8] sm:$0xff]
          %v2067 = vld [vmem:[#allocation6 + $0x9b0] sm:$0xff]
          %v2068 = vld [vmem:[#allocation6 + $0x9b8] sm:$0xff]
          %v2069 = vld [vmem:[#allocation6 + $0x9c0] sm:$0xff]
          %v2070 = vld [vmem:[#allocation6 + $0x9c8] sm:$0xff]
          %v2071 = vld [vmem:[#allocation6 + $0x9d0] sm:$0xff]
          %v2072 = vld [vmem:[#allocation6 + $0x9d8] sm:$0xff]
          %v2073 = vld [vmem:[#allocation6 + $0x9e0] sm:$0xff]
          %v2074 = vld [vmem:[#allocation6 + $0x9e8] sm:$0xff]
          %v2075 = vld [vmem:[#allocation6 + $0x9f0] sm:$0xff]
          %v2076 = vld [vmem:[#allocation6 + $0x9f8] sm:$0xff]
          %v2077 = vld [vmem:[#allocation6 + $0xa00] sm:$0xff]
          %v2078 = vld [vmem:[#allocation6 + $0xa08] sm:$0xff]
          %v2079 = vld [vmem:[#allocation6 + $0xa10] sm:$0xff]
          %v2080 = vld [vmem:[#allocation6 + $0xa18] sm:$0xff]
          %v2081 = vld [vmem:[#allocation6 + $0xa20] sm:$0xff]
          %v2082 = vld [vmem:[#allocation6 + $0xa28] sm:$0xff]
          %v2083 = vld [vmem:[#allocation6 + $0xa30] sm:$0xff]
          %v2084 = vld [vmem:[#allocation6 + $0xa38] sm:$0xff]
          %v2085 = vld [vmem:[#allocation6 + $0xa40] sm:$0xff]
          %v2086 = vld [vmem:[#allocation6 + $0xa48] sm:$0xff]
          %v2087 = vld [vmem:[#allocation6 + $0xa50] sm:$0xff]
          %v2088 = vld [vmem:[#allocation6 + $0xa58] sm:$0xff]
          %v2089 = vld [vmem:[#allocation6 + $0xa60] sm:$0xff]
          %v2090 = vld [vmem:[#allocation6 + $0xa68] sm:$0xff]
          %v2091 = vld [vmem:[#allocation6 + $0xa70] sm:$0xff]
          %v2092 = vld [vmem:[#allocation6 + $0xa78] sm:$0xff]
          %v2093 = vld [vmem:[#allocation6 + $0xa80] sm:$0xff]
          %v2094 = vld [vmem:[#allocation6 + $0xa88] sm:$0xff]
          %v2095 = vld [vmem:[#allocation6 + $0xa90] sm:$0xff]
          %v2096 = vld [vmem:[#allocation6 + $0xa98] sm:$0xff]
          %v2097 = vld [vmem:[#allocation6 + $0xaa0] sm:$0xff]
          %v2098 = vld [vmem:[#allocation6 + $0xaa8] sm:$0xff]
          %v2099 = vld [vmem:[#allocation6 + $0xab0] sm:$0xff]
          %v2100 = vld [vmem:[#allocation6 + $0xab8] sm:$0xff]
          %v2101 = vld [vmem:[#allocation6 + $0xac0] sm:$0xff]
          %v2102 = vld [vmem:[#allocation6 + $0xac8] sm:$0xff]
          %v2103 = vld [vmem:[#allocation6 + $0xad0] sm:$0xff]
          %v2104 = vld [vmem:[#allocation6 + $0xad8] sm:$0xff]
          %v2105 = vld [vmem:[#allocation6 + $0xae0] sm:$0xff]
          %v2106 = vld [vmem:[#allocation6 + $0xae8] sm:$0xff]
          %v2107 = vld [vmem:[#allocation6 + $0xaf0] sm:$0xff]
          %v2108 = vld [vmem:[#allocation6 + $0xaf8] sm:$0xff]
          %v2109 = vld [vmem:[#allocation6 + $0xb00] sm:$0xff]
          %v2110 = vld [vmem:[#allocation6 + $0xb08] sm:$0xff]
          %v2111 = vld [vmem:[#allocation6 + $0xb10] sm:$0xff]
          %v2112 = vld [vmem:[#allocation6 + $0xb18] sm:$0xff]
          %v2113 = vld [vmem:[#allocation6 + $0xb20] sm:$0xff]
          %v2114 = vld [vmem:[#allocation6 + $0xb28] sm:$0xff]
          %v2115 = vld [vmem:[#allocation6 + $0xb30] sm:$0xff]
          %v2116 = vld [vmem:[#allocation6 + $0xb38] sm:$0xff]
          %v2117 = vld [vmem:[#allocation6 + $0xb40] sm:$0xff]
          %v2118 = vld [vmem:[#allocation6 + $0xb48] sm:$0xff]
          %v2119 = vld [vmem:[#allocation6 + $0xb50] sm:$0xff]
          %v2120 = vld [vmem:[#allocation6 + $0xb58] sm:$0xff]
          %v2121 = vld [vmem:[#allocation6 + $0xb60] sm:$0xff]
          %v2122 = vld [vmem:[#allocation6 + $0xb68] sm:$0xff]
          %v2123 = vld [vmem:[#allocation6 + $0xb70] sm:$0xff]
          %v2124 = vld [vmem:[#allocation6 + $0xb78] sm:$0xff]
          %v2125 = vld [vmem:[#allocation6 + $0xb80] sm:$0xff]
          %v2126 = vld [vmem:[#allocation6 + $0xb88] sm:$0xff]
          %v2127 = vld [vmem:[#allocation6 + $0xb90] sm:$0xff]
          %v2128 = vld [vmem:[#allocation6 + $0xb98] sm:$0xff]
          %v2129 = vld [vmem:[#allocation6 + $0xba0] sm:$0xff]
          %v2130 = vld [vmem:[#allocation6 + $0xba8] sm:$0xff]
          %v2131 = vld [vmem:[#allocation6 + $0xbb0] sm:$0xff]
          %v2132 = vld [vmem:[#allocation6 + $0xbb8] sm:$0xff]
          %v2133 = vld [vmem:[#allocation6 + $0xbc0] sm:$0xff]
          %v2134 = vld [vmem:[#allocation6 + $0xbc8] sm:$0xff]
          %v2135 = vld [vmem:[#allocation6 + $0xbd0] sm:$0xff]
          %v2136 = vld [vmem:[#allocation6 + $0xbd8] sm:$0xff]
          %v2137 = vld [vmem:[#allocation6 + $0xbe0] sm:$0xff]
          %v2138 = vld [vmem:[#allocation6 + $0xbe8] sm:$0xff]
          %v2139 = vld [vmem:[#allocation6 + $0xbf0] sm:$0xff]
          %v2140 = vld [vmem:[#allocation6 + $0xbf8] sm:$0xff]
          %v2141 = vld [vmem:[#allocation6 + $0xc00] sm:$0xff]
          %v2142 = vld [vmem:[#allocation6 + $0xc08] sm:$0xff]
          %v2143 = vld [vmem:[#allocation6 + $0xc10] sm:$0xff]
          %v2144 = vld [vmem:[#allocation6 + $0xc18] sm:$0xff]
          %v2145 = vld [vmem:[#allocation6 + $0xc20] sm:$0xff]
          %v2146 = vld [vmem:[#allocation6 + $0xc28] sm:$0xff]
          %v2147 = vld [vmem:[#allocation6 + $0xc30] sm:$0xff]
          %v2148 = vld [vmem:[#allocation6 + $0xc38] sm:$0xff]
          %v2149 = vld [vmem:[#allocation6 + $0xc40] sm:$0xff]
          %v2150 = vld [vmem:[#allocation6 + $0xc48] sm:$0xff]
          %v2151 = vld [vmem:[#allocation6 + $0xc50] sm:$0xff]
          %v2152 = vld [vmem:[#allocation6 + $0xc58] sm:$0xff]
          %v2153 = vld [vmem:[#allocation6 + $0xc60] sm:$0xff]
          %v2154 = vld [vmem:[#allocation6 + $0xc68] sm:$0xff]
          %v2155 = vld [vmem:[#allocation6 + $0xc70] sm:$0xff]
          %v2156 = vld [vmem:[#allocation6 + $0xc78] sm:$0xff]
          %v2157 = vld [vmem:[#allocation6 + $0xc80] sm:$0xff]
          %v2158 = vld [vmem:[#allocation6 + $0xc88] sm:$0xff]
          %v2159 = vld [vmem:[#allocation6 + $0xc90] sm:$0xff]
          %v2160 = vld [vmem:[#allocation6 + $0xc98] sm:$0xff]
          %v2161 = vld [vmem:[#allocation6 + $0xca0] sm:$0xff]
          %v2162 = vld [vmem:[#allocation6 + $0xca8] sm:$0xff]
          %v2163 = vld [vmem:[#allocation6 + $0xcb0] sm:$0xff]
          %v2164 = vld [vmem:[#allocation6 + $0xcb8] sm:$0xff]
          %v2165 = vld [vmem:[#allocation6 + $0xcc0] sm:$0xff]
          %v2166 = vld [vmem:[#allocation6 + $0xcc8] sm:$0xff]
          %v2167 = vld [vmem:[#allocation6 + $0xcd0] sm:$0xff]
          %v2168 = vld [vmem:[#allocation6 + $0xcd8] sm:$0xff]
          %v2169 = vld [vmem:[#allocation6 + $0xce0] sm:$0xff]
          %v2170 = vld [vmem:[#allocation6 + $0xce8] sm:$0xff]
          %v2171 = vld [vmem:[#allocation6 + $0xcf0] sm:$0xff]
          %v2172 = vld [vmem:[#allocation6 + $0xcf8] sm:$0xff]
          %v2173 = vld [vmem:[#allocation6 + $0xd00] sm:$0xff]
          %v2174 = vld [vmem:[#allocation6 + $0xd08] sm:$0xff]
          %v2175 = vld [vmem:[#allocation6 + $0xd10] sm:$0xff]
          %v2176 = vld [vmem:[#allocation6 + $0xd18] sm:$0xff]
          %v2177 = vld [vmem:[#allocation6 + $0xd20] sm:$0xff]
          %v2178 = vld [vmem:[#allocation6 + $0xd28] sm:$0xff]
          %v2179 = vld [vmem:[#allocation6 + $0xd30] sm:$0xff]
          %v2180 = vld [vmem:[#allocation6 + $0xd38] sm:$0xff]
          %v2181 = vld [vmem:[#allocation6 + $0xd40] sm:$0xff]
          %v2182 = vld [vmem:[#allocation6 + $0xd48] sm:$0xff]
          %v2183 = vld [vmem:[#allocation6 + $0xd50] sm:$0xff]
          %v2184 = vld [vmem:[#allocation6 + $0xd58] sm:$0xff]
          %v2185 = vld [vmem:[#allocation6 + $0xd60] sm:$0xff]
          %v2186 = vld [vmem:[#allocation6 + $0xd68] sm:$0xff]
          %v2187 = vld [vmem:[#allocation6 + $0xd70] sm:$0xff]
          %v2188 = vld [vmem:[#allocation6 + $0xd78] sm:$0xff]
          %v2189 = vld [vmem:[#allocation6 + $0xd80] sm:$0xff]
          %v2190 = vld [vmem:[#allocation6 + $0xd88] sm:$0xff]
          %v2191 = vld [vmem:[#allocation6 + $0xd90] sm:$0xff]
          %v2192 = vld [vmem:[#allocation6 + $0xd98] sm:$0xff]
          %v2193 = vld [vmem:[#allocation6 + $0xda0] sm:$0xff]
          %v2194 = vld [vmem:[#allocation6 + $0xda8] sm:$0xff]
          %v2195 = vld [vmem:[#allocation6 + $0xdb0] sm:$0xff]
          %v2196 = vld [vmem:[#allocation6 + $0xdb8] sm:$0xff]
          %v2197 = vld [vmem:[#allocation6 + $0xdc0] sm:$0xff]
          %v2198 = vld [vmem:[#allocation6 + $0xdc8] sm:$0xff]
          %v2199 = vld [vmem:[#allocation6 + $0xdd0] sm:$0xff]
          %v2200 = vld [vmem:[#allocation6 + $0xdd8] sm:$0xff]
          %v2201 = vld [vmem:[#allocation6 + $0xde0] sm:$0xff]
          %v2202 = vld [vmem:[#allocation6 + $0xde8] sm:$0xff]
          %v2203 = vld [vmem:[#allocation6 + $0xdf0] sm:$0xff]
          %v2204 = vld [vmem:[#allocation6 + $0xdf8] sm:$0xff]
          %v2205 = vld [vmem:[#allocation6 + $0xe00] sm:$0xff]
          %v2206 = vld [vmem:[#allocation6 + $0xe08] sm:$0xff]
          %v2207 = vld [vmem:[#allocation6 + $0xe10] sm:$0xff]
          %v2208 = vld [vmem:[#allocation6 + $0xe18] sm:$0xff]
          %v2209 = vld [vmem:[#allocation6 + $0xe20] sm:$0xff]
          %v2210 = vld [vmem:[#allocation6 + $0xe28] sm:$0xff]
          %v2211 = vld [vmem:[#allocation6 + $0xe30] sm:$0xff]
          %v2212 = vld [vmem:[#allocation6 + $0xe38] sm:$0xff]
          %v2213 = vld [vmem:[#allocation6 + $0xe40] sm:$0xff]
          %v2214 = vld [vmem:[#allocation6 + $0xe48] sm:$0xff]
          %v2215 = vld [vmem:[#allocation6 + $0xe50] sm:$0xff]
          %v2216 = vld [vmem:[#allocation6 + $0xe58] sm:$0xff]
          %v2217 = vld [vmem:[#allocation6 + $0xe60] sm:$0xff]
          %v2218 = vld [vmem:[#allocation6 + $0xe68] sm:$0xff]
          %v2219 = vld [vmem:[#allocation6 + $0xe70] sm:$0xff]
          %v2220 = vld [vmem:[#allocation6 + $0xe78] sm:$0xff]
          %v2221 = vld [vmem:[#allocation6 + $0xe80] sm:$0xff]
          %v2222 = vld [vmem:[#allocation6 + $0xe88] sm:$0xff]
          %v2223 = vld [vmem:[#allocation6 + $0xe90] sm:$0xff]
          %v2224 = vld [vmem:[#allocation6 + $0xe98] sm:$0xff]
          %v2225 = vld [vmem:[#allocation6 + $0xea0] sm:$0xff]
          %v2226 = vld [vmem:[#allocation6 + $0xea8] sm:$0xff]
          %v2227 = vld [vmem:[#allocation6 + $0xeb0] sm:$0xff]
          %v2228 = vld [vmem:[#allocation6 + $0xeb8] sm:$0xff]
          %v2229 = vld [vmem:[#allocation6 + $0xec0] sm:$0xff]
          %v2230 = vld [vmem:[#allocation6 + $0xec8] sm:$0xff]
          %v2231 = vld [vmem:[#allocation6 + $0xed0] sm:$0xff]
          %v2232 = vld [vmem:[#allocation6 + $0xed8] sm:$0xff]
          %v2233 = vld [vmem:[#allocation6 + $0xee0] sm:$0xff]
          %v2234 = vld [vmem:[#allocation6 + $0xee8] sm:$0xff]
          %v2235 = vld [vmem:[#allocation6 + $0xef0] sm:$0xff]
          %v2236 = vld [vmem:[#allocation6 + $0xef8] sm:$0xff]
          %v2237 = vld [vmem:[#allocation6 + $0xf00] sm:$0xff]
          %v2238 = vld [vmem:[#allocation6 + $0xf08] sm:$0xff]
          %v2239 = vld [vmem:[#allocation6 + $0xf10] sm:$0xff]
          %v2240 = vld [vmem:[#allocation6 + $0xf18] sm:$0xff]
          %v2241 = vld [vmem:[#allocation6 + $0xf20] sm:$0xff]
          %v2242 = vld [vmem:[#allocation6 + $0xf28] sm:$0xff]
          %v2243 = vld [vmem:[#allocation6 + $0xf30] sm:$0xff]
          %v2244 = vld [vmem:[#allocation6 + $0xf38] sm:$0xff]
          %v2245 = vld [vmem:[#allocation6 + $0xf40] sm:$0xff]
          %v2246 = vld [vmem:[#allocation6 + $0xf48] sm:$0xff]
          %v2247 = vld [vmem:[#allocation6 + $0xf50] sm:$0xff]
          %v2248 = vld [vmem:[#allocation6 + $0xf58] sm:$0xff]
          %v2249 = vld [vmem:[#allocation6 + $0xf60] sm:$0xff]
          %v2250 = vld [vmem:[#allocation6 + $0xf68] sm:$0xff]
          %v2251 = vld [vmem:[#allocation6 + $0xf70] sm:$0xff]
          %v2252 = vld [vmem:[#allocation6 + $0xf78] sm:$0xff]
          %v2253 = vld [vmem:[#allocation6 + $0xf80] sm:$0xff]
          %v2254 = vld [vmem:[#allocation6 + $0xf88] sm:$0xff]
          %v2255 = vld [vmem:[#allocation6 + $0xf90] sm:$0xff]
          %v2256 = vld [vmem:[#allocation6 + $0xf98] sm:$0xff]
          %v2257 = vld [vmem:[#allocation6 + $0xfa0] sm:$0xff]
          %v2258 = vld [vmem:[#allocation6 + $0xfa8] sm:$0xff]
          %v2259 = vld [vmem:[#allocation6 + $0xfb0] sm:$0xff]
          %v2260 = vld [vmem:[#allocation6 + $0xfb8] sm:$0xff]
          %v2261 = vld [vmem:[#allocation6 + $0xfc0] sm:$0xff]
          %v2262 = vld [vmem:[#allocation6 + $0xfc8] sm:$0xff]
          %v2263 = vld [vmem:[#allocation6 + $0xfd0] sm:$0xff]
          %v2264 = vld [vmem:[#allocation6 + $0xfd8] sm:$0xff]
          %v2265 = vld [vmem:[#allocation6 + $0xfe0] sm:$0xff]
          %v2266 = vld [vmem:[#allocation6 + $0xfe8] sm:$0xff]
          %v2267 = vld [vmem:[#allocation6 + $0xff0] sm:$0xff]
          %v2268 = vld [vmem:[#allocation6 + $0xff8] sm:$0xff]
          %v2269 = vld [vmem:[#allocation6 + $0x1000] sm:$0xff]
          %v2270 = vld [vmem:[#allocation6 + $0x1008] sm:$0xff]
          %v2271 = vld [vmem:[#allocation6 + $0x1010] sm:$0xff]
          %v2272 = vld [vmem:[#allocation6 + $0x1018] sm:$0xff]
          %v2273 = vld [vmem:[#allocation6 + $0x1020] sm:$0xff]
          %v2274 = vld [vmem:[#allocation6 + $0x1028] sm:$0xff]
          %v2275 = vld [vmem:[#allocation6 + $0x1030] sm:$0xff]
          %v2276 = vld [vmem:[#allocation6 + $0x1038] sm:$0xff]
          %v2277 = vld [vmem:[#allocation6 + $0x1040] sm:$0xff]
          %v2278 = vld [vmem:[#allocation6 + $0x1048] sm:$0xff]
          %v2279 = vld [vmem:[#allocation6 + $0x1050] sm:$0xff]
          %v2280 = vld [vmem:[#allocation6 + $0x1058] sm:$0xff]
          %v2281 = vld [vmem:[#allocation6 + $0x1060] sm:$0xff]
          %v2282 = vld [vmem:[#allocation6 + $0x1068] sm:$0xff]
          %v2283 = vld [vmem:[#allocation6 + $0x1070] sm:$0xff]
          %v2284 = vld [vmem:[#allocation6 + $0x1078] sm:$0xff]
          %v2285 = vld [vmem:[#allocation6 + $0x1080] sm:$0xff]
          %v2286 = vld [vmem:[#allocation6 + $0x1088] sm:$0xff]
          %v2287 = vld [vmem:[#allocation6 + $0x1090] sm:$0xff]
          %v2288 = vld [vmem:[#allocation6 + $0x1098] sm:$0xff]
          %v2289 = vld [vmem:[#allocation6 + $0x10a0] sm:$0xff]
          %v2290 = vld [vmem:[#allocation6 + $0x10a8] sm:$0xff]
          %v2291 = vld [vmem:[#allocation6 + $0x10b0] sm:$0xff]
          %v2292 = vld [vmem:[#allocation6 + $0x10b8] sm:$0xff]
          %v2293 = vld [vmem:[#allocation6 + $0x10c0] sm:$0xff]
          %v2294 = vld [vmem:[#allocation6 + $0x10c8] sm:$0xff]
          %v2295 = vld [vmem:[#allocation6 + $0x10d0] sm:$0xff]
          %v2296 = vld [vmem:[#allocation6 + $0x10d8] sm:$0xff]
          %v2297 = vld [vmem:[#allocation6 + $0x10e0] sm:$0xff]
          %v2298 = vld [vmem:[#allocation6 + $0x10e8] sm:$0xff]
          %v2299 = vld [vmem:[#allocation6 + $0x10f0] sm:$0xff]
          %v2300 = vld [vmem:[#allocation6 + $0x10f8] sm:$0xff]
          %v2301 = vld [vmem:[#allocation6 + $0x1100] sm:$0xff]
          %v2302 = vld [vmem:[#allocation6 + $0x1108] sm:$0xff]
          %v2303 = vld [vmem:[#allocation6 + $0x1110] sm:$0xff]
          %v2304 = vld [vmem:[#allocation6 + $0x1118] sm:$0xff]
          %v2305 = vld [vmem:[#allocation6 + $0x1120] sm:$0xff]
          %v2306 = vld [vmem:[#allocation6 + $0x1128] sm:$0xff]
          %v2307 = vld [vmem:[#allocation6 + $0x1130] sm:$0xff]
          %v2308 = vld [vmem:[#allocation6 + $0x1138] sm:$0xff]
          %v2309 = vld [vmem:[#allocation6 + $0x1140] sm:$0xff]
          %v2310 = vld [vmem:[#allocation6 + $0x1148] sm:$0xff]
          %v2311 = vld [vmem:[#allocation6 + $0x1150] sm:$0xff]
          %v2312 = vld [vmem:[#allocation6 + $0x1158] sm:$0xff]
          %v2313 = vld [vmem:[#allocation6 + $0x1160] sm:$0xff]
          %v2314 = vld [vmem:[#allocation6 + $0x1168] sm:$0xff]
          %v2315 = vld [vmem:[#allocation6 + $0x1170] sm:$0xff]
          %v2316 = vld [vmem:[#allocation6 + $0x1178] sm:$0xff]
          %v2317 = vld [vmem:[#allocation6 + $0x1180] sm:$0xff]
          %v2318 = vld [vmem:[#allocation6 + $0x1188] sm:$0xff]
          %v2319 = vld [vmem:[#allocation6 + $0x1190] sm:$0xff]
          %v2320 = vld [vmem:[#allocation6 + $0x1198] sm:$0xff]
          %v2321 = vld [vmem:[#allocation6 + $0x11a0] sm:$0xff]
          %v2322 = vld [vmem:[#allocation6 + $0x11a8] sm:$0xff]
          %v2323 = vld [vmem:[#allocation6 + $0x11b0] sm:$0xff]
          %v2324 = vld [vmem:[#allocation6 + $0x11b8] sm:$0xff]
          %v2325 = vld [vmem:[#allocation6 + $0x11c0] sm:$0xff]
          %v2326 = vld [vmem:[#allocation6 + $0x11c8] sm:$0xff]
          %v2327 = vld [vmem:[#allocation6 + $0x11d0] sm:$0xff]
          %v2328 = vld [vmem:[#allocation6 + $0x11d8] sm:$0xff]
          %v2329 = vld [vmem:[#allocation6 + $0x11e0] sm:$0xff]
          %v2330 = vld [vmem:[#allocation6 + $0x11e8] sm:$0xff]
          %v2331 = vld [vmem:[#allocation6 + $0x11f0] sm:$0xff]
          %v2332 = vld [vmem:[#allocation6 + $0x11f8] sm:$0xff]
          %v2333 = vld [vmem:[#allocation6 + $0x1200] sm:$0xff]
          %v2334 = vld [vmem:[#allocation6 + $0x1208] sm:$0xff]
          %v2335 = vld [vmem:[#allocation6 + $0x1210] sm:$0xff]
          %v2336 = vld [vmem:[#allocation6 + $0x1218] sm:$0xff]
          %v2337 = vld [vmem:[#allocation6 + $0x1220] sm:$0xff]
          %v2338 = vld [vmem:[#allocation6 + $0x1228] sm:$0xff]
          %v2339 = vld [vmem:[#allocation6 + $0x1230] sm:$0xff]
          %v2340 = vld [vmem:[#allocation6 + $0x1238] sm:$0xff]
          %v2341 = vld [vmem:[#allocation6 + $0x1240] sm:$0xff]
          %v2342 = vld [vmem:[#allocation6 + $0x1248] sm:$0xff]
          %v2343 = vld [vmem:[#allocation6 + $0x1250] sm:$0xff]
          %v2344 = vld [vmem:[#allocation6 + $0x1258] sm:$0xff]
          %v2345 = vld [vmem:[#allocation6 + $0x1260] sm:$0xff]
          %v2346 = vld [vmem:[#allocation6 + $0x1268] sm:$0xff]
          %v2347 = vld [vmem:[#allocation6 + $0x1270] sm:$0xff]
          %v2348 = vld [vmem:[#allocation6 + $0x1278] sm:$0xff]
          %v2349 = vld [vmem:[#allocation6 + $0x1280] sm:$0xff]
          %v2350 = vld [vmem:[#allocation6 + $0x1288] sm:$0xff]
          %v2351 = vld [vmem:[#allocation6 + $0x1290] sm:$0xff]
          %v2352 = vld [vmem:[#allocation6 + $0x1298] sm:$0xff]
          %v2353 = vld [vmem:[#allocation6 + $0x12a0] sm:$0xff]
          %v2354 = vld [vmem:[#allocation6 + $0x12a8] sm:$0xff]
          %v2355 = vld [vmem:[#allocation6 + $0x12b0] sm:$0xff]
          %v2356 = vld [vmem:[#allocation6 + $0x12b8] sm:$0xff]
          %v2357 = vld [vmem:[#allocation6 + $0x12c0] sm:$0xff]
          %v2358 = vld [vmem:[#allocation6 + $0x12c8] sm:$0xff]
          %v2359 = vld [vmem:[#allocation6 + $0x12d0] sm:$0xff]
          %v2360 = vld [vmem:[#allocation6 + $0x12d8] sm:$0xff]
          %v2361 = vld [vmem:[#allocation6 + $0x12e0] sm:$0xff]
          %v2362 = vld [vmem:[#allocation6 + $0x12e8] sm:$0xff]
          %v2363 = vld [vmem:[#allocation6 + $0x12f0] sm:$0xff]
          %v2364 = vld [vmem:[#allocation6 + $0x12f8] sm:$0xff]
          %v2365 = vld [vmem:[#allocation6 + $0x1300] sm:$0xff]
          %v2366 = vld [vmem:[#allocation6 + $0x1308] sm:$0xff]
          %v2367 = vld [vmem:[#allocation6 + $0x1310] sm:$0xff]
          %v2368 = vld [vmem:[#allocation6 + $0x1318] sm:$0xff]
          %v2369 = vld [vmem:[#allocation6 + $0x1320] sm:$0xff]
          %v2370 = vld [vmem:[#allocation6 + $0x1328] sm:$0xff]
          %v2371 = vld [vmem:[#allocation6 + $0x1330] sm:$0xff]
          %v2372 = vld [vmem:[#allocation6 + $0x1338] sm:$0xff]
          %v2373 = vld [vmem:[#allocation6 + $0x1340] sm:$0xff]
          %v2374 = vld [vmem:[#allocation6 + $0x1348] sm:$0xff]
          %v2375 = vld [vmem:[#allocation6 + $0x1350] sm:$0xff]
          %v2376 = vld [vmem:[#allocation6 + $0x1358] sm:$0xff]
          %v2377 = vld [vmem:[#allocation6 + $0x1360] sm:$0xff]
          %v2378 = vld [vmem:[#allocation6 + $0x1368] sm:$0xff]
          %v2379 = vld [vmem:[#allocation6 + $0x1370] sm:$0xff]
          %v2380 = vld [vmem:[#allocation6 + $0x1378] sm:$0xff]
          %v2381 = vld [vmem:[#allocation6 + $0x1380] sm:$0xff]
          %v2382 = vld [vmem:[#allocation6 + $0x1388] sm:$0xff]
          %v2383 = vld [vmem:[#allocation6 + $0x1390] sm:$0xff]
          %v2384 = vld [vmem:[#allocation6 + $0x1398] sm:$0xff]
          %v2385 = vld [vmem:[#allocation6 + $0x13a0] sm:$0xff]
          %v2386 = vld [vmem:[#allocation6 + $0x13a8] sm:$0xff]
          %v2387 = vld [vmem:[#allocation6 + $0x13b0] sm:$0xff]
          %v2388 = vld [vmem:[#allocation6 + $0x13b8] sm:$0xff]
          %v2389 = vld [vmem:[#allocation6 + $0x13c0] sm:$0xff]
          %v2390 = vld [vmem:[#allocation6 + $0x13c8] sm:$0xff]
          %v2391 = vld [vmem:[#allocation6 + $0x13d0] sm:$0xff]
          %v2392 = vld [vmem:[#allocation6 + $0x13d8] sm:$0xff]
          %v2393 = vld [vmem:[#allocation6 + $0x13e0] sm:$0xff]
          %v2394 = vld [vmem:[#allocation6 + $0x13e8] sm:$0xff]
          %v2395 = vld [vmem:[#allocation6 + $0x13f0] sm:$0xff]
          %v2396 = vld [vmem:[#allocation6 + $0x13f8] sm:$0xff]
          %v2397 = vld [vmem:[#allocation6 + $0x1400] sm:$0xff]
          %v2398 = vld [vmem:[#allocation6 + $0x1408] sm:$0xff]
          %v2399 = vld [vmem:[#allocation6 + $0x1410] sm:$0xff]
          %v2400 = vld [vmem:[#allocation6 + $0x1418] sm:$0xff]
          %v2401 = vld [vmem:[#allocation6 + $0x1420] sm:$0xff]
          %v2402 = vld [vmem:[#allocation6 + $0x1428] sm:$0xff]
          %v2403 = vld [vmem:[#allocation6 + $0x1430] sm:$0xff]
          %v2404 = vld [vmem:[#allocation6 + $0x1438] sm:$0xff]
          %v2405 = vld [vmem:[#allocation6 + $0x1440] sm:$0xff]
          %v2406 = vld [vmem:[#allocation6 + $0x1448] sm:$0xff]
          %v2407 = vld [vmem:[#allocation6 + $0x1450] sm:$0xff]
          %v2408 = vld [vmem:[#allocation6 + $0x1458] sm:$0xff]
          %v2409 = vld [vmem:[#allocation6 + $0x1460] sm:$0xff]
          %v2410 = vld [vmem:[#allocation6 + $0x1468] sm:$0xff]
          %v2411 = vld [vmem:[#allocation6 + $0x1470] sm:$0xff]
          %v2412 = vld [vmem:[#allocation6 + $0x1478] sm:$0xff]
          %v2413 = vld [vmem:[#allocation6 + $0x1480] sm:$0xff]
          %v2414 = vld [vmem:[#allocation6 + $0x1488] sm:$0xff]
          %v2415 = vld [vmem:[#allocation6 + $0x1490] sm:$0xff]
          %v2416 = vld [vmem:[#allocation6 + $0x1498] sm:$0xff]
          %v2417 = vld [vmem:[#allocation6 + $0x14a0] sm:$0xff]
          %v2418 = vld [vmem:[#allocation6 + $0x14a8] sm:$0xff]
          %v2419 = vld [vmem:[#allocation6 + $0x14b0] sm:$0xff]
          %v2420 = vld [vmem:[#allocation6 + $0x14b8] sm:$0xff]
          %v2421 = vld [vmem:[#allocation6 + $0x14c0] sm:$0xff]
          %v2422 = vld [vmem:[#allocation6 + $0x14c8] sm:$0xff]
          %v2423 = vld [vmem:[#allocation6 + $0x14d0] sm:$0xff]
          %v2424 = vld [vmem:[#allocation6 + $0x14d8] sm:$0xff]
          %v2425 = vld [vmem:[#allocation6 + $0x14e0] sm:$0xff]
          %v2426 = vld [vmem:[#allocation6 + $0x14e8] sm:$0xff]
          %v2427 = vld [vmem:[#allocation6 + $0x14f0] sm:$0xff]
          %v2428 = vld [vmem:[#allocation6 + $0x14f8] sm:$0xff]
          %v2429 = vld [vmem:[#allocation6 + $0x1500] sm:$0xff]
          %v2430 = vld [vmem:[#allocation6 + $0x1508] sm:$0xff]
          %v2431 = vld [vmem:[#allocation6 + $0x1510] sm:$0xff]
          %v2432 = vld [vmem:[#allocation6 + $0x1518] sm:$0xff]
          %v2433 = vld [vmem:[#allocation6 + $0x1520] sm:$0xff]
          %v2434 = vld [vmem:[#allocation6 + $0x1528] sm:$0xff]
          %v2435 = vld [vmem:[#allocation6 + $0x1530] sm:$0xff]
          %v2436 = vld [vmem:[#allocation6 + $0x1538] sm:$0xff]
          %v2437 = vld [vmem:[#allocation6 + $0x1540] sm:$0xff]
          %v2438 = vld [vmem:[#allocation6 + $0x1548] sm:$0xff]
          %v2439 = vld [vmem:[#allocation6 + $0x1550] sm:$0xff]
          %v2440 = vld [vmem:[#allocation6 + $0x1558] sm:$0xff]
          %v2441 = vld [vmem:[#allocation6 + $0x1560] sm:$0xff]
          %v2442 = vld [vmem:[#allocation6 + $0x1568] sm:$0xff]
          %v2443 = vld [vmem:[#allocation6 + $0x1570] sm:$0xff]
          %v2444 = vld [vmem:[#allocation6 + $0x1578] sm:$0xff]
          %v2445 = vld [vmem:[#allocation6 + $0x1580] sm:$0xff]
          %v2446 = vld [vmem:[#allocation6 + $0x1588] sm:$0xff]
          %v2447 = vld [vmem:[#allocation6 + $0x1590] sm:$0xff]
          %v2448 = vld [vmem:[#allocation6 + $0x1598] sm:$0xff]
          %v2449 = vld [vmem:[#allocation6 + $0x15a0] sm:$0xff]
          %v2450 = vld [vmem:[#allocation6 + $0x15a8] sm:$0xff]
          %v2451 = vld [vmem:[#allocation6 + $0x15b0] sm:$0xff]
          %v2452 = vld [vmem:[#allocation6 + $0x15b8] sm:$0xff]
          %v2453 = vld [vmem:[#allocation6 + $0x15c0] sm:$0xff]
          %v2454 = vld [vmem:[#allocation6 + $0x15c8] sm:$0xff]
          %v2455 = vld [vmem:[#allocation6 + $0x15d0] sm:$0xff]
          %v2456 = vld [vmem:[#allocation6 + $0x15d8] sm:$0xff]
          %v2457 = vld [vmem:[#allocation6 + $0x15e0] sm:$0xff]
          %v2458 = vld [vmem:[#allocation6 + $0x15e8] sm:$0xff]
          %v2459 = vld [vmem:[#allocation6 + $0x15f0] sm:$0xff]
          %v2460 = vld [vmem:[#allocation6 + $0x15f8] sm:$0xff]
          %v2461 = vld [vmem:[#allocation6 + $0x1600] sm:$0xff]
          %v2462 = vld [vmem:[#allocation6 + $0x1608] sm:$0xff]
          %v2463 = vld [vmem:[#allocation6 + $0x1610] sm:$0xff]
          %v2464 = vld [vmem:[#allocation6 + $0x1618] sm:$0xff]
          %v2465 = vld [vmem:[#allocation6 + $0x1620] sm:$0xff]
          %v2466 = vld [vmem:[#allocation6 + $0x1628] sm:$0xff]
          %v2467 = vld [vmem:[#allocation6 + $0x1630] sm:$0xff]
          %v2468 = vld [vmem:[#allocation6 + $0x1638] sm:$0xff]
          %v2469 = vld [vmem:[#allocation6 + $0x1640] sm:$0xff]
          %v2470 = vld [vmem:[#allocation6 + $0x1648] sm:$0xff]
          %v2471 = vld [vmem:[#allocation6 + $0x1650] sm:$0xff]
          %v2472 = vld [vmem:[#allocation6 + $0x1658] sm:$0xff]
          %v2473 = vld [vmem:[#allocation6 + $0x1660] sm:$0xff]
          %v2474 = vld [vmem:[#allocation6 + $0x1668] sm:$0xff]
          %v2475 = vld [vmem:[#allocation6 + $0x1670] sm:$0xff]
          %v2476 = vld [vmem:[#allocation6 + $0x1678] sm:$0xff]
          %v2477 = vld [vmem:[#allocation6 + $0x1680] sm:$0xff]
          %v2478 = vld [vmem:[#allocation6 + $0x1688] sm:$0xff]
          %v2479 = vld [vmem:[#allocation6 + $0x1690] sm:$0xff]
          %v2480 = vld [vmem:[#allocation6 + $0x1698] sm:$0xff]
          %v2481 = vld [vmem:[#allocation6 + $0x16a0] sm:$0xff]
          %v2482 = vld [vmem:[#allocation6 + $0x16a8] sm:$0xff]
          %v2483 = vld [vmem:[#allocation6 + $0x16b0] sm:$0xff]
          %v2484 = vld [vmem:[#allocation6 + $0x16b8] sm:$0xff]
          %v2485 = vld [vmem:[#allocation6 + $0x16c0] sm:$0xff]
          %v2486 = vld [vmem:[#allocation6 + $0x16c8] sm:$0xff]
          %v2487 = vld [vmem:[#allocation6 + $0x16d0] sm:$0xff]
          %v2488 = vld [vmem:[#allocation6 + $0x16d8] sm:$0xff]
          %v2489 = vld [vmem:[#allocation6 + $0x16e0] sm:$0xff]
          %v2490 = vld [vmem:[#allocation6 + $0x16e8] sm:$0xff]
          %v2491 = vld [vmem:[#allocation6 + $0x16f0] sm:$0xff]
          %v2492 = vld [vmem:[#allocation6 + $0x16f8] sm:$0xff]
          %v2493 = vld [vmem:[#allocation6 + $0x1700] sm:$0xff]
          %v2494 = vld [vmem:[#allocation6 + $0x1708] sm:$0xff]
          %v2495 = vld [vmem:[#allocation6 + $0x1710] sm:$0xff]
          %v2496 = vld [vmem:[#allocation6 + $0x1718] sm:$0xff]
          %v2497 = vld [vmem:[#allocation6 + $0x1720] sm:$0xff]
          %v2498 = vld [vmem:[#allocation6 + $0x1728] sm:$0xff]
          %v2499 = vld [vmem:[#allocation6 + $0x1730] sm:$0xff]
          %v2500 = vld [vmem:[#allocation6 + $0x1738] sm:$0xff]
          %v2501 = vld [vmem:[#allocation6 + $0x1740] sm:$0xff]
          %v2502 = vld [vmem:[#allocation6 + $0x1748] sm:$0xff]
          %v2503 = vld [vmem:[#allocation6 + $0x1750] sm:$0xff]
          %v2504 = vld [vmem:[#allocation6 + $0x1758] sm:$0xff]
          %v2505 = vld [vmem:[#allocation6 + $0x1760] sm:$0xff]
          %v2506 = vld [vmem:[#allocation6 + $0x1768] sm:$0xff]
          %v2507 = vld [vmem:[#allocation6 + $0x1770] sm:$0xff]
          %v2508 = vld [vmem:[#allocation6 + $0x1778] sm:$0xff]
          %v2509 = vld [vmem:[#allocation6 + $0x1780] sm:$0xff]
          %v2510 = vld [vmem:[#allocation6 + $0x1788] sm:$0xff]
          %v2511 = vld [vmem:[#allocation6 + $0x1790] sm:$0xff]
          %v2512 = vld [vmem:[#allocation6 + $0x1798] sm:$0xff]
          %v2513 = vld [vmem:[#allocation6 + $0x17a0] sm:$0xff]
          %v2514 = vld [vmem:[#allocation6 + $0x17a8] sm:$0xff]
          %v2515 = vld [vmem:[#allocation6 + $0x17b0] sm:$0xff]
          %v2516 = vld [vmem:[#allocation6 + $0x17b8] sm:$0xff]
          %v2517 = vld [vmem:[#allocation6 + $0x17c0] sm:$0xff]
          %v2518 = vld [vmem:[#allocation6 + $0x17c8] sm:$0xff]
          %v2519 = vld [vmem:[#allocation6 + $0x17d0] sm:$0xff]
          %v2520 = vld [vmem:[#allocation6 + $0x17d8] sm:$0xff]
          %v2521 = vld [vmem:[#allocation6 + $0x17e0] sm:$0xff]
          %v2522 = vld [vmem:[#allocation6 + $0x17e8] sm:$0xff]
          %v2523 = vld [vmem:[#allocation6 + $0x17f0] sm:$0xff]
          %v2524 = vld [vmem:[#allocation6 + $0x17f8] sm:$0xff]
          %v2525 = vld [vmem:[#allocation6 + $0x1800] sm:$0xff]
          %v2526 = vld [vmem:[#allocation6 + $0x1808] sm:$0xff]
          %v2527 = vld [vmem:[#allocation6 + $0x1810] sm:$0xff]
          %v2528 = vld [vmem:[#allocation6 + $0x1818] sm:$0xff]
          %v2529 = vld [vmem:[#allocation6 + $0x1820] sm:$0xff]
          %v2530 = vld [vmem:[#allocation6 + $0x1828] sm:$0xff]
          %v2531 = vld [vmem:[#allocation6 + $0x1830] sm:$0xff]
          %v2532 = vld [vmem:[#allocation6 + $0x1838] sm:$0xff]
          %v2533 = vld [vmem:[#allocation6 + $0x1840] sm:$0xff]
          %v2534 = vld [vmem:[#allocation6 + $0x1848] sm:$0xff]
          %v2535 = vld [vmem:[#allocation6 + $0x1850] sm:$0xff]
          %v2536 = vld [vmem:[#allocation6 + $0x1858] sm:$0xff]
          %v2537 = vld [vmem:[#allocation6 + $0x1860] sm:$0xff]
          %v2538 = vld [vmem:[#allocation6 + $0x1868] sm:$0xff]
          %v2539 = vld [vmem:[#allocation6 + $0x1870] sm:$0xff]
          %v2540 = vld [vmem:[#allocation6 + $0x1878] sm:$0xff]
          %v2541 = vld [vmem:[#allocation6 + $0x1880] sm:$0xff]
          %v2542 = vld [vmem:[#allocation6 + $0x1888] sm:$0xff]
          %v2543 = vld [vmem:[#allocation6 + $0x1890] sm:$0xff]
          %v2544 = vld [vmem:[#allocation6 + $0x1898] sm:$0xff]
          %v2545 = vld [vmem:[#allocation6 + $0x18a0] sm:$0xff]
          %v2546 = vld [vmem:[#allocation6 + $0x18a8] sm:$0xff]
          %v2547 = vld [vmem:[#allocation6 + $0x18b0] sm:$0xff]
          %v2548 = vld [vmem:[#allocation6 + $0x18b8] sm:$0xff]
          %v2549 = vld [vmem:[#allocation6 + $0x18c0] sm:$0xff]
          %v2550 = vld [vmem:[#allocation6 + $0x18c8] sm:$0xff]
          %v2551 = vld [vmem:[#allocation6 + $0x18d0] sm:$0xff]
          %v2552 = vld [vmem:[#allocation6 + $0x18d8] sm:$0xff]
          %v2553 = vld [vmem:[#allocation6 + $0x18e0] sm:$0xff]
          %v2554 = vld [vmem:[#allocation6 + $0x18e8] sm:$0xff]
          %v2555 = vld [vmem:[#allocation6 + $0x18f0] sm:$0xff]
          %v2556 = vld [vmem:[#allocation6 + $0x18f8] sm:$0xff]
          %v2557 = vld [vmem:[#allocation6 + $0x1900] sm:$0xff]
          %v2558 = vld [vmem:[#allocation6 + $0x1908] sm:$0xff]
          %v2559 = vld [vmem:[#allocation6 + $0x1910] sm:$0xff]
          %v2560 = vld [vmem:[#allocation6 + $0x1918] sm:$0xff]
          %v2561 = vld [vmem:[#allocation6 + $0x1920] sm:$0xff]
          %v2562 = vld [vmem:[#allocation6 + $0x1928] sm:$0xff]
          %v2563 = vld [vmem:[#allocation6 + $0x1930] sm:$0xff]
          %v2564 = vld [vmem:[#allocation6 + $0x1938] sm:$0xff]
          %v2565 = vld [vmem:[#allocation6 + $0x1940] sm:$0xff]
          %v2566 = vld [vmem:[#allocation6 + $0x1948] sm:$0xff]
          %v2567 = vld [vmem:[#allocation6 + $0x1950] sm:$0xff]
          %v2568 = vld [vmem:[#allocation6 + $0x1958] sm:$0xff]
          %v2569 = vld [vmem:[#allocation6 + $0x1960] sm:$0xff]
          %v2570 = vld [vmem:[#allocation6 + $0x1968] sm:$0xff]
          %v2571 = vld [vmem:[#allocation6 + $0x1970] sm:$0xff]
          %v2572 = vld [vmem:[#allocation6 + $0x1978] sm:$0xff]
          %v2573 = vld [vmem:[#allocation6 + $0x1980] sm:$0xff]
          %v2574 = vld [vmem:[#allocation6 + $0x1988] sm:$0xff]
          %v2575 = vld [vmem:[#allocation6 + $0x1990] sm:$0xff]
          %v2576 = vld [vmem:[#allocation6 + $0x1998] sm:$0xff]
          %v2577 = vld [vmem:[#allocation6 + $0x19a0] sm:$0xff]
          %v2578 = vld [vmem:[#allocation6 + $0x19a8] sm:$0xff]
          %v2579 = vld [vmem:[#allocation6 + $0x19b0] sm:$0xff]
          %v2580 = vld [vmem:[#allocation6 + $0x19b8] sm:$0xff]
          %v2581 = vld [vmem:[#allocation6 + $0x19c0] sm:$0xff]
          %v2582 = vld [vmem:[#allocation6 + $0x19c8] sm:$0xff]
          %v2583 = vld [vmem:[#allocation6 + $0x19d0] sm:$0xff]
          %v2584 = vld [vmem:[#allocation6 + $0x19d8] sm:$0xff]
          %v2585 = vld [vmem:[#allocation6 + $0x19e0] sm:$0xff]
          %v2586 = vld [vmem:[#allocation6 + $0x19e8] sm:$0xff]
          %v2587 = vld [vmem:[#allocation6 + $0x19f0] sm:$0xff]
          %v2588 = vld [vmem:[#allocation6 + $0x19f8] sm:$0xff]
          %v2589 = vld [vmem:[#allocation6 + $0x1a00] sm:$0xff]
          %v2590 = vld [vmem:[#allocation6 + $0x1a08] sm:$0xff]
          %v2591 = vld [vmem:[#allocation6 + $0x1a10] sm:$0xff]
          %v2592 = vld [vmem:[#allocation6 + $0x1a18] sm:$0xff]
          %v2593 = vld [vmem:[#allocation6 + $0x1a20] sm:$0xff]
          %v2594 = vld [vmem:[#allocation6 + $0x1a28] sm:$0xff]
          %v2595 = vld [vmem:[#allocation6 + $0x1a30] sm:$0xff]
          %v2596 = vld [vmem:[#allocation6 + $0x1a38] sm:$0xff]
          %v2597 = vld [vmem:[#allocation6 + $0x1a40] sm:$0xff]
          %v2598 = vld [vmem:[#allocation6 + $0x1a48] sm:$0xff]
          %v2599 = vld [vmem:[#allocation6 + $0x1a50] sm:$0xff]
          %v2600 = vld [vmem:[#allocation6 + $0x1a58] sm:$0xff]
          %v2601 = vld [vmem:[#allocation6 + $0x1a60] sm:$0xff]
          %v2602 = vld [vmem:[#allocation6 + $0x1a68] sm:$0xff]
          %v2603 = vld [vmem:[#allocation6 + $0x1a70] sm:$0xff]
          %v2604 = vld [vmem:[#allocation6 + $0x1a78] sm:$0xff]
          %v2605 = vld [vmem:[#allocation6 + $0x1a80] sm:$0xff]
          %v2606 = vld [vmem:[#allocation6 + $0x1a88] sm:$0xff]
          %v2607 = vld [vmem:[#allocation6 + $0x1a90] sm:$0xff]
          %v2608 = vld [vmem:[#allocation6 + $0x1a98] sm:$0xff]
          %v2609 = vld [vmem:[#allocation6 + $0x1aa0] sm:$0xff]
          %v2610 = vld [vmem:[#allocation6 + $0x1aa8] sm:$0xff]
          %v2611 = vld [vmem:[#allocation6 + $0x1ab0] sm:$0xff]
          %v2612 = vld [vmem:[#allocation6 + $0x1ab8] sm:$0xff]
          %v2613 = vld [vmem:[#allocation6 + $0x1ac0] sm:$0xff]
          %v2614 = vld [vmem:[#allocation6 + $0x1ac8] sm:$0xff]
          %v2615 = vld [vmem:[#allocation6 + $0x1ad0] sm:$0xff]
          %v2616 = vld [vmem:[#allocation6 + $0x1ad8] sm:$0xff]
          %v2617 = vld [vmem:[#allocation6 + $0x1ae0] sm:$0xff]
          %v2618 = vld [vmem:[#allocation6 + $0x1ae8] sm:$0xff]
          %v2619 = vld [vmem:[#allocation6 + $0x1af0] sm:$0xff]
          %v2620 = vld [vmem:[#allocation6 + $0x1af8] sm:$0xff]
          %v2621 = vld [vmem:[#allocation6 + $0x1b00] sm:$0xff]
          %v2622 = vld [vmem:[#allocation6 + $0x1b08] sm:$0xff]
          %v2623 = vld [vmem:[#allocation6 + $0x1b10] sm:$0xff]
          %v2624 = vld [vmem:[#allocation6 + $0x1b18] sm:$0xff]
          %v2625 = vld [vmem:[#allocation6 + $0x1b20] sm:$0xff]
          %v2626 = vld [vmem:[#allocation6 + $0x1b28] sm:$0xff]
          %v2627 = vld [vmem:[#allocation6 + $0x1b30] sm:$0xff]
          %v2628 = vld [vmem:[#allocation6 + $0x1b38] sm:$0xff]
          %v2629 = vld [vmem:[#allocation6 + $0x1b40] sm:$0xff]
          %v2630 = vld [vmem:[#allocation6 + $0x1b48] sm:$0xff]
          %v2631 = vld [vmem:[#allocation6 + $0x1b50] sm:$0xff]
          %v2632 = vld [vmem:[#allocation6 + $0x1b58] sm:$0xff]
          %v2633 = vld [vmem:[#allocation6 + $0x1b60] sm:$0xff]
          %v2634 = vld [vmem:[#allocation6 + $0x1b68] sm:$0xff]
          %v2635 = vld [vmem:[#allocation6 + $0x1b70] sm:$0xff]
          %v2636 = vld [vmem:[#allocation6 + $0x1b78] sm:$0xff]
          %v2637 = vld [vmem:[#allocation6 + $0x1b80] sm:$0xff]
          %v2638 = vld [vmem:[#allocation6 + $0x1b88] sm:$0xff]
          %v2639 = vld [vmem:[#allocation6 + $0x1b90] sm:$0xff]
          %v2640 = vld [vmem:[#allocation6 + $0x1b98] sm:$0xff]
          %v2641 = vld [vmem:[#allocation6 + $0x1ba0] sm:$0xff]
          %v2642 = vld [vmem:[#allocation6 + $0x1ba8] sm:$0xff]
          %v2643 = vld [vmem:[#allocation6 + $0x1bb0] sm:$0xff]
          %v2644 = vld [vmem:[#allocation6 + $0x1bb8] sm:$0xff]
          %v2645 = vld [vmem:[#allocation6 + $0x1bc0] sm:$0xff]
          %v2646 = vld [vmem:[#allocation6 + $0x1bc8] sm:$0xff]
          %v2647 = vld [vmem:[#allocation6 + $0x1bd0] sm:$0xff]
          %v2648 = vld [vmem:[#allocation6 + $0x1bd8] sm:$0xff]
          %v2649 = vld [vmem:[#allocation6 + $0x1be0] sm:$0xff]
          %v2650 = vld [vmem:[#allocation6 + $0x1be8] sm:$0xff]
          %v2651 = vld [vmem:[#allocation6 + $0x1bf0] sm:$0xff]
          %v2652 = vld [vmem:[#allocation6 + $0x1bf8] sm:$0xff]
          %v2653 = vld [vmem:[#allocation6 + $0x1c00] sm:$0xff]
          %v2654 = vld [vmem:[#allocation6 + $0x1c08] sm:$0xff]
          %v2655 = vld [vmem:[#allocation6 + $0x1c10] sm:$0xff]
          %v2656 = vld [vmem:[#allocation6 + $0x1c18] sm:$0xff]
          %v2657 = vld [vmem:[#allocation6 + $0x1c20] sm:$0xff]
          %v2658 = vld [vmem:[#allocation6 + $0x1c28] sm:$0xff]
          %v2659 = vld [vmem:[#allocation6 + $0x1c30] sm:$0xff]
          %v2660 = vld [vmem:[#allocation6 + $0x1c38] sm:$0xff]
          %v2661 = vld [vmem:[#allocation6 + $0x1c40] sm:$0xff]
          %v2662 = vld [vmem:[#allocation6 + $0x1c48] sm:$0xff]
          %v2663 = vld [vmem:[#allocation6 + $0x1c50] sm:$0xff]
          %v2664 = vld [vmem:[#allocation6 + $0x1c58] sm:$0xff]
          %v2665 = vld [vmem:[#allocation6 + $0x1c60] sm:$0xff]
          %v2666 = vld [vmem:[#allocation6 + $0x1c68] sm:$0xff]
          %v2667 = vld [vmem:[#allocation6 + $0x1c70] sm:$0xff]
          %v2668 = vld [vmem:[#allocation6 + $0x1c78] sm:$0xff]
          %v2669 = vld [vmem:[#allocation6 + $0x1c80] sm:$0xff]
          %v2670 = vld [vmem:[#allocation6 + $0x1c88] sm:$0xff]
          %v2671 = vld [vmem:[#allocation6 + $0x1c90] sm:$0xff]
          %v2672 = vld [vmem:[#allocation6 + $0x1c98] sm:$0xff]
          %v2673 = vld [vmem:[#allocation6 + $0x1ca0] sm:$0xff]
          %v2674 = vld [vmem:[#allocation6 + $0x1ca8] sm:$0xff]
          %v2675 = vld [vmem:[#allocation6 + $0x1cb0] sm:$0xff]
          %v2676 = vld [vmem:[#allocation6 + $0x1cb8] sm:$0xff]
          %v2677 = vld [vmem:[#allocation6 + $0x1cc0] sm:$0xff]
          %v2678 = vld [vmem:[#allocation6 + $0x1cc8] sm:$0xff]
          %v2679 = vld [vmem:[#allocation6 + $0x1cd0] sm:$0xff]
          %v2680 = vld [vmem:[#allocation6 + $0x1cd8] sm:$0xff]
          %v2681 = vld [vmem:[#allocation6 + $0x1ce0] sm:$0xff]
          %v2682 = vld [vmem:[#allocation6 + $0x1ce8] sm:$0xff]
          %v2683 = vld [vmem:[#allocation6 + $0x1cf0] sm:$0xff]
          %v2684 = vld [vmem:[#allocation6 + $0x1cf8] sm:$0xff]
          %v2685 = vld [vmem:[#allocation6 + $0x1d00] sm:$0xff]
          %v2686 = vld [vmem:[#allocation6 + $0x1d08] sm:$0xff]
          %v2687 = vld [vmem:[#allocation6 + $0x1d10] sm:$0xff]
          %v2688 = vld [vmem:[#allocation6 + $0x1d18] sm:$0xff]
          %v2689 = vld [vmem:[#allocation6 + $0x1d20] sm:$0xff]
          %v2690 = vld [vmem:[#allocation6 + $0x1d28] sm:$0xff]
          %v2691 = vld [vmem:[#allocation6 + $0x1d30] sm:$0xff]
          %v2692 = vld [vmem:[#allocation6 + $0x1d38] sm:$0xff]
          %v2693 = vld [vmem:[#allocation6 + $0x1d40] sm:$0xff]
          %v2694 = vld [vmem:[#allocation6 + $0x1d48] sm:$0xff]
          %v2695 = vld [vmem:[#allocation6 + $0x1d50] sm:$0xff]
          %v2696 = vld [vmem:[#allocation6 + $0x1d58] sm:$0xff]
          %v2697 = vld [vmem:[#allocation6 + $0x1d60] sm:$0xff]
          %v2698 = vld [vmem:[#allocation6 + $0x1d68] sm:$0xff]
          %v2699 = vld [vmem:[#allocation6 + $0x1d70] sm:$0xff]
          %v2700 = vld [vmem:[#allocation6 + $0x1d78] sm:$0xff]
          %v2701 = vld [vmem:[#allocation6 + $0x1d80] sm:$0xff]
          %v2702 = vld [vmem:[#allocation6 + $0x1d88] sm:$0xff]
          %v2703 = vld [vmem:[#allocation6 + $0x1d90] sm:$0xff]
          %v2704 = vld [vmem:[#allocation6 + $0x1d98] sm:$0xff]
          %v2705 = vld [vmem:[#allocation6 + $0x1da0] sm:$0xff]
          %v2706 = vld [vmem:[#allocation6 + $0x1da8] sm:$0xff]
          %v2707 = vld [vmem:[#allocation6 + $0x1db0] sm:$0xff]
          %v2708 = vld [vmem:[#allocation6 + $0x1db8] sm:$0xff]
          %v2709 = vld [vmem:[#allocation6 + $0x1dc0] sm:$0xff]
          %v2710 = vld [vmem:[#allocation6 + $0x1dc8] sm:$0xff]
          %v2711 = vld [vmem:[#allocation6 + $0x1dd0] sm:$0xff]
          %v2712 = vld [vmem:[#allocation6 + $0x1dd8] sm:$0xff]
          %v2713 = vld [vmem:[#allocation6 + $0x1de0] sm:$0xff]
          %v2714 = vld [vmem:[#allocation6 + $0x1de8] sm:$0xff]
          %v2715 = vld [vmem:[#allocation6 + $0x1df0] sm:$0xff]
          %v2716 = vld [vmem:[#allocation6 + $0x1df8] sm:$0xff]
          %v2717 = vld [vmem:[#allocation6 + $0x1e00] sm:$0xff]
          %v2718 = vld [vmem:[#allocation6 + $0x1e08] sm:$0xff]
          %v2719 = vld [vmem:[#allocation6 + $0x1e10] sm:$0xff]
          %v2720 = vld [vmem:[#allocation6 + $0x1e18] sm:$0xff]
          %v2721 = vld [vmem:[#allocation6 + $0x1e20] sm:$0xff]
          %v2722 = vld [vmem:[#allocation6 + $0x1e28] sm:$0xff]
          %v2723 = vld [vmem:[#allocation6 + $0x1e30] sm:$0xff]
          %v2724 = vld [vmem:[#allocation6 + $0x1e38] sm:$0xff]
          %v2725 = vld [vmem:[#allocation6 + $0x1e40] sm:$0xff]
          %v2726 = vld [vmem:[#allocation6 + $0x1e48] sm:$0xff]
          %v2727 = vld [vmem:[#allocation6 + $0x1e50] sm:$0xff]
          %v2728 = vld [vmem:[#allocation6 + $0x1e58] sm:$0xff]
          %v2729 = vld [vmem:[#allocation6 + $0x1e60] sm:$0xff]
          %v2730 = vld [vmem:[#allocation6 + $0x1e68] sm:$0xff]
          %v2731 = vld [vmem:[#allocation6 + $0x1e70] sm:$0xff]
          %v2732 = vld [vmem:[#allocation6 + $0x1e78] sm:$0xff]
          %v2733 = vld [vmem:[#allocation6 + $0x1e80] sm:$0xff]
          %v2734 = vld [vmem:[#allocation6 + $0x1e88] sm:$0xff]
          %v2735 = vld [vmem:[#allocation6 + $0x1e90] sm:$0xff]
          %v2736 = vld [vmem:[#allocation6 + $0x1e98] sm:$0xff]
          %v2737 = vld [vmem:[#allocation6 + $0x1ea0] sm:$0xff]
          %v2738 = vld [vmem:[#allocation6 + $0x1ea8] sm:$0xff]
          %v2739 = vld [vmem:[#allocation6 + $0x1eb0] sm:$0xff]
          %v2740 = vld [vmem:[#allocation6 + $0x1eb8] sm:$0xff]
          %v2741 = vld [vmem:[#allocation6 + $0x1ec0] sm:$0xff]
          %v2742 = vld [vmem:[#allocation6 + $0x1ec8] sm:$0xff]
          %v2743 = vld [vmem:[#allocation6 + $0x1ed0] sm:$0xff]
          %v2744 = vld [vmem:[#allocation6 + $0x1ed8] sm:$0xff]
          %v2745 = vld [vmem:[#allocation6 + $0x1ee0] sm:$0xff]
          %v2746 = vld [vmem:[#allocation6 + $0x1ee8] sm:$0xff]
          %v2747 = vld [vmem:[#allocation6 + $0x1ef0] sm:$0xff]
          %v2748 = vld [vmem:[#allocation6 + $0x1ef8] sm:$0xff]
          %v2749 = vld [vmem:[#allocation6 + $0x1f00] sm:$0xff]
          %v2750 = vld [vmem:[#allocation6 + $0x1f08] sm:$0xff]
          %v2751 = vld [vmem:[#allocation6 + $0x1f10] sm:$0xff]
          %v2752 = vld [vmem:[#allocation6 + $0x1f18] sm:$0xff]
          %v2753 = vld [vmem:[#allocation6 + $0x1f20] sm:$0xff]
          %v2754 = vld [vmem:[#allocation6 + $0x1f28] sm:$0xff]
          %v2755 = vld [vmem:[#allocation6 + $0x1f30] sm:$0xff]
          %v2756 = vld [vmem:[#allocation6 + $0x1f38] sm:$0xff]
          %v2757 = vld [vmem:[#allocation6 + $0x1f40] sm:$0xff]
          %v2758 = vld [vmem:[#allocation6 + $0x1f48] sm:$0xff]
          %v2759 = vld [vmem:[#allocation6 + $0x1f50] sm:$0xff]
          %v2760 = vld [vmem:[#allocation6 + $0x1f58] sm:$0xff]
          %v2761 = vld [vmem:[#allocation6 + $0x1f60] sm:$0xff]
          %v2762 = vld [vmem:[#allocation6 + $0x1f68] sm:$0xff]
          %v2763 = vld [vmem:[#allocation6 + $0x1f70] sm:$0xff]
          %v2764 = vld [vmem:[#allocation6 + $0x1f78] sm:$0xff]
          %v2765 = vld [vmem:[#allocation6 + $0x1f80] sm:$0xff]
          %v2766 = vld [vmem:[#allocation6 + $0x1f88] sm:$0xff]
          %v2767 = vld [vmem:[#allocation6 + $0x1f90] sm:$0xff]
          %v2768 = vld [vmem:[#allocation6 + $0x1f98] sm:$0xff]
          %v2769 = vld [vmem:[#allocation6 + $0x1fa0] sm:$0xff]
          %v2770 = vld [vmem:[#allocation6 + $0x1fa8] sm:$0xff]
          %v2771 = vld [vmem:[#allocation6 + $0x1fb0] sm:$0xff]
          %v2772 = vld [vmem:[#allocation6 + $0x1fb8] sm:$0xff]
          %v2773 = vld [vmem:[#allocation6 + $0x1fc0] sm:$0xff]
          %v2774 = vld [vmem:[#allocation6 + $0x1fc8] sm:$0xff]
          %v2775 = vld [vmem:[#allocation6 + $0x1fd0] sm:$0xff]
          %v2776 = vld [vmem:[#allocation6 + $0x1fd8] sm:$0xff]
          %v2777 = vld [vmem:[#allocation6 + $0x1fe0] sm:$0xff]
          %v2778 = vld [vmem:[#allocation6 + $0x1fe8] sm:$0xff]
          %v2779 = vld [vmem:[#allocation6 + $0x1ff0] sm:$0xff]
          %v2780 = vld [vmem:[#allocation6 + $0x1ff8] sm:$0xff]
          %v2781 = vld [vmem:[#allocation8] sm:$0xf]
          %v2783 = vlaneseq
          %v2784 = vshrl.u32 %v2783, 7
          %v2785 = vsub.s32 0, %v2784
          %v2786 = vrot.slane %v2781, %v2785
          %v2787 = vlaneseq
          %v2788 = vshrl.u32 %v2787, 7
          %v2789 = vsub.s32 1, %v2788
          %v2790 = vrot.slane %v2781, %v2789
          %v2791 = vlaneseq
          %v2792 = vshrl.u32 %v2791, 7
          %v2793 = vsub.s32 2, %v2792
          %v2794 = vrot.slane %v2781, %v2793
          %v2795 = vlaneseq
          %v2796 = vshrl.u32 %v2795, 7
          %v2797 = vsub.s32 3, %v2796
          %v2798 = vrot.slane %v2781, %v2797
          %v2807 = vcombine.high %v1753, %v1753
          %v2809 = vunpack.c.l.s4 1983009808
          %v2810 = vunpack.c.0.s8 %v2809
          %v2811 = vlaneseq
          %v2812 = vshrl.u32 %v2811, 7
          %v2813 = vsub.s32 %v2810, %v2812
          %v2814 = vrot.slane %v1753, %v2813
          %v2816 = vunpack.c.l.s4 1983009808
          %v2817 = vunpack.c.0.s8 %v2816
          %v2818 = vlaneseq
          %v2819 = vshrl.u32 %v2818, 7
          %v2820 = vsub.s32 %v2817, %v2819
          %v2821 = vrot.slane %v2807, %v2820
          %v2822 = vcombine.high %v2814, %v2814
          %v2823 = vcombine.high %v2821, %v2821
          %v2824 = vcombine.high %v1754, %v1754
          %v2826 = vunpack.c.l.s4 1983009808
          %v2827 = vunpack.c.0.s8 %v2826
          %v2828 = vlaneseq
          %v2829 = vshrl.u32 %v2828, 7
          %v2830 = vsub.s32 %v2827, %v2829
          %v2831 = vrot.slane %v1754, %v2830
          %v2833 = vunpack.c.l.s4 1983009808
          %v2834 = vunpack.c.0.s8 %v2833
          %v2835 = vlaneseq
          %v2836 = vshrl.u32 %v2835, 7
          %v2837 = vsub.s32 %v2834, %v2836
          %v2838 = vrot.slane %v2824, %v2837
          %v2839 = vcombine.high %v2831, %v2831
          %v2840 = vcombine.high %v2838, %v2838
          %v2841 = vcombine.high %v1755, %v1755
          %v2843 = vunpack.c.l.s4 1983009808
          %v2844 = vunpack.c.0.s8 %v2843
          %v2845 = vlaneseq
          %v2846 = vshrl.u32 %v2845, 7
          %v2847 = vsub.s32 %v2844, %v2846
          %v2848 = vrot.slane %v1755, %v2847
          %v2850 = vunpack.c.l.s4 1983009808
          %v2851 = vunpack.c.0.s8 %v2850
          %v2852 = vlaneseq
          %v2853 = vshrl.u32 %v2852, 7
          %v2854 = vsub.s32 %v2851, %v2853
          %v2855 = vrot.slane %v2841, %v2854
          %v2856 = vcombine.high %v2848, %v2848
          %v2857 = vcombine.high %v2855, %v2855
          %v2858 = vcombine.high %v1756, %v1756
          %v2860 = vunpack.c.l.s4 1983009808
          %v2861 = vunpack.c.0.s8 %v2860
          %v2862 = vlaneseq
          %v2863 = vshrl.u32 %v2862, 7
          %v2864 = vsub.s32 %v2861, %v2863
          %v2865 = vrot.slane %v1756, %v2864
          %v2867 = vunpack.c.l.s4 1983009808
          %v2868 = vunpack.c.0.s8 %v2867
          %v2869 = vlaneseq
          %v2870 = vshrl.u32 %v2869, 7
          %v2871 = vsub.s32 %v2868, %v2870
          %v2872 = vrot.slane %v2858, %v2871
          %v2873 = vcombine.high %v2865, %v2865
          %v2874 = vcombine.high %v2872, %v2872
          %2891 = vmatprep.subr.mxu0 %v1818
          %2892 = vmatpush1.msra.mxu0 %v1817
          %2893 = vmatprep.subr.mxu0 %v1814
          %2894 = vmatpush1.msra.mxu0 %v1813
          %2895 = vmatprep.subr.mxu0 %v1810
          %2896 = vmatpush1.msra.mxu0 %v1809
          %2897 = vmatprep.subr.mxu0 %v1806
          %2898 = vmatpush1.msra.mxu0 %v1805
          %2899 = vmatprep.subr.mxu0 %v1802
          %2900 = vmatpush1.msra.mxu0 %v1801
          %2901 = vmatprep.subr.mxu0 %v1798
          %2902 = vmatpush1.msra.mxu0 %v1797
          %2903 = vmatprep.subr.mxu0 %v1794
          %2904 = vmatpush1.msra.mxu0 %v1793
          %2905 = vmatprep.subr.mxu0 %v1790
          %2906 = vmatpush1.msra.mxu0 %v1789
          %2907 = vmatprep.subr.mxu0 %v1786
          %2908 = vmatpush1.msra.mxu0 %v1785
          %2909 = vmatprep.subr.mxu0 %v1782
          %2910 = vmatpush1.msra.mxu0 %v1781
          %2911 = vmatprep.subr.mxu0 %v1778
          %2912 = vmatpush1.msra.mxu0 %v1777
          %2913 = vmatprep.subr.mxu0 %v1774
          %2914 = vmatpush1.msra.mxu0 %v1773
          %2915 = vmatprep.subr.mxu0 %v1770
          %2916 = vmatpush1.msra.mxu0 %v1769
          %2917 = vmatprep.subr.mxu0 %v1766
          %2918 = vmatpush1.msra.mxu0 %v1765
          %2919 = vmatprep.subr.mxu0 %v1762
          %2920 = vmatpush1.msra.mxu0 %v1761
          %2921 = vmatprep.subr.mxu0 %v1758
          %2922 = vmatpush1.msra.mxu0 %v1757
          %2923 = vmatprep.subr.mxu0 %v1882
          %2924 = vmatpush2.msra.mxu0 %v1881
          %2925 = vmatprep.subr.mxu0 %v1878
          %2926 = vmatpush2.msra.mxu0 %v1877
          %2927 = vmatprep.subr.mxu0 %v1874
          %2928 = vmatpush2.msra.mxu0 %v1873
          %2929 = vmatprep.subr.mxu0 %v1870
          %2930 = vmatpush2.msra.mxu0 %v1869
          %2931 = vmatprep.subr.mxu0 %v1866
          %2932 = vmatpush2.msra.mxu0 %v1865
          %2933 = vmatprep.subr.mxu0 %v1862
          %2934 = vmatpush2.msra.mxu0 %v1861
          %2935 = vmatprep.subr.mxu0 %v1858
          %2936 = vmatpush2.msra.mxu0 %v1857
          %2937 = vmatprep.subr.mxu0 %v1854
          %2938 = vmatpush2.msra.mxu0 %v1853
          %2939 = vmatprep.subr.mxu0 %v1850
          %2940 = vmatpush2.msra.mxu0 %v1849
          %2941 = vmatprep.subr.mxu0 %v1846
          %2942 = vmatpush2.msra.mxu0 %v1845
          %2943 = vmatprep.subr.mxu0 %v1842
          %2944 = vmatpush2.msra.mxu0 %v1841
          %2945 = vmatprep.subr.mxu0 %v1838
          %2946 = vmatpush2.msra.mxu0 %v1837
          %2947 = vmatprep.subr.mxu0 %v1834
          %2948 = vmatpush2.msra.mxu0 %v1833
          %2949 = vmatprep.subr.mxu0 %v1830
          %2950 = vmatpush2.msra.mxu0 %v1829
          %2951 = vmatprep.subr.mxu0 %v1826
          %2952 = vmatpush2.msra.mxu0 %v1825
          %2953 = vmatprep.subr.mxu0 %v1822
          %2954 = vmatpush2.msra.mxu0 %v1821
          %2955 = vmatprep.mubr.f32.mxu0 %v2822
          %2956 = vmatmul.mubr.f32.gmra.mxu0 %v2814
          %v2957 = vpop.f32.mrf.mxu0
          %v2958 = vadd.f32 %v2786, %v2957
          %v2959 = vpop.f32.mrf.mxu0
          %v2960 = vadd.f32 %v2790, %v2959
          %2961 = vdwg.mxu0
          %2962 = vmatprep.subr.mxu0 %v1946
          %2963 = vmatpush1.msra.mxu0 %v1945
          %2964 = vmatprep.subr.mxu0 %v1942
          %2965 = vmatpush1.msra.mxu0 %v1941
          %2966 = vmatprep.subr.mxu0 %v1938
          %2967 = vmatpush1.msra.mxu0 %v1937
          %2968 = vmatprep.subr.mxu0 %v1934
          %2969 = vmatpush1.msra.mxu0 %v1933
          %2970 = vmatprep.subr.mxu0 %v1930
          %2971 = vmatpush1.msra.mxu0 %v1929
          %2972 = vmatprep.subr.mxu0 %v1926
          %2973 = vmatpush1.msra.mxu0 %v1925
          %2974 = vmatprep.subr.mxu0 %v1922
          %2975 = vmatpush1.msra.mxu0 %v1921
          %2976 = vmatprep.subr.mxu0 %v1918
          %2977 = vmatpush1.msra.mxu0 %v1917
          %2978 = vmatprep.subr.mxu0 %v1914
          %2979 = vmatpush1.msra.mxu0 %v1913
          %2980 = vmatprep.subr.mxu0 %v1910
          %2981 = vmatpush1.msra.mxu0 %v1909
          %2982 = vmatprep.subr.mxu0 %v1906
          %2983 = vmatpush1.msra.mxu0 %v1905
          %2984 = vmatprep.subr.mxu0 %v1902
          %2985 = vmatpush1.msra.mxu0 %v1901
          %2986 = vmatprep.subr.mxu0 %v1898
          %2987 = vmatpush1.msra.mxu0 %v1897
          %2988 = vmatprep.subr.mxu0 %v1894
          %2989 = vmatpush1.msra.mxu0 %v1893
          %2990 = vmatprep.subr.mxu0 %v1890
          %2991 = vmatpush1.msra.mxu0 %v1889
          %2992 = vmatprep.subr.mxu0 %v1886
          %2993 = vmatpush1.msra.mxu0 %v1885
          %2994 = vmatprep.subr.mxu0 %v2010
          %2995 = vmatpush2.msra.mxu0 %v2009
          %2996 = vmatprep.subr.mxu0 %v2006
          %2997 = vmatpush2.msra.mxu0 %v2005
          %2998 = vmatprep.subr.mxu0 %v2002
          %2999 = vmatpush2.msra.mxu0 %v2001
          %3000 = vmatprep.subr.mxu0 %v1998
          %3001 = vmatpush2.msra.mxu0 %v1997
          %3002 = vmatprep.subr.mxu0 %v1994
          %3003 = vmatpush2.msra.mxu0 %v1993
          %3004 = vmatprep.subr.mxu0 %v1990
          %3005 = vmatpush2.msra.mxu0 %v1989
          %3006 = vmatprep.subr.mxu0 %v1986
          %3007 = vmatpush2.msra.mxu0 %v1985
          %3008 = vmatprep.subr.mxu0 %v1982
          %3009 = vmatpush2.msra.mxu0 %v1981
          %3010 = vmatprep.subr.mxu0 %v1978
          %3011 = vmatpush2.msra.mxu0 %v1977
          %3012 = vmatprep.subr.mxu0 %v1974
          %3013 = vmatpush2.msra.mxu0 %v1973
          %3014 = vmatprep.subr.mxu0 %v1970
          %3015 = vmatpush2.msra.mxu0 %v1969
          %3016 = vmatprep.subr.mxu0 %v1966
          %3017 = vmatpush2.msra.mxu0 %v1965
          %3018 = vmatprep.subr.mxu0 %v1962
          %3019 = vmatpush2.msra.mxu0 %v1961
          %3020 = vmatprep.subr.mxu0 %v1958
          %3021 = vmatpush2.msra.mxu0 %v1957
          %3022 = vmatprep.subr.mxu0 %v1954
          %3023 = vmatpush2.msra.mxu0 %v1953
          %3024 = vmatprep.subr.mxu0 %v1950
          %3025 = vmatpush2.msra.mxu0 %v1949
          %3026 = vmatprep.mubr.f32.mxu0 %v2823
          %3027 = vmatmul.mubr.f32.gmra.mxu0 %v2821
          %v3028 = vpop.f32.mrf.mxu0
          %v3029 = vadd.f32 %v2958, %v3028
          %v3030 = vpop.f32.mrf.mxu0
          %v3031 = vadd.f32 %v2960, %v3030
          %3032 = vdwg.mxu0
          %3033 = vmatprep.subr.mxu0 %v2074
          %3034 = vmatpush1.msra.mxu0 %v2073
          %3035 = vmatprep.subr.mxu0 %v2070
          %3036 = vmatpush1.msra.mxu0 %v2069
          %3037 = vmatprep.subr.mxu0 %v2066
          %3038 = vmatpush1.msra.mxu0 %v2065
          %3039 = vmatprep.subr.mxu0 %v2062
          %3040 = vmatpush1.msra.mxu0 %v2061
          %3041 = vmatprep.subr.mxu0 %v2058
          %3042 = vmatpush1.msra.mxu0 %v2057
          %3043 = vmatprep.subr.mxu0 %v2054
          %3044 = vmatpush1.msra.mxu0 %v2053
          %3045 = vmatprep.subr.mxu0 %v2050
          %3046 = vmatpush1.msra.mxu0 %v2049
          %3047 = vmatprep.subr.mxu0 %v2046
          %3048 = vmatpush1.msra.mxu0 %v2045
          %3049 = vmatprep.subr.mxu0 %v2042
          %3050 = vmatpush1.msra.mxu0 %v2041
          %3051 = vmatprep.subr.mxu0 %v2038
          %3052 = vmatpush1.msra.mxu0 %v2037
          %3053 = vmatprep.subr.mxu0 %v2034
          %3054 = vmatpush1.msra.mxu0 %v2033
          %3055 = vmatprep.subr.mxu0 %v2030
          %3056 = vmatpush1.msra.mxu0 %v2029
          %3057 = vmatprep.subr.mxu0 %v2026
          %3058 = vmatpush1.msra.mxu0 %v2025
          %3059 = vmatprep.subr.mxu0 %v2022
          %3060 = vmatpush1.msra.mxu0 %v2021
          %3061 = vmatprep.subr.mxu0 %v2018
          %3062 = vmatpush1.msra.mxu0 %v2017
          %3063 = vmatprep.subr.mxu0 %v2014
          %3064 = vmatpush1.msra.mxu0 %v2013
          %3065 = vmatprep.subr.mxu0 %v2138
          %3066 = vmatpush2.msra.mxu0 %v2137
          %3067 = vmatprep.subr.mxu0 %v2134
          %3068 = vmatpush2.msra.mxu0 %v2133
          %3069 = vmatprep.subr.mxu0 %v2130
          %3070 = vmatpush2.msra.mxu0 %v2129
          %3071 = vmatprep.subr.mxu0 %v2126
          %3072 = vmatpush2.msra.mxu0 %v2125
          %3073 = vmatprep.subr.mxu0 %v2122
          %3074 = vmatpush2.msra.mxu0 %v2121
          %3075 = vmatprep.subr.mxu0 %v2118
          %3076 = vmatpush2.msra.mxu0 %v2117
          %3077 = vmatprep.subr.mxu0 %v2114
          %3078 = vmatpush2.msra.mxu0 %v2113
          %3079 = vmatprep.subr.mxu0 %v2110
          %3080 = vmatpush2.msra.mxu0 %v2109
          %3081 = vmatprep.subr.mxu0 %v2106
          %3082 = vmatpush2.msra.mxu0 %v2105
          %3083 = vmatprep.subr.mxu0 %v2102
          %3084 = vmatpush2.msra.mxu0 %v2101
          %3085 = vmatprep.subr.mxu0 %v2098
          %3086 = vmatpush2.msra.mxu0 %v2097
          %3087 = vmatprep.subr.mxu0 %v2094
          %3088 = vmatpush2.msra.mxu0 %v2093
          %3089 = vmatprep.subr.mxu0 %v2090
          %3090 = vmatpush2.msra.mxu0 %v2089
          %3091 = vmatprep.subr.mxu0 %v2086
          %3092 = vmatpush2.msra.mxu0 %v2085
          %3093 = vmatprep.subr.mxu0 %v2082
          %3094 = vmatpush2.msra.mxu0 %v2081
          %3095 = vmatprep.subr.mxu0 %v2078
          %3096 = vmatpush2.msra.mxu0 %v2077
          %3097 = vmatprep.mubr.f32.mxu0 %v2839
          %3098 = vmatmul.mubr.f32.gmra.mxu0 %v2831
          %v3099 = vpop.f32.mrf.mxu0
          %v3100 = vadd.f32 %v3029, %v3099
          %v3101 = vpop.f32.mrf.mxu0
          %v3102 = vadd.f32 %v3031, %v3101
          %3103 = vdwg.mxu0
          %3104 = vmatprep.subr.mxu0 %v2202
          %3105 = vmatpush1.msra.mxu0 %v2201
          %3106 = vmatprep.subr.mxu0 %v2198
          %3107 = vmatpush1.msra.mxu0 %v2197
          %3108 = vmatprep.subr.mxu0 %v2194
          %3109 = vmatpush1.msra.mxu0 %v2193
          %3110 = vmatprep.subr.mxu0 %v2190
          %3111 = vmatpush1.msra.mxu0 %v2189
          %3112 = vmatprep.subr.mxu0 %v2186
          %3113 = vmatpush1.msra.mxu0 %v2185
          %3114 = vmatprep.subr.mxu0 %v2182
          %3115 = vmatpush1.msra.mxu0 %v2181
          %3116 = vmatprep.subr.mxu0 %v2178
          %3117 = vmatpush1.msra.mxu0 %v2177
          %3118 = vmatprep.subr.mxu0 %v2174
          %3119 = vmatpush1.msra.mxu0 %v2173
          %3120 = vmatprep.subr.mxu0 %v2170
          %3121 = vmatpush1.msra.mxu0 %v2169
          %3122 = vmatprep.subr.mxu0 %v2166
          %3123 = vmatpush1.msra.mxu0 %v2165
          %3124 = vmatprep.subr.mxu0 %v2162
          %3125 = vmatpush1.msra.mxu0 %v2161
          %3126 = vmatprep.subr.mxu0 %v2158
          %3127 = vmatpush1.msra.mxu0 %v2157
          %3128 = vmatprep.subr.mxu0 %v2154
          %3129 = vmatpush1.msra.mxu0 %v2153
          %3130 = vmatprep.subr.mxu0 %v2150
          %3131 = vmatpush1.msra.mxu0 %v2149
          %3132 = vmatprep.subr.mxu0 %v2146
          %3133 = vmatpush1.msra.mxu0 %v2145
          %3134 = vmatprep.subr.mxu0 %v2142
          %3135 = vmatpush1.msra.mxu0 %v2141
          %3136 = vmatprep.subr.mxu0 %v2266
          %3137 = vmatpush2.msra.mxu0 %v2265
          %3138 = vmatprep.subr.mxu0 %v2262
          %3139 = vmatpush2.msra.mxu0 %v2261
          %3140 = vmatprep.subr.mxu0 %v2258
          %3141 = vmatpush2.msra.mxu0 %v2257
          %3142 = vmatprep.subr.mxu0 %v2254
          %3143 = vmatpush2.msra.mxu0 %v2253
          %3144 = vmatprep.subr.mxu0 %v2250
          %3145 = vmatpush2.msra.mxu0 %v2249
          %3146 = vmatprep.subr.mxu0 %v2246
          %3147 = vmatpush2.msra.mxu0 %v2245
          %3148 = vmatprep.subr.mxu0 %v2242
          %3149 = vmatpush2.msra.mxu0 %v2241
          %3150 = vmatprep.subr.mxu0 %v2238
          %3151 = vmatpush2.msra.mxu0 %v2237
          %3152 = vmatprep.subr.mxu0 %v2234
          %3153 = vmatpush2.msra.mxu0 %v2233
          %3154 = vmatprep.subr.mxu0 %v2230
          %3155 = vmatpush2.msra.mxu0 %v2229
          %3156 = vmatprep.subr.mxu0 %v2226
          %3157 = vmatpush2.msra.mxu0 %v2225
          %3158 = vmatprep.subr.mxu0 %v2222
          %3159 = vmatpush2.msra.mxu0 %v2221
          %3160 = vmatprep.subr.mxu0 %v2218
          %3161 = vmatpush2.msra.mxu0 %v2217
          %3162 = vmatprep.subr.mxu0 %v2214
          %3163 = vmatpush2.msra.mxu0 %v2213
          %3164 = vmatprep.subr.mxu0 %v2210
          %3165 = vmatpush2.msra.mxu0 %v2209
          %3166 = vmatprep.subr.mxu0 %v2206
          %3167 = vmatpush2.msra.mxu0 %v2205
          %3168 = vmatprep.mubr.f32.mxu0 %v2840
          %3169 = vmatmul.mubr.f32.gmra.mxu0 %v2838
          %v3170 = vpop.f32.mrf.mxu0
          %v3171 = vadd.f32 %v3100, %v3170
          %v3172 = vpop.f32.mrf.mxu0
          %v3173 = vadd.f32 %v3102, %v3172
          %3174 = vdwg.mxu0
          %3175 = vmatprep.subr.mxu0 %v2330
          %3176 = vmatpush1.msra.mxu0 %v2329
          %3177 = vmatprep.subr.mxu0 %v2326
          %3178 = vmatpush1.msra.mxu0 %v2325
          %3179 = vmatprep.subr.mxu0 %v2322
          %3180 = vmatpush1.msra.mxu0 %v2321
          %3181 = vmatprep.subr.mxu0 %v2318
          %3182 = vmatpush1.msra.mxu0 %v2317
          %3183 = vmatprep.subr.mxu0 %v2314
          %3184 = vmatpush1.msra.mxu0 %v2313
          %3185 = vmatprep.subr.mxu0 %v2310
          %3186 = vmatpush1.msra.mxu0 %v2309
          %3187 = vmatprep.subr.mxu0 %v2306
          %3188 = vmatpush1.msra.mxu0 %v2305
          %3189 = vmatprep.subr.mxu0 %v2302
          %3190 = vmatpush1.msra.mxu0 %v2301
          %3191 = vmatprep.subr.mxu0 %v2298
          %3192 = vmatpush1.msra.mxu0 %v2297
          %3193 = vmatprep.subr.mxu0 %v2294
          %3194 = vmatpush1.msra.mxu0 %v2293
          %3195 = vmatprep.subr.mxu0 %v2290
          %3196 = vmatpush1.msra.mxu0 %v2289
          %3197 = vmatprep.subr.mxu0 %v2286
          %3198 = vmatpush1.msra.mxu0 %v2285
          %3199 = vmatprep.subr.mxu0 %v2282
          %3200 = vmatpush1.msra.mxu0 %v2281
          %3201 = vmatprep.subr.mxu0 %v2278
          %3202 = vmatpush1.msra.mxu0 %v2277
          %3203 = vmatprep.subr.mxu0 %v2274
          %3204 = vmatpush1.msra.mxu0 %v2273
          %3205 = vmatprep.subr.mxu0 %v2270
          %3206 = vmatpush1.msra.mxu0 %v2269
          %3207 = vmatprep.subr.mxu0 %v2394
          %3208 = vmatpush2.msra.mxu0 %v2393
          %3209 = vmatprep.subr.mxu0 %v2390
          %3210 = vmatpush2.msra.mxu0 %v2389
          %3211 = vmatprep.subr.mxu0 %v2386
          %3212 = vmatpush2.msra.mxu0 %v2385
          %3213 = vmatprep.subr.mxu0 %v2382
          %3214 = vmatpush2.msra.mxu0 %v2381
          %3215 = vmatprep.subr.mxu0 %v2378
          %3216 = vmatpush2.msra.mxu0 %v2377
          %3217 = vmatprep.subr.mxu0 %v2374
          %3218 = vmatpush2.msra.mxu0 %v2373
          %3219 = vmatprep.subr.mxu0 %v2370
          %3220 = vmatpush2.msra.mxu0 %v2369
          %3221 = vmatprep.subr.mxu0 %v2366
          %3222 = vmatpush2.msra.mxu0 %v2365
          %3223 = vmatprep.subr.mxu0 %v2362
          %3224 = vmatpush2.msra.mxu0 %v2361
          %3225 = vmatprep.subr.mxu0 %v2358
          %3226 = vmatpush2.msra.mxu0 %v2357
          %3227 = vmatprep.subr.mxu0 %v2354
          %3228 = vmatpush2.msra.mxu0 %v2353
          %3229 = vmatprep.subr.mxu0 %v2350
          %3230 = vmatpush2.msra.mxu0 %v2349
          %3231 = vmatprep.subr.mxu0 %v2346
          %3232 = vmatpush2.msra.mxu0 %v2345
          %3233 = vmatprep.subr.mxu0 %v2342
          %3234 = vmatpush2.msra.mxu0 %v2341
          %3235 = vmatprep.subr.mxu0 %v2338
          %3236 = vmatpush2.msra.mxu0 %v2337
          %3237 = vmatprep.subr.mxu0 %v2334
          %3238 = vmatpush2.msra.mxu0 %v2333
          %3239 = vmatprep.mubr.f32.mxu0 %v2856
          %3240 = vmatmul.mubr.f32.gmra.mxu0 %v2848
          %v3241 = vpop.f32.mrf.mxu0
          %v3242 = vadd.f32 %v3171, %v3241
          %v3243 = vpop.f32.mrf.mxu0
          %v3244 = vadd.f32 %v3173, %v3243
          %3245 = vdwg.mxu0
          %3246 = vmatprep.subr.mxu0 %v2458
          %3247 = vmatpush1.msra.mxu0 %v2457
          %3248 = vmatprep.subr.mxu0 %v2454
          %3249 = vmatpush1.msra.mxu0 %v2453
          %3250 = vmatprep.subr.mxu0 %v2450
          %3251 = vmatpush1.msra.mxu0 %v2449
          %3252 = vmatprep.subr.mxu0 %v2446
          %3253 = vmatpush1.msra.mxu0 %v2445
          %3254 = vmatprep.subr.mxu0 %v2442
          %3255 = vmatpush1.msra.mxu0 %v2441
          %3256 = vmatprep.subr.mxu0 %v2438
          %3257 = vmatpush1.msra.mxu0 %v2437
          %3258 = vmatprep.subr.mxu0 %v2434
          %3259 = vmatpush1.msra.mxu0 %v2433
          %3260 = vmatprep.subr.mxu0 %v2430
          %3261 = vmatpush1.msra.mxu0 %v2429
          %3262 = vmatprep.subr.mxu0 %v2426
          %3263 = vmatpush1.msra.mxu0 %v2425
          %3264 = vmatprep.subr.mxu0 %v2422
          %3265 = vmatpush1.msra.mxu0 %v2421
          %3266 = vmatprep.subr.mxu0 %v2418
          %3267 = vmatpush1.msra.mxu0 %v2417
          %3268 = vmatprep.subr.mxu0 %v2414
          %3269 = vmatpush1.msra.mxu0 %v2413
          %3270 = vmatprep.subr.mxu0 %v2410
          %3271 = vmatpush1.msra.mxu0 %v2409
          %3272 = vmatprep.subr.mxu0 %v2406
          %3273 = vmatpush1.msra.mxu0 %v2405
          %3274 = vmatprep.subr.mxu0 %v2402
          %3275 = vmatpush1.msra.mxu0 %v2401
          %3276 = vmatprep.subr.mxu0 %v2398
          %3277 = vmatpush1.msra.mxu0 %v2397
          %3278 = vmatprep.subr.mxu0 %v2522
          %3279 = vmatpush2.msra.mxu0 %v2521
          %3280 = vmatprep.subr.mxu0 %v2518
          %3281 = vmatpush2.msra.mxu0 %v2517
          %3282 = vmatprep.subr.mxu0 %v2514
          %3283 = vmatpush2.msra.mxu0 %v2513
          %3284 = vmatprep.subr.mxu0 %v2510
          %3285 = vmatpush2.msra.mxu0 %v2509
          %3286 = vmatprep.subr.mxu0 %v2506
          %3287 = vmatpush2.msra.mxu0 %v2505
          %3288 = vmatprep.subr.mxu0 %v2502
          %3289 = vmatpush2.msra.mxu0 %v2501
          %3290 = vmatprep.subr.mxu0 %v2498
          %3291 = vmatpush2.msra.mxu0 %v2497
          %3292 = vmatprep.subr.mxu0 %v2494
          %3293 = vmatpush2.msra.mxu0 %v2493
          %3294 = vmatprep.subr.mxu0 %v2490
          %3295 = vmatpush2.msra.mxu0 %v2489
          %3296 = vmatprep.subr.mxu0 %v2486
          %3297 = vmatpush2.msra.mxu0 %v2485
          %3298 = vmatprep.subr.mxu0 %v2482
          %3299 = vmatpush2.msra.mxu0 %v2481
          %3300 = vmatprep.subr.mxu0 %v2478
          %3301 = vmatpush2.msra.mxu0 %v2477
          %3302 = vmatprep.subr.mxu0 %v2474
          %3303 = vmatpush2.msra.mxu0 %v2473
          %3304 = vmatprep.subr.mxu0 %v2470
          %3305 = vmatpush2.msra.mxu0 %v2469
          %3306 = vmatprep.subr.mxu0 %v2466
          %3307 = vmatpush2.msra.mxu0 %v2465
          %3308 = vmatprep.subr.mxu0 %v2462
          %3309 = vmatpush2.msra.mxu0 %v2461
          %3310 = vmatprep.mubr.f32.mxu0 %v2857
          %3311 = vmatmul.mubr.f32.gmra.mxu0 %v2855
          %v3312 = vpop.f32.mrf.mxu0
          %v3313 = vadd.f32 %v3242, %v3312
          %v3314 = vpop.f32.mrf.mxu0
          %v3315 = vadd.f32 %v3244, %v3314
          %3316 = vdwg.mxu0
          %3317 = vmatprep.subr.mxu0 %v2586
          %3318 = vmatpush1.msra.mxu0 %v2585
          %3319 = vmatprep.subr.mxu0 %v2582
          %3320 = vmatpush1.msra.mxu0 %v2581
          %3321 = vmatprep.subr.mxu0 %v2578
          %3322 = vmatpush1.msra.mxu0 %v2577
          %3323 = vmatprep.subr.mxu0 %v2574
          %3324 = vmatpush1.msra.mxu0 %v2573
          %3325 = vmatprep.subr.mxu0 %v2570
          %3326 = vmatpush1.msra.mxu0 %v2569
          %3327 = vmatprep.subr.mxu0 %v2566
          %3328 = vmatpush1.msra.mxu0 %v2565
          %3329 = vmatprep.subr.mxu0 %v2562
          %3330 = vmatpush1.msra.mxu0 %v2561
          %3331 = vmatprep.subr.mxu0 %v2558
          %3332 = vmatpush1.msra.mxu0 %v2557
          %3333 = vmatprep.subr.mxu0 %v2554
          %3334 = vmatpush1.msra.mxu0 %v2553
          %3335 = vmatprep.subr.mxu0 %v2550
          %3336 = vmatpush1.msra.mxu0 %v2549
          %3337 = vmatprep.subr.mxu0 %v2546
          %3338 = vmatpush1.msra.mxu0 %v2545
          %3339 = vmatprep.subr.mxu0 %v2542
          %3340 = vmatpush1.msra.mxu0 %v2541
          %3341 = vmatprep.subr.mxu0 %v2538
          %3342 = vmatpush1.msra.mxu0 %v2537
          %3343 = vmatprep.subr.mxu0 %v2534
          %3344 = vmatpush1.msra.mxu0 %v2533
          %3345 = vmatprep.subr.mxu0 %v2530
          %3346 = vmatpush1.msra.mxu0 %v2529
          %3347 = vmatprep.subr.mxu0 %v2526
          %3348 = vmatpush1.msra.mxu0 %v2525
          %3349 = vmatprep.subr.mxu0 %v2650
          %3350 = vmatpush2.msra.mxu0 %v2649
          %3351 = vmatprep.subr.mxu0 %v2646
          %3352 = vmatpush2.msra.mxu0 %v2645
          %3353 = vmatprep.subr.mxu0 %v2642
          %3354 = vmatpush2.msra.mxu0 %v2641
          %3355 = vmatprep.subr.mxu0 %v2638
          %3356 = vmatpush2.msra.mxu0 %v2637
          %3357 = vmatprep.subr.mxu0 %v2634
          %3358 = vmatpush2.msra.mxu0 %v2633
          %3359 = vmatprep.subr.mxu0 %v2630
          %3360 = vmatpush2.msra.mxu0 %v2629
          %3361 = vmatprep.subr.mxu0 %v2626
          %3362 = vmatpush2.msra.mxu0 %v2625
          %3363 = vmatprep.subr.mxu0 %v2622
          %3364 = vmatpush2.msra.mxu0 %v2621
          %3365 = vmatprep.subr.mxu0 %v2618
          %3366 = vmatpush2.msra.mxu0 %v2617
          %3367 = vmatprep.subr.mxu0 %v2614
          %3368 = vmatpush2.msra.mxu0 %v2613
          %3369 = vmatprep.subr.mxu0 %v2610
          %3370 = vmatpush2.msra.mxu0 %v2609
          %3371 = vmatprep.subr.mxu0 %v2606
          %3372 = vmatpush2.msra.mxu0 %v2605
          %3373 = vmatprep.subr.mxu0 %v2602
          %3374 = vmatpush2.msra.mxu0 %v2601
          %3375 = vmatprep.subr.mxu0 %v2598
          %3376 = vmatpush2.msra.mxu0 %v2597
          %3377 = vmatprep.subr.mxu0 %v2594
          %3378 = vmatpush2.msra.mxu0 %v2593
          %3379 = vmatprep.subr.mxu0 %v2590
          %3380 = vmatpush2.msra.mxu0 %v2589
          %3381 = vmatprep.mubr.f32.mxu0 %v2873
          %3382 = vmatmul.mubr.f32.gmra.mxu0 %v2865
          %v3383 = vpop.f32.mrf.mxu0
          %v3384 = vadd.f32 %v3313, %v3383
          %v3385 = vpop.f32.mrf.mxu0
          %v3386 = vadd.f32 %v3315, %v3385
          %3387 = vdwg.mxu0
          %3388 = vmatprep.subr.mxu0 %v2714
          %3389 = vmatpush1.msra.mxu0 %v2713
          %3390 = vmatprep.subr.mxu0 %v2710
          %3391 = vmatpush1.msra.mxu0 %v2709
          %3392 = vmatprep.subr.mxu0 %v2706
          %3393 = vmatpush1.msra.mxu0 %v2705
          %3394 = vmatprep.subr.mxu0 %v2702
          %3395 = vmatpush1.msra.mxu0 %v2701
          %3396 = vmatprep.subr.mxu0 %v2698
          %3397 = vmatpush1.msra.mxu0 %v2697
          %3398 = vmatprep.subr.mxu0 %v2694
          %3399 = vmatpush1.msra.mxu0 %v2693
          %3400 = vmatprep.subr.mxu0 %v2690
          %3401 = vmatpush1.msra.mxu0 %v2689
          %3402 = vmatprep.subr.mxu0 %v2686
          %3403 = vmatpush1.msra.mxu0 %v2685
          %3404 = vmatprep.subr.mxu0 %v2682
          %3405 = vmatpush1.msra.mxu0 %v2681
          %3406 = vmatprep.subr.mxu0 %v2678
          %3407 = vmatpush1.msra.mxu0 %v2677
          %3408 = vmatprep.subr.mxu0 %v2674
          %3409 = vmatpush1.msra.mxu0 %v2673
          %3410 = vmatprep.subr.mxu0 %v2670
          %3411 = vmatpush1.msra.mxu0 %v2669
          %3412 = vmatprep.subr.mxu0 %v2666
          %3413 = vmatpush1.msra.mxu0 %v2665
          %3414 = vmatprep.subr.mxu0 %v2662
          %3415 = vmatpush1.msra.mxu0 %v2661
          %3416 = vmatprep.subr.mxu0 %v2658
          %3417 = vmatpush1.msra.mxu0 %v2657
          %3418 = vmatprep.subr.mxu0 %v2654
          %3419 = vmatpush1.msra.mxu0 %v2653
          %3420 = vmatprep.subr.mxu0 %v2778
          %3421 = vmatpush2.msra.mxu0 %v2777
          %3422 = vmatprep.subr.mxu0 %v2774
          %3423 = vmatpush2.msra.mxu0 %v2773
          %3424 = vmatprep.subr.mxu0 %v2770
          %3425 = vmatpush2.msra.mxu0 %v2769
          %3426 = vmatprep.subr.mxu0 %v2766
          %3427 = vmatpush2.msra.mxu0 %v2765
          %3428 = vmatprep.subr.mxu0 %v2762
          %3429 = vmatpush2.msra.mxu0 %v2761
          %3430 = vmatprep.subr.mxu0 %v2758
          %3431 = vmatpush2.msra.mxu0 %v2757
          %3432 = vmatprep.subr.mxu0 %v2754
          %3433 = vmatpush2.msra.mxu0 %v2753
          %3434 = vmatprep.subr.mxu0 %v2750
          %3435 = vmatpush2.msra.mxu0 %v2749
          %3436 = vmatprep.subr.mxu0 %v2746
          %3437 = vmatpush2.msra.mxu0 %v2745
          %3438 = vmatprep.subr.mxu0 %v2742
          %3439 = vmatpush2.msra.mxu0 %v2741
          %3440 = vmatprep.subr.mxu0 %v2738
          %3441 = vmatpush2.msra.mxu0 %v2737
          %3442 = vmatprep.subr.mxu0 %v2734
          %3443 = vmatpush2.msra.mxu0 %v2733
          %3444 = vmatprep.subr.mxu0 %v2730
          %3445 = vmatpush2.msra.mxu0 %v2729
          %3446 = vmatprep.subr.mxu0 %v2726
          %3447 = vmatpush2.msra.mxu0 %v2725
          %3448 = vmatprep.subr.mxu0 %v2722
          %3449 = vmatpush2.msra.mxu0 %v2721
          %3450 = vmatprep.subr.mxu0 %v2718
          %3451 = vmatpush2.msra.mxu0 %v2717
          %3452 = vmatprep.mubr.f32.mxu0 %v2874
          %3453 = vmatmul.mubr.f32.gmra.mxu0 %v2872
          %v3454 = vpop.f32.mrf.mxu0
          %v3455 = vadd.f32 %v3384, %v3454
          %v3456 = vpop.f32.mrf.mxu0
          %v3457 = vadd.f32 %v3386, %v3456
          %3458 = vdwg.mxu0
          %3459 = vmatprep.subr.mxu0 %v1820
          %3460 = vmatpush1.msra.mxu0 %v1819
          %3461 = vmatprep.subr.mxu0 %v1816
          %3462 = vmatpush1.msra.mxu0 %v1815
          %3463 = vmatprep.subr.mxu0 %v1812
          %3464 = vmatpush1.msra.mxu0 %v1811
          %3465 = vmatprep.subr.mxu0 %v1808
          %3466 = vmatpush1.msra.mxu0 %v1807
          %3467 = vmatprep.subr.mxu0 %v1804
          %3468 = vmatpush1.msra.mxu0 %v1803
          %3469 = vmatprep.subr.mxu0 %v1800
          %3470 = vmatpush1.msra.mxu0 %v1799
          %3471 = vmatprep.subr.mxu0 %v1796
          %3472 = vmatpush1.msra.mxu0 %v1795
          %3473 = vmatprep.subr.mxu0 %v1792
          %3474 = vmatpush1.msra.mxu0 %v1791
          %3475 = vmatprep.subr.mxu0 %v1788
          %3476 = vmatpush1.msra.mxu0 %v1787
          %3477 = vmatprep.subr.mxu0 %v1784
          %3478 = vmatpush1.msra.mxu0 %v1783
          %3479 = vmatprep.subr.mxu0 %v1780
          %3480 = vmatpush1.msra.mxu0 %v1779
          %3481 = vmatprep.subr.mxu0 %v1776
          %3482 = vmatpush1.msra.mxu0 %v1775
          %3483 = vmatprep.subr.mxu0 %v1772
          %3484 = vmatpush1.msra.mxu0 %v1771
          %3485 = vmatprep.subr.mxu0 %v1768
          %3486 = vmatpush1.msra.mxu0 %v1767
          %3487 = vmatprep.subr.mxu0 %v1764
          %3488 = vmatpush1.msra.mxu0 %v1763
          %3489 = vmatprep.subr.mxu0 %v1760
          %3490 = vmatpush1.msra.mxu0 %v1759
          %3491 = vmatprep.subr.mxu0 %v1884
          %3492 = vmatpush2.msra.mxu0 %v1883
          %3493 = vmatprep.subr.mxu0 %v1880
          %3494 = vmatpush2.msra.mxu0 %v1879
          %3495 = vmatprep.subr.mxu0 %v1876
          %3496 = vmatpush2.msra.mxu0 %v1875
          %3497 = vmatprep.subr.mxu0 %v1872
          %3498 = vmatpush2.msra.mxu0 %v1871
          %3499 = vmatprep.subr.mxu0 %v1868
          %3500 = vmatpush2.msra.mxu0 %v1867
          %3501 = vmatprep.subr.mxu0 %v1864
          %3502 = vmatpush2.msra.mxu0 %v1863
          %3503 = vmatprep.subr.mxu0 %v1860
          %3504 = vmatpush2.msra.mxu0 %v1859
          %3505 = vmatprep.subr.mxu0 %v1856
          %3506 = vmatpush2.msra.mxu0 %v1855
          %3507 = vmatprep.subr.mxu0 %v1852
          %3508 = vmatpush2.msra.mxu0 %v1851
          %3509 = vmatprep.subr.mxu0 %v1848
          %3510 = vmatpush2.msra.mxu0 %v1847
          %3511 = vmatprep.subr.mxu0 %v1844
          %3512 = vmatpush2.msra.mxu0 %v1843
          %3513 = vmatprep.subr.mxu0 %v1840
          %3514 = vmatpush2.msra.mxu0 %v1839
          %3515 = vmatprep.subr.mxu0 %v1836
          %3516 = vmatpush2.msra.mxu0 %v1835
          %3517 = vmatprep.subr.mxu0 %v1832
          %3518 = vmatpush2.msra.mxu0 %v1831
          %3519 = vmatprep.subr.mxu0 %v1828
          %3520 = vmatpush2.msra.mxu0 %v1827
          %3521 = vmatprep.subr.mxu0 %v1824
          %3522 = vmatpush2.msra.mxu0 %v1823
          %3523 = vmatprep.mubr.f32.mxu0 %v2822
          %3524 = vmatmul.mubr.f32.gmra.mxu0 %v2814
          %v3525 = vpop.f32.mrf.mxu0
          %v3526 = vadd.f32 %v2794, %v3525
          %v3527 = vpop.f32.mrf.mxu0
          %v3528 = vadd.f32 %v2798, %v3527
          %3529 = vdwg.mxu0
          %3530 = vmatprep.subr.mxu0 %v1948
          %3531 = vmatpush1.msra.mxu0 %v1947
          %3532 = vmatprep.subr.mxu0 %v1944
          %3533 = vmatpush1.msra.mxu0 %v1943
          %3534 = vmatprep.subr.mxu0 %v1940
          %3535 = vmatpush1.msra.mxu0 %v1939
          %3536 = vmatprep.subr.mxu0 %v1936
          %3537 = vmatpush1.msra.mxu0 %v1935
          %3538 = vmatprep.subr.mxu0 %v1932
          %3539 = vmatpush1.msra.mxu0 %v1931
          %3540 = vmatprep.subr.mxu0 %v1928
          %3541 = vmatpush1.msra.mxu0 %v1927
          %3542 = vmatprep.subr.mxu0 %v1924
          %3543 = vmatpush1.msra.mxu0 %v1923
          %3544 = vmatprep.subr.mxu0 %v1920
          %3545 = vmatpush1.msra.mxu0 %v1919
          %3546 = vmatprep.subr.mxu0 %v1916
          %3547 = vmatpush1.msra.mxu0 %v1915
          %3548 = vmatprep.subr.mxu0 %v1912
          %3549 = vmatpush1.msra.mxu0 %v1911
          %3550 = vmatprep.subr.mxu0 %v1908
          %3551 = vmatpush1.msra.mxu0 %v1907
          %3552 = vmatprep.subr.mxu0 %v1904
          %3553 = vmatpush1.msra.mxu0 %v1903
          %3554 = vmatprep.subr.mxu0 %v1900
          %3555 = vmatpush1.msra.mxu0 %v1899
          %3556 = vmatprep.subr.mxu0 %v1896
          %3557 = vmatpush1.msra.mxu0 %v1895
          %3558 = vmatprep.subr.mxu0 %v1892
          %3559 = vmatpush1.msra.mxu0 %v1891
          %3560 = vmatprep.subr.mxu0 %v1888
          %3561 = vmatpush1.msra.mxu0 %v1887
          %3562 = vmatprep.subr.mxu0 %v2012
          %3563 = vmatpush2.msra.mxu0 %v2011
          %3564 = vmatprep.subr.mxu0 %v2008
          %3565 = vmatpush2.msra.mxu0 %v2007
          %3566 = vmatprep.subr.mxu0 %v2004
          %3567 = vmatpush2.msra.mxu0 %v2003
          %3568 = vmatprep.subr.mxu0 %v2000
          %3569 = vmatpush2.msra.mxu0 %v1999
          %3570 = vmatprep.subr.mxu0 %v1996
          %3571 = vmatpush2.msra.mxu0 %v1995
          %3572 = vmatprep.subr.mxu0 %v1992
          %3573 = vmatpush2.msra.mxu0 %v1991
          %3574 = vmatprep.subr.mxu0 %v1988
          %3575 = vmatpush2.msra.mxu0 %v1987
          %3576 = vmatprep.subr.mxu0 %v1984
          %3577 = vmatpush2.msra.mxu0 %v1983
          %3578 = vmatprep.subr.mxu0 %v1980
          %3579 = vmatpush2.msra.mxu0 %v1979
          %3580 = vmatprep.subr.mxu0 %v1976
          %3581 = vmatpush2.msra.mxu0 %v1975
          %3582 = vmatprep.subr.mxu0 %v1972
          %3583 = vmatpush2.msra.mxu0 %v1971
          %3584 = vmatprep.subr.mxu0 %v1968
          %3585 = vmatpush2.msra.mxu0 %v1967
          %3586 = vmatprep.subr.mxu0 %v1964
          %3587 = vmatpush2.msra.mxu0 %v1963
          %3588 = vmatprep.subr.mxu0 %v1960
          %3589 = vmatpush2.msra.mxu0 %v1959
          %3590 = vmatprep.subr.mxu0 %v1956
          %3591 = vmatpush2.msra.mxu0 %v1955
          %3592 = vmatprep.subr.mxu0 %v1952
          %3593 = vmatpush2.msra.mxu0 %v1951
          %3594 = vmatprep.mubr.f32.mxu0 %v2823
          %3595 = vmatmul.mubr.f32.gmra.mxu0 %v2821
          %v3596 = vpop.f32.mrf.mxu0
          %v3597 = vadd.f32 %v3526, %v3596
          %v3598 = vpop.f32.mrf.mxu0
          %v3599 = vadd.f32 %v3528, %v3598
          %3600 = vdwg.mxu0
          %3601 = vmatprep.subr.mxu0 %v2076
          %3602 = vmatpush1.msra.mxu0 %v2075
          %3603 = vmatprep.subr.mxu0 %v2072
          %3604 = vmatpush1.msra.mxu0 %v2071
          %3605 = vmatprep.subr.mxu0 %v2068
          %3606 = vmatpush1.msra.mxu0 %v2067
          %3607 = vmatprep.subr.mxu0 %v2064
          %3608 = vmatpush1.msra.mxu0 %v2063
          %3609 = vmatprep.subr.mxu0 %v2060
          %3610 = vmatpush1.msra.mxu0 %v2059
          %3611 = vmatprep.subr.mxu0 %v2056
          %3612 = vmatpush1.msra.mxu0 %v2055
          %3613 = vmatprep.subr.mxu0 %v2052
          %3614 = vmatpush1.msra.mxu0 %v2051
          %3615 = vmatprep.subr.mxu0 %v2048
          %3616 = vmatpush1.msra.mxu0 %v2047
          %3617 = vmatprep.subr.mxu0 %v2044
          %3618 = vmatpush1.msra.mxu0 %v2043
          %3619 = vmatprep.subr.mxu0 %v2040
          %3620 = vmatpush1.msra.mxu0 %v2039
          %3621 = vmatprep.subr.mxu0 %v2036
          %3622 = vmatpush1.msra.mxu0 %v2035
          %3623 = vmatprep.subr.mxu0 %v2032
          %3624 = vmatpush1.msra.mxu0 %v2031
          %3625 = vmatprep.subr.mxu0 %v2028
          %3626 = vmatpush1.msra.mxu0 %v2027
          %3627 = vmatprep.subr.mxu0 %v2024
          %3628 = vmatpush1.msra.mxu0 %v2023
          %3629 = vmatprep.subr.mxu0 %v2020
          %3630 = vmatpush1.msra.mxu0 %v2019
          %3631 = vmatprep.subr.mxu0 %v2016
          %3632 = vmatpush1.msra.mxu0 %v2015
          %3633 = vmatprep.subr.mxu0 %v2140
          %3634 = vmatpush2.msra.mxu0 %v2139
          %3635 = vmatprep.subr.mxu0 %v2136
          %3636 = vmatpush2.msra.mxu0 %v2135
          %3637 = vmatprep.subr.mxu0 %v2132
          %3638 = vmatpush2.msra.mxu0 %v2131
          %3639 = vmatprep.subr.mxu0 %v2128
          %3640 = vmatpush2.msra.mxu0 %v2127
          %3641 = vmatprep.subr.mxu0 %v2124
          %3642 = vmatpush2.msra.mxu0 %v2123
          %3643 = vmatprep.subr.mxu0 %v2120
          %3644 = vmatpush2.msra.mxu0 %v2119
          %3645 = vmatprep.subr.mxu0 %v2116
          %3646 = vmatpush2.msra.mxu0 %v2115
          %3647 = vmatprep.subr.mxu0 %v2112
          %3648 = vmatpush2.msra.mxu0 %v2111
          %3649 = vmatprep.subr.mxu0 %v2108
          %3650 = vmatpush2.msra.mxu0 %v2107
          %3651 = vmatprep.subr.mxu0 %v2104
          %3652 = vmatpush2.msra.mxu0 %v2103
          %3653 = vmatprep.subr.mxu0 %v2100
          %3654 = vmatpush2.msra.mxu0 %v2099
          %3655 = vmatprep.subr.mxu0 %v2096
          %3656 = vmatpush2.msra.mxu0 %v2095
          %3657 = vmatprep.subr.mxu0 %v2092
          %3658 = vmatpush2.msra.mxu0 %v2091
          %3659 = vmatprep.subr.mxu0 %v2088
          %3660 = vmatpush2.msra.mxu0 %v2087
          %3661 = vmatprep.subr.mxu0 %v2084
          %3662 = vmatpush2.msra.mxu0 %v2083
          %3663 = vmatprep.subr.mxu0 %v2080
          %3664 = vmatpush2.msra.mxu0 %v2079
          %3665 = vmatprep.mubr.f32.mxu0 %v2839
          %3666 = vmatmul.mubr.f32.gmra.mxu0 %v2831
          %v3667 = vpop.f32.mrf.mxu0
          %v3668 = vadd.f32 %v3597, %v3667
          %v3669 = vpop.f32.mrf.mxu0
          %v3670 = vadd.f32 %v3599, %v3669
          %3671 = vdwg.mxu0
          %3672 = vmatprep.subr.mxu0 %v2204
          %3673 = vmatpush1.msra.mxu0 %v2203
          %3674 = vmatprep.subr.mxu0 %v2200
          %3675 = vmatpush1.msra.mxu0 %v2199
          %3676 = vmatprep.subr.mxu0 %v2196
          %3677 = vmatpush1.msra.mxu0 %v2195
          %3678 = vmatprep.subr.mxu0 %v2192
          %3679 = vmatpush1.msra.mxu0 %v2191
          %3680 = vmatprep.subr.mxu0 %v2188
          %3681 = vmatpush1.msra.mxu0 %v2187
          %3682 = vmatprep.subr.mxu0 %v2184
          %3683 = vmatpush1.msra.mxu0 %v2183
          %3684 = vmatprep.subr.mxu0 %v2180
          %3685 = vmatpush1.msra.mxu0 %v2179
          %3686 = vmatprep.subr.mxu0 %v2176
          %3687 = vmatpush1.msra.mxu0 %v2175
          %3688 = vmatprep.subr.mxu0 %v2172
          %3689 = vmatpush1.msra.mxu0 %v2171
          %3690 = vmatprep.subr.mxu0 %v2168
          %3691 = vmatpush1.msra.mxu0 %v2167
          %3692 = vmatprep.subr.mxu0 %v2164
          %3693 = vmatpush1.msra.mxu0 %v2163
          %3694 = vmatprep.subr.mxu0 %v2160
          %3695 = vmatpush1.msra.mxu0 %v2159
          %3696 = vmatprep.subr.mxu0 %v2156
          %3697 = vmatpush1.msra.mxu0 %v2155
          %3698 = vmatprep.subr.mxu0 %v2152
          %3699 = vmatpush1.msra.mxu0 %v2151
          %3700 = vmatprep.subr.mxu0 %v2148
          %3701 = vmatpush1.msra.mxu0 %v2147
          %3702 = vmatprep.subr.mxu0 %v2144
          %3703 = vmatpush1.msra.mxu0 %v2143
          %3704 = vmatprep.subr.mxu0 %v2268
          %3705 = vmatpush2.msra.mxu0 %v2267
          %3706 = vmatprep.subr.mxu0 %v2264
          %3707 = vmatpush2.msra.mxu0 %v2263
          %3708 = vmatprep.subr.mxu0 %v2260
          %3709 = vmatpush2.msra.mxu0 %v2259
          %3710 = vmatprep.subr.mxu0 %v2256
          %3711 = vmatpush2.msra.mxu0 %v2255
          %3712 = vmatprep.subr.mxu0 %v2252
          %3713 = vmatpush2.msra.mxu0 %v2251
          %3714 = vmatprep.subr.mxu0 %v2248
          %3715 = vmatpush2.msra.mxu0 %v2247
          %3716 = vmatprep.subr.mxu0 %v2244
          %3717 = vmatpush2.msra.mxu0 %v2243
          %3718 = vmatprep.subr.mxu0 %v2240
          %3719 = vmatpush2.msra.mxu0 %v2239
          %3720 = vmatprep.subr.mxu0 %v2236
          %3721 = vmatpush2.msra.mxu0 %v2235
          %3722 = vmatprep.subr.mxu0 %v2232
          %3723 = vmatpush2.msra.mxu0 %v2231
          %3724 = vmatprep.subr.mxu0 %v2228
          %3725 = vmatpush2.msra.mxu0 %v2227
          %3726 = vmatprep.subr.mxu0 %v2224
          %3727 = vmatpush2.msra.mxu0 %v2223
          %3728 = vmatprep.subr.mxu0 %v2220
          %3729 = vmatpush2.msra.mxu0 %v2219
          %3730 = vmatprep.subr.mxu0 %v2216
          %3731 = vmatpush2.msra.mxu0 %v2215
          %3732 = vmatprep.subr.mxu0 %v2212
          %3733 = vmatpush2.msra.mxu0 %v2211
          %3734 = vmatprep.subr.mxu0 %v2208
          %3735 = vmatpush2.msra.mxu0 %v2207
          %3736 = vmatprep.mubr.f32.mxu0 %v2840
          %3737 = vmatmul.mubr.f32.gmra.mxu0 %v2838
          %v3738 = vpop.f32.mrf.mxu0
          %v3739 = vadd.f32 %v3668, %v3738
          %v3740 = vpop.f32.mrf.mxu0
          %v3741 = vadd.f32 %v3670, %v3740
          %3742 = vdwg.mxu0
          %3743 = vmatprep.subr.mxu0 %v2332
          %3744 = vmatpush1.msra.mxu0 %v2331
          %3745 = vmatprep.subr.mxu0 %v2328
          %3746 = vmatpush1.msra.mxu0 %v2327
          %3747 = vmatprep.subr.mxu0 %v2324
          %3748 = vmatpush1.msra.mxu0 %v2323
          %3749 = vmatprep.subr.mxu0 %v2320
          %3750 = vmatpush1.msra.mxu0 %v2319
          %3751 = vmatprep.subr.mxu0 %v2316
          %3752 = vmatpush1.msra.mxu0 %v2315
          %3753 = vmatprep.subr.mxu0 %v2312
          %3754 = vmatpush1.msra.mxu0 %v2311
          %3755 = vmatprep.subr.mxu0 %v2308
          %3756 = vmatpush1.msra.mxu0 %v2307
          %3757 = vmatprep.subr.mxu0 %v2304
          %3758 = vmatpush1.msra.mxu0 %v2303
          %3759 = vmatprep.subr.mxu0 %v2300
          %3760 = vmatpush1.msra.mxu0 %v2299
          %3761 = vmatprep.subr.mxu0 %v2296
          %3762 = vmatpush1.msra.mxu0 %v2295
          %3763 = vmatprep.subr.mxu0 %v2292
          %3764 = vmatpush1.msra.mxu0 %v2291
          %3765 = vmatprep.subr.mxu0 %v2288
          %3766 = vmatpush1.msra.mxu0 %v2287
          %3767 = vmatprep.subr.mxu0 %v2284
          %3768 = vmatpush1.msra.mxu0 %v2283
          %3769 = vmatprep.subr.mxu0 %v2280
          %3770 = vmatpush1.msra.mxu0 %v2279
          %3771 = vmatprep.subr.mxu0 %v2276
          %3772 = vmatpush1.msra.mxu0 %v2275
          %3773 = vmatprep.subr.mxu0 %v2272
          %3774 = vmatpush1.msra.mxu0 %v2271
          %3775 = vmatprep.subr.mxu0 %v2396
          %3776 = vmatpush2.msra.mxu0 %v2395
          %3777 = vmatprep.subr.mxu0 %v2392
          %3778 = vmatpush2.msra.mxu0 %v2391
          %3779 = vmatprep.subr.mxu0 %v2388
          %3780 = vmatpush2.msra.mxu0 %v2387
          %3781 = vmatprep.subr.mxu0 %v2384
          %3782 = vmatpush2.msra.mxu0 %v2383
          %3783 = vmatprep.subr.mxu0 %v2380
          %3784 = vmatpush2.msra.mxu0 %v2379
          %3785 = vmatprep.subr.mxu0 %v2376
          %3786 = vmatpush2.msra.mxu0 %v2375
          %3787 = vmatprep.subr.mxu0 %v2372
          %3788 = vmatpush2.msra.mxu0 %v2371
          %3789 = vmatprep.subr.mxu0 %v2368
          %3790 = vmatpush2.msra.mxu0 %v2367
          %3791 = vmatprep.subr.mxu0 %v2364
          %3792 = vmatpush2.msra.mxu0 %v2363
          %3793 = vmatprep.subr.mxu0 %v2360
          %3794 = vmatpush2.msra.mxu0 %v2359
          %3795 = vmatprep.subr.mxu0 %v2356
          %3796 = vmatpush2.msra.mxu0 %v2355
          %3797 = vmatprep.subr.mxu0 %v2352
          %3798 = vmatpush2.msra.mxu0 %v2351
          %3799 = vmatprep.subr.mxu0 %v2348
          %3800 = vmatpush2.msra.mxu0 %v2347
          %3801 = vmatprep.subr.mxu0 %v2344
          %3802 = vmatpush2.msra.mxu0 %v2343
          %3803 = vmatprep.subr.mxu0 %v2340
          %3804 = vmatpush2.msra.mxu0 %v2339
          %3805 = vmatprep.subr.mxu0 %v2336
          %3806 = vmatpush2.msra.mxu0 %v2335
          %3807 = vmatprep.mubr.f32.mxu0 %v2856
          %3808 = vmatmul.mubr.f32.gmra.mxu0 %v2848
          %v3809 = vpop.f32.mrf.mxu0
          %v3810 = vadd.f32 %v3739, %v3809
          %v3811 = vpop.f32.mrf.mxu0
          %v3812 = vadd.f32 %v3741, %v3811
          %3813 = vdwg.mxu0
          %3814 = vmatprep.subr.mxu0 %v2460
          %3815 = vmatpush1.msra.mxu0 %v2459
          %3816 = vmatprep.subr.mxu0 %v2456
          %3817 = vmatpush1.msra.mxu0 %v2455
          %3818 = vmatprep.subr.mxu0 %v2452
          %3819 = vmatpush1.msra.mxu0 %v2451
          %3820 = vmatprep.subr.mxu0 %v2448
          %3821 = vmatpush1.msra.mxu0 %v2447
          %3822 = vmatprep.subr.mxu0 %v2444
          %3823 = vmatpush1.msra.mxu0 %v2443
          %3824 = vmatprep.subr.mxu0 %v2440
          %3825 = vmatpush1.msra.mxu0 %v2439
          %3826 = vmatprep.subr.mxu0 %v2436
          %3827 = vmatpush1.msra.mxu0 %v2435
          %3828 = vmatprep.subr.mxu0 %v2432
          %3829 = vmatpush1.msra.mxu0 %v2431
          %3830 = vmatprep.subr.mxu0 %v2428
          %3831 = vmatpush1.msra.mxu0 %v2427
          %3832 = vmatprep.subr.mxu0 %v2424
          %3833 = vmatpush1.msra.mxu0 %v2423
          %3834 = vmatprep.subr.mxu0 %v2420
          %3835 = vmatpush1.msra.mxu0 %v2419
          %3836 = vmatprep.subr.mxu0 %v2416
          %3837 = vmatpush1.msra.mxu0 %v2415
          %3838 = vmatprep.subr.mxu0 %v2412
          %3839 = vmatpush1.msra.mxu0 %v2411
          %3840 = vmatprep.subr.mxu0 %v2408
          %3841 = vmatpush1.msra.mxu0 %v2407
          %3842 = vmatprep.subr.mxu0 %v2404
          %3843 = vmatpush1.msra.mxu0 %v2403
          %3844 = vmatprep.subr.mxu0 %v2400
          %3845 = vmatpush1.msra.mxu0 %v2399
          %3846 = vmatprep.subr.mxu0 %v2524
          %3847 = vmatpush2.msra.mxu0 %v2523
          %3848 = vmatprep.subr.mxu0 %v2520
          %3849 = vmatpush2.msra.mxu0 %v2519
          %3850 = vmatprep.subr.mxu0 %v2516
          %3851 = vmatpush2.msra.mxu0 %v2515
          %3852 = vmatprep.subr.mxu0 %v2512
          %3853 = vmatpush2.msra.mxu0 %v2511
          %3854 = vmatprep.subr.mxu0 %v2508
          %3855 = vmatpush2.msra.mxu0 %v2507
          %3856 = vmatprep.subr.mxu0 %v2504
          %3857 = vmatpush2.msra.mxu0 %v2503
          %3858 = vmatprep.subr.mxu0 %v2500
          %3859 = vmatpush2.msra.mxu0 %v2499
          %3860 = vmatprep.subr.mxu0 %v2496
          %3861 = vmatpush2.msra.mxu0 %v2495
          %3862 = vmatprep.subr.mxu0 %v2492
          %3863 = vmatpush2.msra.mxu0 %v2491
          %3864 = vmatprep.subr.mxu0 %v2488
          %3865 = vmatpush2.msra.mxu0 %v2487
          %3866 = vmatprep.subr.mxu0 %v2484
          %3867 = vmatpush2.msra.mxu0 %v2483
          %3868 = vmatprep.subr.mxu0 %v2480
          %3869 = vmatpush2.msra.mxu0 %v2479
          %3870 = vmatprep.subr.mxu0 %v2476
          %3871 = vmatpush2.msra.mxu0 %v2475
          %3872 = vmatprep.subr.mxu0 %v2472
          %3873 = vmatpush2.msra.mxu0 %v2471
          %3874 = vmatprep.subr.mxu0 %v2468
          %3875 = vmatpush2.msra.mxu0 %v2467
          %3876 = vmatprep.subr.mxu0 %v2464
          %3877 = vmatpush2.msra.mxu0 %v2463
          %3878 = vmatprep.mubr.f32.mxu0 %v2857
          %3879 = vmatmul.mubr.f32.gmra.mxu0 %v2855
          %v3880 = vpop.f32.mrf.mxu0
          %v3881 = vadd.f32 %v3810, %v3880
          %v3882 = vpop.f32.mrf.mxu0
          %v3883 = vadd.f32 %v3812, %v3882
          %3884 = vdwg.mxu0
          %3885 = vmatprep.subr.mxu0 %v2588
          %3886 = vmatpush1.msra.mxu0 %v2587
          %3887 = vmatprep.subr.mxu0 %v2584
          %3888 = vmatpush1.msra.mxu0 %v2583
          %3889 = vmatprep.subr.mxu0 %v2580
          %3890 = vmatpush1.msra.mxu0 %v2579
          %3891 = vmatprep.subr.mxu0 %v2576
          %3892 = vmatpush1.msra.mxu0 %v2575
          %3893 = vmatprep.subr.mxu0 %v2572
          %3894 = vmatpush1.msra.mxu0 %v2571
          %3895 = vmatprep.subr.mxu0 %v2568
          %3896 = vmatpush1.msra.mxu0 %v2567
          %3897 = vmatprep.subr.mxu0 %v2564
          %3898 = vmatpush1.msra.mxu0 %v2563
          %3899 = vmatprep.subr.mxu0 %v2560
          %3900 = vmatpush1.msra.mxu0 %v2559
          %3901 = vmatprep.subr.mxu0 %v2556
          %3902 = vmatpush1.msra.mxu0 %v2555
          %3903 = vmatprep.subr.mxu0 %v2552
          %3904 = vmatpush1.msra.mxu0 %v2551
          %3905 = vmatprep.subr.mxu0 %v2548
          %3906 = vmatpush1.msra.mxu0 %v2547
          %3907 = vmatprep.subr.mxu0 %v2544
          %3908 = vmatpush1.msra.mxu0 %v2543
          %3909 = vmatprep.subr.mxu0 %v2540
          %3910 = vmatpush1.msra.mxu0 %v2539
          %3911 = vmatprep.subr.mxu0 %v2536
          %3912 = vmatpush1.msra.mxu0 %v2535
          %3913 = vmatprep.subr.mxu0 %v2532
          %3914 = vmatpush1.msra.mxu0 %v2531
          %3915 = vmatprep.subr.mxu0 %v2528
          %3916 = vmatpush1.msra.mxu0 %v2527
          %3917 = vmatprep.subr.mxu0 %v2652
          %3918 = vmatpush2.msra.mxu0 %v2651
          %3919 = vmatprep.subr.mxu0 %v2648
          %3920 = vmatpush2.msra.mxu0 %v2647
          %3921 = vmatprep.subr.mxu0 %v2644
          %3922 = vmatpush2.msra.mxu0 %v2643
          %3923 = vmatprep.subr.mxu0 %v2640
          %3924 = vmatpush2.msra.mxu0 %v2639
          %3925 = vmatprep.subr.mxu0 %v2636
          %3926 = vmatpush2.msra.mxu0 %v2635
          %3927 = vmatprep.subr.mxu0 %v2632
          %3928 = vmatpush2.msra.mxu0 %v2631
          %3929 = vmatprep.subr.mxu0 %v2628
          %3930 = vmatpush2.msra.mxu0 %v2627
          %3931 = vmatprep.subr.mxu0 %v2624
          %3932 = vmatpush2.msra.mxu0 %v2623
          %3933 = vmatprep.subr.mxu0 %v2620
          %3934 = vmatpush2.msra.mxu0 %v2619
          %3935 = vmatprep.subr.mxu0 %v2616
          %3936 = vmatpush2.msra.mxu0 %v2615
          %3937 = vmatprep.subr.mxu0 %v2612
          %3938 = vmatpush2.msra.mxu0 %v2611
          %3939 = vmatprep.subr.mxu0 %v2608
          %3940 = vmatpush2.msra.mxu0 %v2607
          %3941 = vmatprep.subr.mxu0 %v2604
          %3942 = vmatpush2.msra.mxu0 %v2603
          %3943 = vmatprep.subr.mxu0 %v2600
          %3944 = vmatpush2.msra.mxu0 %v2599
          %3945 = vmatprep.subr.mxu0 %v2596
          %3946 = vmatpush2.msra.mxu0 %v2595
          %3947 = vmatprep.subr.mxu0 %v2592
          %3948 = vmatpush2.msra.mxu0 %v2591
          %3949 = vmatprep.mubr.f32.mxu0 %v2873
          %3950 = vmatmul.mubr.f32.gmra.mxu0 %v2865
          %v3951 = vpop.f32.mrf.mxu0
          %v3952 = vadd.f32 %v3881, %v3951
          %v3953 = vpop.f32.mrf.mxu0
          %v3954 = vadd.f32 %v3883, %v3953
          %3955 = vdwg.mxu0
          %3956 = vmatprep.subr.mxu0 %v2716
          %3957 = vmatpush1.msra.mxu0 %v2715
          %3958 = vmatprep.subr.mxu0 %v2712
          %3959 = vmatpush1.msra.mxu0 %v2711
          %3960 = vmatprep.subr.mxu0 %v2708
          %3961 = vmatpush1.msra.mxu0 %v2707
          %3962 = vmatprep.subr.mxu0 %v2704
          %3963 = vmatpush1.msra.mxu0 %v2703
          %3964 = vmatprep.subr.mxu0 %v2700
          %3965 = vmatpush1.msra.mxu0 %v2699
          %3966 = vmatprep.subr.mxu0 %v2696
          %3967 = vmatpush1.msra.mxu0 %v2695
          %3968 = vmatprep.subr.mxu0 %v2692
          %3969 = vmatpush1.msra.mxu0 %v2691
          %3970 = vmatprep.subr.mxu0 %v2688
          %3971 = vmatpush1.msra.mxu0 %v2687
          %3972 = vmatprep.subr.mxu0 %v2684
          %3973 = vmatpush1.msra.mxu0 %v2683
          %3974 = vmatprep.subr.mxu0 %v2680
          %3975 = vmatpush1.msra.mxu0 %v2679
          %3976 = vmatprep.subr.mxu0 %v2676
          %3977 = vmatpush1.msra.mxu0 %v2675
          %3978 = vmatprep.subr.mxu0 %v2672
          %3979 = vmatpush1.msra.mxu0 %v2671
          %3980 = vmatprep.subr.mxu0 %v2668
          %3981 = vmatpush1.msra.mxu0 %v2667
          %3982 = vmatprep.subr.mxu0 %v2664
          %3983 = vmatpush1.msra.mxu0 %v2663
          %3984 = vmatprep.subr.mxu0 %v2660
          %3985 = vmatpush1.msra.mxu0 %v2659
          %3986 = vmatprep.subr.mxu0 %v2656
          %3987 = vmatpush1.msra.mxu0 %v2655
          %3988 = vmatprep.subr.mxu0 %v2780
          %3989 = vmatpush2.msra.mxu0 %v2779
          %3990 = vmatprep.subr.mxu0 %v2776
          %3991 = vmatpush2.msra.mxu0 %v2775
          %3992 = vmatprep.subr.mxu0 %v2772
          %3993 = vmatpush2.msra.mxu0 %v2771
          %3994 = vmatprep.subr.mxu0 %v2768
          %3995 = vmatpush2.msra.mxu0 %v2767
          %3996 = vmatprep.subr.mxu0 %v2764
          %3997 = vmatpush2.msra.mxu0 %v2763
          %3998 = vmatprep.subr.mxu0 %v2760
          %3999 = vmatpush2.msra.mxu0 %v2759
          %4000 = vmatprep.subr.mxu0 %v2756
          %4001 = vmatpush2.msra.mxu0 %v2755
          %4002 = vmatprep.subr.mxu0 %v2752
          %4003 = vmatpush2.msra.mxu0 %v2751
          %4004 = vmatprep.subr.mxu0 %v2748
          %4005 = vmatpush2.msra.mxu0 %v2747
          %4006 = vmatprep.subr.mxu0 %v2744
          %4007 = vmatpush2.msra.mxu0 %v2743
          %4008 = vmatprep.subr.mxu0 %v2740
          %4009 = vmatpush2.msra.mxu0 %v2739
          %4010 = vmatprep.subr.mxu0 %v2736
          %4011 = vmatpush2.msra.mxu0 %v2735
          %4012 = vmatprep.subr.mxu0 %v2732
          %4013 = vmatpush2.msra.mxu0 %v2731
          %4014 = vmatprep.subr.mxu0 %v2728
          %4015 = vmatpush2.msra.mxu0 %v2727
          %4016 = vmatprep.subr.mxu0 %v2724
          %4017 = vmatpush2.msra.mxu0 %v2723
          %4018 = vmatprep.subr.mxu0 %v2720
          %4019 = vmatpush2.msra.mxu0 %v2719
          %4020 = vmatprep.mubr.f32.mxu0 %v2874
          %4021 = vmatmul.mubr.f32.gmra.mxu0 %v2872
          %v4022 = vpop.f32.mrf.mxu0
          %v4023 = vadd.f32 %v3952, %v4022
          %v4024 = vpop.f32.mrf.mxu0
          %v4025 = vadd.f32 %v3954, %v4024
          %4026 = vdwg.mxu0
          %v4027 = vmax.f32 %v3455, 0.0
          %v4028 = vmax.f32 %v3457, 0.0
          %v4029 = vmax.f32 %v4023, 0.0
          %v4030 = vmax.f32 %v4025, 0.0
          %v4031 = vld [vmem:[#allocation9] sm:$0xff]
          %v4032 = vld [vmem:[#allocation9 + $0x8] sm:$0xff]
          %v4033 = vld [vmem:[#allocation9 + $0x10] sm:$0xff]
          %v4034 = vld [vmem:[#allocation9 + $0x18] sm:$0xff]
          %v4035 = vld [vmem:[#allocation9 + $0x20] sm:$0xff]
          %v4036 = vld [vmem:[#allocation9 + $0x28] sm:$0xff]
          %v4037 = vld [vmem:[#allocation9 + $0x30] sm:$0xff]
          %v4038 = vld [vmem:[#allocation9 + $0x38] sm:$0xff]
          %v4039 = vld [vmem:[#allocation9 + $0x40] sm:$0xff]
          %v4040 = vld [vmem:[#allocation9 + $0x48] sm:$0xff]
          %v4041 = vld [vmem:[#allocation9 + $0x50] sm:$0xff]
          %v4042 = vld [vmem:[#allocation9 + $0x58] sm:$0xff]
          %v4043 = vld [vmem:[#allocation9 + $0x60] sm:$0xff]
          %v4044 = vld [vmem:[#allocation9 + $0x68] sm:$0xff]
          %v4045 = vld [vmem:[#allocation9 + $0x70] sm:$0xff]
          %v4046 = vld [vmem:[#allocation9 + $0x78] sm:$0xff]
          %v4047 = vld [vmem:[#allocation9 + $0x80] sm:$0xff]
          %v4048 = vld [vmem:[#allocation9 + $0x88] sm:$0xff]
          %v4049 = vld [vmem:[#allocation9 + $0x90] sm:$0xff]
          %v4050 = vld [vmem:[#allocation9 + $0x98] sm:$0xff]
          %v4051 = vld [vmem:[#allocation9 + $0xa0] sm:$0xff]
          %v4052 = vld [vmem:[#allocation9 + $0xa8] sm:$0xff]
          %v4053 = vld [vmem:[#allocation9 + $0xb0] sm:$0xff]
          %v4054 = vld [vmem:[#allocation9 + $0xb8] sm:$0xff]
          %v4055 = vld [vmem:[#allocation9 + $0xc0] sm:$0xff]
          %v4056 = vld [vmem:[#allocation9 + $0xc8] sm:$0xff]
          %v4057 = vld [vmem:[#allocation9 + $0xd0] sm:$0xff]
          %v4058 = vld [vmem:[#allocation9 + $0xd8] sm:$0xff]
          %v4059 = vld [vmem:[#allocation9 + $0xe0] sm:$0xff]
          %v4060 = vld [vmem:[#allocation9 + $0xe8] sm:$0xff]
          %v4061 = vld [vmem:[#allocation9 + $0xf0] sm:$0xff]
          %v4062 = vld [vmem:[#allocation9 + $0xf8] sm:$0xff]
          %v4063 = vld [vmem:[#allocation9 + $0x100] sm:$0xff]
          %v4064 = vld [vmem:[#allocation9 + $0x108] sm:$0xff]
          %v4065 = vld [vmem:[#allocation9 + $0x110] sm:$0xff]
          %v4066 = vld [vmem:[#allocation9 + $0x118] sm:$0xff]
          %v4067 = vld [vmem:[#allocation9 + $0x120] sm:$0xff]
          %v4068 = vld [vmem:[#allocation9 + $0x128] sm:$0xff]
          %v4069 = vld [vmem:[#allocation9 + $0x130] sm:$0xff]
          %v4070 = vld [vmem:[#allocation9 + $0x138] sm:$0xff]
          %v4071 = vld [vmem:[#allocation9 + $0x140] sm:$0xff]
          %v4072 = vld [vmem:[#allocation9 + $0x148] sm:$0xff]
          %v4073 = vld [vmem:[#allocation9 + $0x150] sm:$0xff]
          %v4074 = vld [vmem:[#allocation9 + $0x158] sm:$0xff]
          %v4075 = vld [vmem:[#allocation9 + $0x160] sm:$0xff]
          %v4076 = vld [vmem:[#allocation9 + $0x168] sm:$0xff]
          %v4077 = vld [vmem:[#allocation9 + $0x170] sm:$0xff]
          %v4078 = vld [vmem:[#allocation9 + $0x178] sm:$0xff]
          %v4079 = vld [vmem:[#allocation9 + $0x180] sm:$0xff]
          %v4080 = vld [vmem:[#allocation9 + $0x188] sm:$0xff]
          %v4081 = vld [vmem:[#allocation9 + $0x190] sm:$0xff]
          %v4082 = vld [vmem:[#allocation9 + $0x198] sm:$0xff]
          %v4083 = vld [vmem:[#allocation9 + $0x1a0] sm:$0xff]
          %v4084 = vld [vmem:[#allocation9 + $0x1a8] sm:$0xff]
          %v4085 = vld [vmem:[#allocation9 + $0x1b0] sm:$0xff]
          %v4086 = vld [vmem:[#allocation9 + $0x1b8] sm:$0xff]
          %v4087 = vld [vmem:[#allocation9 + $0x1c0] sm:$0xff]
          %v4088 = vld [vmem:[#allocation9 + $0x1c8] sm:$0xff]
          %v4089 = vld [vmem:[#allocation9 + $0x1d0] sm:$0xff]
          %v4090 = vld [vmem:[#allocation9 + $0x1d8] sm:$0xff]
          %v4091 = vld [vmem:[#allocation9 + $0x1e0] sm:$0xff]
          %v4092 = vld [vmem:[#allocation9 + $0x1e8] sm:$0xff]
          %v4093 = vld [vmem:[#allocation9 + $0x1f0] sm:$0xff]
          %v4094 = vld [vmem:[#allocation9 + $0x1f8] sm:$0xff]
          %v4095 = vld [vmem:[#allocation11] sm:$0x1]
          %v4097 = vlaneseq
          %v4098 = vshrl.u32 %v4097, 7
          %v4099 = vsub.s32 0, %v4098
          %v4100 = vrot.slane %v4095, %v4099
          %4102 = vmatprep.subr.mxu0 0.0
          %4103 = vmatpush1.msra.mxu0 %v4046
          %4104 = vmatprep.subr.mxu0 0.0
          %4105 = vmatpush1.msra.mxu0 %v4045
          %4106 = vmatprep.subr.mxu0 0.0
          %4107 = vmatpush1.msra.mxu0 %v4044
          %4108 = vmatprep.subr.mxu0 0.0
          %4109 = vmatpush1.msra.mxu0 %v4043
          %4110 = vmatprep.subr.mxu0 0.0
          %4111 = vmatpush1.msra.mxu0 %v4042
          %4112 = vmatprep.subr.mxu0 0.0
          %4113 = vmatpush1.msra.mxu0 %v4041
          %4114 = vmatprep.subr.mxu0 0.0
          %4115 = vmatpush1.msra.mxu0 %v4040
          %4116 = vmatprep.subr.mxu0 0.0
          %4117 = vmatpush1.msra.mxu0 %v4039
          %4118 = vmatprep.subr.mxu0 0.0
          %4119 = vmatpush1.msra.mxu0 %v4038
          %4120 = vmatprep.subr.mxu0 0.0
          %4121 = vmatpush1.msra.mxu0 %v4037
          %4122 = vmatprep.subr.mxu0 0.0
          %4123 = vmatpush1.msra.mxu0 %v4036
          %4124 = vmatprep.subr.mxu0 0.0
          %4125 = vmatpush1.msra.mxu0 %v4035
          %4126 = vmatprep.subr.mxu0 0.0
          %4127 = vmatpush1.msra.mxu0 %v4034
          %4128 = vmatprep.subr.mxu0 0.0
          %4129 = vmatpush1.msra.mxu0 %v4033
          %4130 = vmatprep.subr.mxu0 0.0
          %4131 = vmatpush1.msra.mxu0 %v4032
          %4132 = vmatprep.subr.mxu0 0.0
          %4133 = vmatpush1.msra.mxu0 %v4031
          %4134 = vmatprep.subr.mxu0 0.0
          %4135 = vmatpush2.msra.mxu0 %v4062
          %4136 = vmatprep.subr.mxu0 0.0
          %4137 = vmatpush2.msra.mxu0 %v4061
          %4138 = vmatprep.subr.mxu0 0.0
          %4139 = vmatpush2.msra.mxu0 %v4060
          %4140 = vmatprep.subr.mxu0 0.0
          %4141 = vmatpush2.msra.mxu0 %v4059
          %4142 = vmatprep.subr.mxu0 0.0
          %4143 = vmatpush2.msra.mxu0 %v4058
          %4144 = vmatprep.subr.mxu0 0.0
          %4145 = vmatpush2.msra.mxu0 %v4057
          %4146 = vmatprep.subr.mxu0 0.0
          %4147 = vmatpush2.msra.mxu0 %v4056
          %4148 = vmatprep.subr.mxu0 0.0
          %4149 = vmatpush2.msra.mxu0 %v4055
          %4150 = vmatprep.subr.mxu0 0.0
          %4151 = vmatpush2.msra.mxu0 %v4054
          %4152 = vmatprep.subr.mxu0 0.0
          %4153 = vmatpush2.msra.mxu0 %v4053
          %4154 = vmatprep.subr.mxu0 0.0
          %4155 = vmatpush2.msra.mxu0 %v4052
          %4156 = vmatprep.subr.mxu0 0.0
          %4157 = vmatpush2.msra.mxu0 %v4051
          %4158 = vmatprep.subr.mxu0 0.0
          %4159 = vmatpush2.msra.mxu0 %v4050
          %4160 = vmatprep.subr.mxu0 0.0
          %4161 = vmatpush2.msra.mxu0 %v4049
          %4162 = vmatprep.subr.mxu0 0.0
          %4163 = vmatpush2.msra.mxu0 %v4048
          %4164 = vmatprep.subr.mxu0 0.0
          %4165 = vmatpush2.msra.mxu0 %v4047
          %4166 = vmatprep.mubr.f32.mxu0 %v4028
          %4167 = vmatmul.mubr.f32.gmra.mxu0 %v4027
          %v4168 = vpop.f32.mrf.mxu0
          %v4169 = vadd.f32 %v4100, %v4168
          %v4170 = vpop.f32.mrf.mxu0
          %4171 = vdwg.mxu0
          %4172 = vmatprep.subr.mxu0 0.0
          %4173 = vmatpush1.msra.mxu0 %v4078
          %4174 = vmatprep.subr.mxu0 0.0
          %4175 = vmatpush1.msra.mxu0 %v4077
          %4176 = vmatprep.subr.mxu0 0.0
          %4177 = vmatpush1.msra.mxu0 %v4076
          %4178 = vmatprep.subr.mxu0 0.0
          %4179 = vmatpush1.msra.mxu0 %v4075
          %4180 = vmatprep.subr.mxu0 0.0
          %4181 = vmatpush1.msra.mxu0 %v4074
          %4182 = vmatprep.subr.mxu0 0.0
          %4183 = vmatpush1.msra.mxu0 %v4073
          %4184 = vmatprep.subr.mxu0 0.0
          %4185 = vmatpush1.msra.mxu0 %v4072
          %4186 = vmatprep.subr.mxu0 0.0
          %4187 = vmatpush1.msra.mxu0 %v4071
          %4188 = vmatprep.subr.mxu0 0.0
          %4189 = vmatpush1.msra.mxu0 %v4070
          %4190 = vmatprep.subr.mxu0 0.0
          %4191 = vmatpush1.msra.mxu0 %v4069
          %4192 = vmatprep.subr.mxu0 0.0
          %4193 = vmatpush1.msra.mxu0 %v4068
          %4194 = vmatprep.subr.mxu0 0.0
          %4195 = vmatpush1.msra.mxu0 %v4067
          %4196 = vmatprep.subr.mxu0 0.0
          %4197 = vmatpush1.msra.mxu0 %v4066
          %4198 = vmatprep.subr.mxu0 0.0
          %4199 = vmatpush1.msra.mxu0 %v4065
          %4200 = vmatprep.subr.mxu0 0.0
          %4201 = vmatpush1.msra.mxu0 %v4064
          %4202 = vmatprep.subr.mxu0 0.0
          %4203 = vmatpush1.msra.mxu0 %v4063
          %4204 = vmatprep.subr.mxu0 0.0
          %4205 = vmatpush2.msra.mxu0 %v4094
          %4206 = vmatprep.subr.mxu0 0.0
          %4207 = vmatpush2.msra.mxu0 %v4093
          %4208 = vmatprep.subr.mxu0 0.0
          %4209 = vmatpush2.msra.mxu0 %v4092
          %4210 = vmatprep.subr.mxu0 0.0
          %4211 = vmatpush2.msra.mxu0 %v4091
          %4212 = vmatprep.subr.mxu0 0.0
          %4213 = vmatpush2.msra.mxu0 %v4090
          %4214 = vmatprep.subr.mxu0 0.0
          %4215 = vmatpush2.msra.mxu0 %v4089
          %4216 = vmatprep.subr.mxu0 0.0
          %4217 = vmatpush2.msra.mxu0 %v4088
          %4218 = vmatprep.subr.mxu0 0.0
          %4219 = vmatpush2.msra.mxu0 %v4087
          %4220 = vmatprep.subr.mxu0 0.0
          %4221 = vmatpush2.msra.mxu0 %v4086
          %4222 = vmatprep.subr.mxu0 0.0
          %4223 = vmatpush2.msra.mxu0 %v4085
          %4224 = vmatprep.subr.mxu0 0.0
          %4225 = vmatpush2.msra.mxu0 %v4084
          %4226 = vmatprep.subr.mxu0 0.0
          %4227 = vmatpush2.msra.mxu0 %v4083
          %4228 = vmatprep.subr.mxu0 0.0
          %4229 = vmatpush2.msra.mxu0 %v4082
          %4230 = vmatprep.subr.mxu0 0.0
          %4231 = vmatpush2.msra.mxu0 %v4081
          %4232 = vmatprep.subr.mxu0 0.0
          %4233 = vmatpush2.msra.mxu0 %v4080
          %4234 = vmatprep.subr.mxu0 0.0
          %4235 = vmatpush2.msra.mxu0 %v4079
          %4236 = vmatprep.mubr.f32.mxu0 %v4030
          %4237 = vmatmul.mubr.f32.gmra.mxu0 %v4029
          %v4238 = vpop.f32.mrf.mxu0
          %v4239 = vadd.f32 %v4169, %v4238
          %v4240 = vpop.f32.mrf.mxu0
          %4241 = vdwg.mxu0
          %4242 = vst [vmem:[#allocation12] sm:$0x3] %v4239
        $region68: #{tpu_custom_call.1} parent=39 // pred_fallthru
          _
        // Predicated region
        $region69: #{tpu_custom_call.1} parent=39 // pred_check
          %p4243 = pneg %p164
        $region70: #{tpu_custom_call.1} parent=39 // pred_check_branch
          %4245 = sbr.rel (%p4243) target = $region72
        $region71: #{tpu_custom_call.1} parent=39 // pred_region
          %s4247 = ssub.s32 32, 32
          %4248 = vsyncadd [#allocation5], %s4247
          %s4249 = smul.addr %s26, 32
          %s4250 = scalar_lea.hbm %s5, %s4249
          %s4252 = sshll.u32 [#allocation12], 4
          %s4253 = int_to_ptr.vmem [resolvable:$true] %s4252
          %4255 = dma.vmem_to_hbm [thread:$0]  %s4253, 32, %s4250, [#allocation5]
        $region72: #{tpu_custom_call.1} parent=39 // pred_fallthru
          _
        // Predicated region
        $region73: #{tpu_custom_call.1} parent=39 // pred_check
          %p4256 = pneg %p164
        $region74: #{tpu_custom_call.1} parent=39 // pred_check_branch
          %4258 = sbr.rel (%p4256) target = $region76
        $region75: #{tpu_custom_call.1} parent=39 // pred_region
          %4259 = dma.done [#allocation5], 32
        $region76: #{tpu_custom_call.1} parent=39 // pred_fallthru
          _
      $region40: #{tpu_custom_call.1} parent=5 // pred_fallthru
        _
      %p4260 = scmp.le.s32.totalorder 2, %s17
      // Predicated region
      $region77: #{tpu_custom_call.1} parent=5 // pred_check
        %p4261 = pneg %p4260
      $region78: #{tpu_custom_call.1} parent=5 // pred_check_branch
        %4263 = sbr.rel (%p4261) target = $region80
      $region79: #{tpu_custom_call.1} parent=5 // pred_region
        %s4264 = ssub.s32 %s17, 2
      $region80: #{tpu_custom_call.1} parent=5 // pred_fallthru
        _
    $region6: #{tpu_custom_call.1} parent=1 // loop_footer
      %s21 = sadd.s32 1, %s17
    $region7: #{tpu_custom_call.1} parent=1 // loop_footer_branch
      %16 = sbr.rel target = $region3
    $region8: #{tpu_custom_call.1} parent=1 // loop_exit
      _
    %4265 = vsyncpa [#allocation4], 1
    %s4266 = scalar_lea.sflag [#allocation4], 1
    %4267 = vsyncpa %s4266, 1
    %4268 = vsyncpa [#allocation7], 1
    %4269 = vsyncpa [#allocation10], 1
    %4270 = vsyncpa [#allocation5], 1
    %s4271 = scalar_lea.sflag [#allocation5], 1
    %4272 = vsyncpa %s4271, 1

</llo_original>
